<compile_context>
chip_gen: v6e
topology: v6e:2x2x1
jax: 0.10.0
libtpu: 0.0.40
codegen_flags: <defaults>
</compile_context>

<pallas_src>
import jax
import jax.numpy as jnp
from jax import lax
from jax.experimental import pallas as pl
from jax.experimental.pallas import tpu as pltpu

# ---------------- problem sizes (architecture dims fixed by the module) ------
BATCH = 2
LATENT = 8            # latent_dims
OUTC = 3              # out_channels
HID_C = 32            # channels after fc / conv1
HID_HW = 64           # fc image is 32 x 64 x 64
K = 5                 # kernel_size of both transposed convs
IMG = (72, 72)        # image_size default; 64 + 4 + 4 = 72

HO1 = WO1 = HID_HW + K - 1        # 68  conv1 output H/W
HO2 = WO2 = HO1 + K - 1           # 72  conv2 output H/W
PAD = K - 1                       # 4   semantic "full" conv padding
LPAD = 8                          # extra left col padding -> sublane-aligned writes
XPS_H = PAD + HO1 + PAD           # 76  canvas rows
XPS_W = LPAD + WO1 + PAD          # 80  canvas cols
HSUB = 4                          # image rows packed per 128-lane fc block
NGRP = HID_HW // HSUB             # 16
KC = K * HID_C                    # 160 folded contraction (kx, ci)


def _leaky(v):
    return jnp.where(v >= 0, v, 0.1 * v)


def _sigmoid(v):
    return 1.0 / (1.0 + jnp.exp(-v))


# -----------------------------------------------------------------------------
# The fused decoder kernel (one grid step per batch element).
#   xps_ref : (76, 80, 32) f32 canvas.  Interior columns start at LPAD=8 so all
#             activation writes are sublane-aligned; everything outside the
#             interior stays 0 and provides the transposed-conv "full" padding.
#   u_ref   : (76, 72, 160) bf16 "kx-unfolded" rows: u[r, x, kx*32+ci] =
#             padded_input[r, x+kx, ci].  Each conv output row is then just
#             sum_ky  u[y+ky] @ w[ky]  with a 160-deep MXU contraction.
# -----------------------------------------------------------------------------
def decoder_kernel(x_ref, wfc_ref, bfc_ref, w1_ref, b1_ref, w2_ref, b2_ref,
                   out_ref, xps_ref, u_ref):
    b = pl.program_id(0)

    # 0) zero the canvas (borders must be zero for both conv stages)
    xps_ref[...] = jnp.zeros_like(xps_ref)

    # 1) fc1 + LeakyReLU  ->  interior of the canvas (NHWC rows).
    #    wfc_ref[l, g] is a (64, 128) slab holding 4 image rows (h = 4g+s),
    #    lanes = s*32 + c, so the whole FMA runs lane-dense on the VPU.
    def fc_body(g, carry):
        block = bfc_ref[g]                                  # (64, 128)
        for l in range(LATENT):
            block = block + x_ref[b, l] * wfc_ref[l, g]
        block = _leaky(block)
        for s in range(HSUB):
            row = block[:, s * HID_C:(s + 1) * HID_C]       # (64, 32) = (w, c)
            xps_ref[PAD + HSUB * g + s, LPAD:LPAD + HID_HW, :] = row
        return carry

    lax.fori_loop(0, NGRP, fc_body, 0)

    # helper: kx-unfold every canvas row into a (72, 160) matmul-ready row
    def build_unfold():
        def body(r, carry):
            pieces = [xps_ref[r, PAD + kx:PAD + kx + WO2, :] for kx in range(K)]
            u_ref[r] = jnp.concatenate(pieces, axis=-1).astype(jnp.bfloat16)
            return carry
        lax.fori_loop(0, XPS_H, body, 0)

    # 2) conv1 (stride-1/pad-0 ConvTranspose as a "full" direct conv) + LeakyReLU
    build_unfold()

    def conv1_body(y, carry):
        acc = jnp.zeros((WO2, HID_C), jnp.float32)
        for ky in range(K):
            acc = acc + jnp.dot(u_ref[y + ky], w1_ref[ky],
                                preferred_element_type=jnp.float32)
        v = _leaky(acc + b1_ref[...])                       # (72, 32)
        xps_ref[PAD + y, LPAD:LPAD + WO1, :] = v[:WO1, :]   # keep only 68 cols
        return carry

    lax.fori_loop(0, HO1, conv1_body, 0)

    # 3) conv2 + sigmoid -> output rows (NHWC)
    build_unfold()

    def conv2_body(y, carry):
        acc = jnp.zeros((WO2, OUTC), jnp.float32)
        for ky in range(K):
            acc = acc + jnp.dot(u_ref[y + ky], w2_ref[ky],
                                preferred_element_type=jnp.float32)
        out_ref[y] = _sigmoid(acc + b2_ref[...])            # (72, 3)
        return carry

    lax.fori_loop(0, HO2, conv2_body, 0)


# -----------------------------------------------------------------------------
# Wrapper: single fused pallas_call + a tiny NHWC->NCHW transpose of the output.
# -----------------------------------------------------------------------------
def decoder_forward(x, prep):
    B = x.shape[0]
    out_nhwc = pl.pallas_call(
        decoder_kernel,
        out_shape=jax.ShapeDtypeStruct((B, HO2, WO2, OUTC), jnp.float32),
        grid_spec=pltpu.PrefetchScalarGridSpec(
            num_scalar_prefetch=0,
            grid=(B,),
            in_specs=[
                pl.BlockSpec(memory_space=pltpu.MemorySpace.SMEM),        # x (scalars)
                pl.BlockSpec((LATENT, NGRP, HID_HW, HSUB * HID_C),
                             lambda b: (0, 0, 0, 0)),                      # w_fc
                pl.BlockSpec((NGRP, HID_HW, HSUB * HID_C),
                             lambda b: (0, 0, 0)),                         # b_fc
                pl.BlockSpec((K, KC, HID_C), lambda b: (0, 0, 0)),         # w1 (bf16)
                pl.BlockSpec((1, HID_C), lambda b: (0, 0)),                # b1
                pl.BlockSpec((K, KC, OUTC), lambda b: (0, 0, 0)),          # w2 (bf16)
                pl.BlockSpec((1, OUTC), lambda b: (0, 0)),                 # b2
            ],
            out_specs=pl.BlockSpec((None, HO2, WO2, OUTC),
                                   lambda b: (b, 0, 0, 0)),
            scratch_shapes=[
                pltpu.VMEM((XPS_H, XPS_W, HID_C), jnp.float32),            # canvas
                pltpu.VMEM((XPS_H, WO2, KC), jnp.bfloat16),                # unfolded rows
            ],
        ),
        compiler_params=pltpu.CompilerParams(
            dimension_semantics=("parallel",),
            vmem_limit_bytes=50 * 1024 * 1024,
        ),
    )(x, prep["w_fc"], prep["b_fc"], prep["w1"], prep["b1"],
      prep["w2"], prep["b2"])
    return jnp.transpose(out_nhwc, (0, 3, 1, 2))             # NHWC -> NCHW


# -----------------------------------------------------------------------------
# Deterministic parameter init (PyTorch layouts; values are synthetic) and the
# one-time conversion into kernel-friendly layouts.
# -----------------------------------------------------------------------------
def init_params(key):
    ks = jax.random.split(key, 6)
    n_fc = HID_C * HID_HW * HID_HW
    s_fc = 1.0 / (LATENT ** 0.5)
    s_cv = 1.0 / ((HID_C * K * K) ** 0.5)
    return dict(
        w_fc=jax.random.uniform(ks[0], (LATENT, n_fc), jnp.float32, -s_fc, s_fc),
        b_fc=jax.random.uniform(ks[1], (n_fc,), jnp.float32, -s_fc, s_fc),
        # ConvTranspose2d weight layout: (in_channels, out_channels, kH, kW)
        w_c1=jax.random.uniform(ks[2], (HID_C, HID_C, K, K), jnp.float32, -s_cv, s_cv),
        b_c1=jax.random.uniform(ks[3], (HID_C,), jnp.float32, -s_cv, s_cv),
        w_c2=jax.random.uniform(ks[4], (HID_C, OUTC, K, K), jnp.float32, -s_cv, s_cv),
        b_c2=jax.random.uniform(ks[5], (OUTC,), jnp.float32, -s_cv, s_cv),
    )


def prepare_params(p):
    """One-time re-layout of the torch-style parameters for the fused kernel."""
    # fc weight: torch flat order of the output is (c, h, w); pack it so that
    # wfc[l, g, w, s*32+c] feeds image row h = 4g + s, lane-dense (128 lanes).
    wfc = p["w_fc"].reshape(LATENT, HID_C, HID_HW, HID_HW)        # (l, c, h, w)
    wfc = jnp.transpose(wfc, (0, 2, 3, 1))                        # (l, h, w, c)
    wfc = wfc.reshape(LATENT, NGRP, HSUB, HID_HW, HID_C)          # (l, g, s, w, c)
    wfc = jnp.transpose(wfc, (0, 1, 3, 2, 4))                     # (l, g, w, s, c)
    wfc = wfc.reshape(LATENT, NGRP, HID_HW, HSUB * HID_C)

    bfc = p["b_fc"].reshape(HID_C, HID_HW, HID_HW)                # (c, h, w)
    bfc = jnp.transpose(bfc, (1, 2, 0))                           # (h, w, c)
    bfc = bfc.reshape(NGRP, HSUB, HID_HW, HID_C)
    bfc = jnp.transpose(bfc, (0, 2, 1, 3)).reshape(NGRP, HID_HW, HSUB * HID_C)

    def conv_prep(wt):
        # ConvTranspose2d (s=1, p=0) == full direct conv with flipped kernel and
        # swapped channels; fold (kx, ci) into one 160-deep contraction.
        w_dir = jnp.transpose(jnp.flip(wt, axis=(2, 3)), (2, 3, 0, 1))  # (ky,kx,ci,co)
        kh, kw, ci, co = w_dir.shape
        return w_dir.reshape(kh, kw * ci, co).astype(jnp.bfloat16)

    return dict(
        w_fc=wfc, b_fc=bfc,
        w1=conv_prep(p["w_c1"]), b1=p["b_c1"].reshape(1, HID_C),
        w2=conv_prep(p["w_c2"]), b2=p["b_c2"].reshape(1, OUTC),
    )


# -----------------------------------------------------------------------------
# Pure-JAX reference (XLA) used as a correctness check.
# -----------------------------------------------------------------------------
def reference_forward(x, params):
    y = _leaky(x @ params["w_fc"] + params["b_fc"])
    img = y.reshape(x.shape[0], HID_C, HID_HW, HID_HW).transpose(0, 2, 3, 1)

    def conv(v, wt, b, act):
        w = jnp.transpose(jnp.flip(wt, axis=(2, 3)), (2, 3, 0, 1))     # (k,k,Cin,Cout)
        vp = jnp.pad(v, ((0, 0), (K - 1, K - 1), (K - 1, K - 1), (0, 0)))
        out = lax.conv_general_dilated(
            vp, w, window_strides=(1, 1), padding="VALID",
            dimension_numbers=("NHWC", "HWIO", "NHWC"),
            precision=lax.Precision.HIGHEST)
        return act(out + b)

    h1 = conv(img, params["w_c1"], params["b_c1"], _leaky)
    h2 = conv(h1, params["w_c2"], params["b_c2"], _sigmoid)
    return jnp.transpose(h2, (0, 3, 1, 2))


if __name__ == "__main__":
    key = jax.random.PRNGKey(0)
    pkey, xkey = jax.random.split(key)
    params = init_params(pkey)
    x = jax.random.normal(xkey, (BATCH, LATENT), jnp.float32)

    prep = prepare_params(params)          # one-time weight re-layout (outside jit)

    out = jax.jit(decoder_forward)(x, prep)
    out = jax.block_until_ready(out)

    assert out.shape == (BATCH, OUTC, IMG[0], IMG[1]), out.shape
    ref = reference_forward(x, params)
    max_err = float(jnp.max(jnp.abs(out - ref)))
    assert jnp.allclose(out, ref, atol=2e-2, rtol=2e-2), max_err

    print("KERNEL_OK")
</pallas_src>

<mosaic_0001>
module attributes {stable_mosaic.version = 11 : i64} {
  func.func @decoder_kernel(%arg0: i32, %arg1: memref<2x8xf32, #tpu.memory_space<smem>>, %arg2: memref<8x16x64x128xf32, #tpu.memory_space<vmem>>, %arg3: memref<16x64x128xf32, #tpu.memory_space<vmem>>, %arg4: memref<5x160x32xbf16, #tpu.memory_space<vmem>>, %arg5: memref<1x32xf32, #tpu.memory_space<vmem>>, %arg6: memref<5x160x3xbf16, #tpu.memory_space<vmem>>, %arg7: memref<1x3xf32, #tpu.memory_space<vmem>>, %arg8: memref<1x72x72x3xf32, #tpu.memory_space<vmem>>, %arg9: memref<76x80x32xf32, #tpu.memory_space<vmem>>, %arg10: memref<76x72x160xbf16, #tpu.memory_space<vmem>>) attributes {dimension_semantics = [#tpu.dimension_semantics<parallel>], iteration_bounds = array<i64: 2>, scalar_prefetch = 0 : i64, scratch_operands = 2 : i64, tpu.core_type = #tpu.core_type<tc>, window_params = [{transform_indices = @transform_0, window_bounds = array<i64: 2, 8>}, {pipeline_mode = #tpu.pipeline_mode<synchronous>, transform_indices = @transform_1, window_bounds = array<i64: 8, 16, 64, 128>}, {pipeline_mode = #tpu.pipeline_mode<synchronous>, transform_indices = @transform_2, window_bounds = array<i64: 16, 64, 128>}, {pipeline_mode = #tpu.pipeline_mode<synchronous>, transform_indices = @transform_3, window_bounds = array<i64: 5, 160, 32>}, {pipeline_mode = #tpu.pipeline_mode<synchronous>, transform_indices = @transform_4, window_bounds = array<i64: 1, 32>}, {pipeline_mode = #tpu.pipeline_mode<synchronous>, transform_indices = @transform_5, window_bounds = array<i64: 5, 160, 3>}, {pipeline_mode = #tpu.pipeline_mode<synchronous>, transform_indices = @transform_6, window_bounds = array<i64: 1, 3>}, {transform_indices = @transform_7, window_bounds = array<i64: 1, 72, 72, 3>}]} {
    %cst = arith.constant 0.000000e+00 : f32
    %0 = vector.broadcast %cst : f32 to vector<76x80x32xf32>
    %c0 = arith.constant 0 : index
    %c0_0 = arith.constant 0 : index
    %c0_1 = arith.constant 0 : index
    %1 = vector.load %arg9[%c0, %c0_0, %c0_1] : memref<76x80x32xf32, #tpu.memory_space<vmem>>, vector<76x80x32xf32>
    tpu.vector_store %arg9[%c0, %c0_0, %c0_1], %0 {strides = array<i32>} : memref<76x80x32xf32, #tpu.memory_space<vmem>>, vector<76x80x32xf32>,
    %c0_i32 = arith.constant 0 : i32
    %c16_i32 = arith.constant 16 : i32
    %2 = arith.addi %c0_i32, %c16_i32 : i32
    %c1_i32 = arith.constant 1 : i32
    scf.for %arg11 = %c0_i32 to %2 step %c1_i32  : i32 {
      %7 = arith.index_cast %arg11 : i32 to index
      %c0_16 = arith.constant 0 : index
      %c0_17 = arith.constant 0 : index
      %8 = vector.load %arg3[%7, %c0_16, %c0_17] : memref<16x64x128xf32, #tpu.memory_space<vmem>>, vector<1x64x128xf32>
      %9 = vector.shape_cast %8 : vector<1x64x128xf32> to vector<64x128xf32>
      %10 = arith.index_cast %arg0 : i32 to index
      %c0_18 = arith.constant 0 : index
      %11 = memref.load %arg1[%10, %c0_18] : memref<2x8xf32, #tpu.memory_space<smem>>
      %c0_19 = arith.constant 0 : index
      %12 = arith.index_cast %arg11 : i32 to index
      %c0_20 = arith.constant 0 : index
      %c0_21 = arith.constant 0 : index
      %13 = vector.load %arg2[%c0_19, %12, %c0_20, %c0_21] : memref<8x16x64x128xf32, #tpu.memory_space<vmem>>, vector<1x1x64x128xf32>
      %14 = vector.shape_cast %13 : vector<1x1x64x128xf32> to vector<64x128xf32>
      %15 = vector.broadcast %11 : f32 to vector<64x128xf32>
      %16 = arith.mulf %15, %14 : vector<64x128xf32>
      %17 = arith.addf %9, %16 : vector<64x128xf32>
      %18 = arith.index_cast %arg0 : i32 to index
      %c1 = arith.constant 1 : index
      %19 = memref.load %arg1[%18, %c1] : memref<2x8xf32, #tpu.memory_space<smem>>
      %c1_22 = arith.constant 1 : index
      %20 = arith.index_cast %arg11 : i32 to index
      %c0_23 = arith.constant 0 : index
      %c0_24 = arith.constant 0 : index
      %21 = vector.load %arg2[%c1_22, %20, %c0_23, %c0_24] : memref<8x16x64x128xf32, #tpu.memory_space<vmem>>, vector<1x1x64x128xf32>
      %22 = vector.shape_cast %21 : vector<1x1x64x128xf32> to vector<64x128xf32>
      %23 = vector.broadcast %19 : f32 to vector<64x128xf32>
      %24 = arith.mulf %23, %22 : vector<64x128xf32>
      %25 = arith.addf %17, %24 : vector<64x128xf32>
      %26 = arith.index_cast %arg0 : i32 to index
      %c2 = arith.constant 2 : index
      %27 = memref.load %arg1[%26, %c2] : memref<2x8xf32, #tpu.memory_space<smem>>
      %c2_25 = arith.constant 2 : index
      %28 = arith.index_cast %arg11 : i32 to index
      %c0_26 = arith.constant 0 : index
      %c0_27 = arith.constant 0 : index
      %29 = vector.load %arg2[%c2_25, %28, %c0_26, %c0_27] : memref<8x16x64x128xf32, #tpu.memory_space<vmem>>, vector<1x1x64x128xf32>
      %30 = vector.shape_cast %29 : vector<1x1x64x128xf32> to vector<64x128xf32>
      %31 = vector.broadcast %27 : f32 to vector<64x128xf32>
      %32 = arith.mulf %31, %30 : vector<64x128xf32>
      %33 = arith.addf %25, %32 : vector<64x128xf32>
      %34 = arith.index_cast %arg0 : i32 to index
      %c3 = arith.constant 3 : index
      %35 = memref.load %arg1[%34, %c3] : memref<2x8xf32, #tpu.memory_space<smem>>
      %c3_28 = arith.constant 3 : index
      %36 = arith.index_cast %arg11 : i32 to index
      %c0_29 = arith.constant 0 : index
      %c0_30 = arith.constant 0 : index
      %37 = vector.load %arg2[%c3_28, %36, %c0_29, %c0_30] : memref<8x16x64x128xf32, #tpu.memory_space<vmem>>, vector<1x1x64x128xf32>
      %38 = vector.shape_cast %37 : vector<1x1x64x128xf32> to vector<64x128xf32>
      %39 = vector.broadcast %35 : f32 to vector<64x128xf32>
      %40 = arith.mulf %39, %38 : vector<64x128xf32>
      %41 = arith.addf %33, %40 : vector<64x128xf32>
      %42 = arith.index_cast %arg0 : i32 to index
      %c4 = arith.constant 4 : index
      %43 = memref.load %arg1[%42, %c4] : memref<2x8xf32, #tpu.memory_space<smem>>
      %c4_31 = arith.constant 4 : index
      %44 = arith.index_cast %arg11 : i32 to index
      %c0_32 = arith.constant 0 : index
      %c0_33 = arith.constant 0 : index
      %45 = vector.load %arg2[%c4_31, %44, %c0_32, %c0_33] : memref<8x16x64x128xf32, #tpu.memory_space<vmem>>, vector<1x1x64x128xf32>
      %46 = vector.shape_cast %45 : vector<1x1x64x128xf32> to vector<64x128xf32>
      %47 = vector.broadcast %43 : f32 to vector<64x128xf32>
      %48 = arith.mulf %47, %46 : vector<64x128xf32>
      %49 = arith.addf %41, %48 : vector<64x128xf32>
      %50 = arith.index_cast %arg0 : i32 to index
      %c5 = arith.constant 5 : index
      %51 = memref.load %arg1[%50, %c5] : memref<2x8xf32, #tpu.memory_space<smem>>
      %c5_34 = arith.constant 5 : index
      %52 = arith.index_cast %arg11 : i32 to index
      %c0_35 = arith.constant 0 : index
      %c0_36 = arith.constant 0 : index
      %53 = vector.load %arg2[%c5_34, %52, %c0_35, %c0_36] : memref<8x16x64x128xf32, #tpu.memory_space<vmem>>, vector<1x1x64x128xf32>
      %54 = vector.shape_cast %53 : vector<1x1x64x128xf32> to vector<64x128xf32>
      %55 = vector.broadcast %51 : f32 to vector<64x128xf32>
      %56 = arith.mulf %55, %54 : vector<64x128xf32>
      %57 = arith.addf %49, %56 : vector<64x128xf32>
      %58 = arith.index_cast %arg0 : i32 to index
      %c6 = arith.constant 6 : index
      %59 = memref.load %arg1[%58, %c6] : memref<2x8xf32, #tpu.memory_space<smem>>
      %c6_37 = arith.constant 6 : index
      %60 = arith.index_cast %arg11 : i32 to index
      %c0_38 = arith.constant 0 : index
      %c0_39 = arith.constant 0 : index
      %61 = vector.load %arg2[%c6_37, %60, %c0_38, %c0_39] : memref<8x16x64x128xf32, #tpu.memory_space<vmem>>, vector<1x1x64x128xf32>
      %62 = vector.shape_cast %61 : vector<1x1x64x128xf32> to vector<64x128xf32>
      %63 = vector.broadcast %59 : f32 to vector<64x128xf32>
      %64 = arith.mulf %63, %62 : vector<64x128xf32>
      %65 = arith.addf %57, %64 : vector<64x128xf32>
      %66 = arith.index_cast %arg0 : i32 to index
      %c7 = arith.constant 7 : index
      %67 = memref.load %arg1[%66, %c7] : memref<2x8xf32, #tpu.memory_space<smem>>
      %c7_40 = arith.constant 7 : index
      %68 = arith.index_cast %arg11 : i32 to index
      %c0_41 = arith.constant 0 : index
      %c0_42 = arith.constant 0 : index
      %69 = vector.load %arg2[%c7_40, %68, %c0_41, %c0_42] : memref<8x16x64x128xf32, #tpu.memory_space<vmem>>, vector<1x1x64x128xf32>
      %70 = vector.shape_cast %69 : vector<1x1x64x128xf32> to vector<64x128xf32>
      %71 = vector.broadcast %67 : f32 to vector<64x128xf32>
      %72 = arith.mulf %71, %70 : vector<64x128xf32>
      %73 = arith.addf %65, %72 : vector<64x128xf32>
      %cst_43 = arith.constant 0.000000e+00 : f32
      %74 = vector.broadcast %cst_43 : f32 to vector<64x128xf32>
      %75 = arith.cmpf oge, %73, %74 : vector<64x128xf32>
      %cst_44 = arith.constant 1.000000e-01 : f32
      %76 = vector.broadcast %cst_44 : f32 to vector<64x128xf32>
      %77 = arith.mulf %76, %73 : vector<64x128xf32>
      %78 = arith.select %75, %73, %77 : vector<64x128xi1>, vector<64x128xf32>
      %79 = vector.extract_strided_slice %78 {offsets = [0, 0], sizes = [64, 32], strides = [1, 1]} : vector<64x128xf32> to vector<64x32xf32>
      %c4_i32 = arith.constant 4 : i32
      %80 = arith.muli %c4_i32, %arg11 : i32
      %c4_i32_45 = arith.constant 4 : i32
      %81 = arith.addi %c4_i32_45, %80 : i32
      %c0_i32_46 = arith.constant 0 : i32
      %82 = arith.addi %81, %c0_i32_46 : i32
      %83 = arith.index_cast %82 : i32 to index
      %c8 = arith.constant 8 : index
      %c0_47 = arith.constant 0 : index
      %84 = vector.load %arg9[%83, %c8, %c0_47] : memref<76x80x32xf32, #tpu.memory_space<vmem>>, vector<1x64x32xf32>
      %85 = vector.shape_cast %84 : vector<1x64x32xf32> to vector<64x32xf32>
      %86 = vector.shape_cast %79 : vector<64x32xf32> to vector<1x64x32xf32>
      tpu.vector_store %arg9[%83, %c8, %c0_47], %86 {strides = array<i32>} : memref<76x80x32xf32, #tpu.memory_space<vmem>>, vector<1x64x32xf32>,
      %87 = vector.extract_strided_slice %78 {offsets = [0, 32], sizes = [64, 32], strides = [1, 1]} : vector<64x128xf32> to vector<64x32xf32>
      %c4_i32_48 = arith.constant 4 : i32
      %88 = arith.muli %c4_i32_48, %arg11 : i32
      %c4_i32_49 = arith.constant 4 : i32
      %89 = arith.addi %c4_i32_49, %88 : i32
      %c1_i32_50 = arith.constant 1 : i32
      %90 = arith.addi %89, %c1_i32_50 : i32
      %91 = arith.index_cast %90 : i32 to index
      %c8_51 = arith.constant 8 : index
      %c0_52 = arith.constant 0 : index
      %92 = vector.load %arg9[%91, %c8_51, %c0_52] : memref<76x80x32xf32, #tpu.memory_space<vmem>>, vector<1x64x32xf32>
      %93 = vector.shape_cast %92 : vector<1x64x32xf32> to vector<64x32xf32>
      %94 = vector.shape_cast %87 : vector<64x32xf32> to vector<1x64x32xf32>
      tpu.vector_store %arg9[%91, %c8_51, %c0_52], %94 {strides = array<i32>} : memref<76x80x32xf32, #tpu.memory_space<vmem>>, vector<1x64x32xf32>,
      %95 = vector.extract_strided_slice %78 {offsets = [0, 64], sizes = [64, 32], strides = [1, 1]} : vector<64x128xf32> to vector<64x32xf32>
      %c4_i32_53 = arith.constant 4 : i32
      %96 = arith.muli %c4_i32_53, %arg11 : i32
      %c4_i32_54 = arith.constant 4 : i32
      %97 = arith.addi %c4_i32_54, %96 : i32
      %c2_i32 = arith.constant 2 : i32
      %98 = arith.addi %97, %c2_i32 : i32
      %99 = arith.index_cast %98 : i32 to index
      %c8_55 = arith.constant 8 : index
      %c0_56 = arith.constant 0 : index
      %100 = vector.load %arg9[%99, %c8_55, %c0_56] : memref<76x80x32xf32, #tpu.memory_space<vmem>>, vector<1x64x32xf32>
      %101 = vector.shape_cast %100 : vector<1x64x32xf32> to vector<64x32xf32>
      %102 = vector.shape_cast %95 : vector<64x32xf32> to vector<1x64x32xf32>
      tpu.vector_store %arg9[%99, %c8_55, %c0_56], %102 {strides = array<i32>} : memref<76x80x32xf32, #tpu.memory_space<vmem>>, vector<1x64x32xf32>,
      %103 = vector.extract_strided_slice %78 {offsets = [0, 96], sizes = [64, 32], strides = [1, 1]} : vector<64x128xf32> to vector<64x32xf32>
      %c4_i32_57 = arith.constant 4 : i32
      %104 = arith.muli %c4_i32_57, %arg11 : i32
      %c4_i32_58 = arith.constant 4 : i32
      %105 = arith.addi %c4_i32_58, %104 : i32
      %c3_i32 = arith.constant 3 : i32
      %106 = arith.addi %105, %c3_i32 : i32
      %107 = arith.index_cast %106 : i32 to index
      %c8_59 = arith.constant 8 : index
      %c0_60 = arith.constant 0 : index
      %108 = vector.load %arg9[%107, %c8_59, %c0_60] : memref<76x80x32xf32, #tpu.memory_space<vmem>>, vector<1x64x32xf32>
      %109 = vector.shape_cast %108 : vector<1x64x32xf32> to vector<64x32xf32>
      %110 = vector.shape_cast %103 : vector<64x32xf32> to vector<1x64x32xf32>
      tpu.vector_store %arg9[%107, %c8_59, %c0_60], %110 {strides = array<i32>} : memref<76x80x32xf32, #tpu.memory_space<vmem>>, vector<1x64x32xf32>,
    }
    %c16_i32_2 = arith.constant 16 : i32
    %c0_i32_3 = arith.constant 0 : i32
    %c76_i32 = arith.constant 76 : i32
    %3 = arith.addi %c0_i32_3, %c76_i32 : i32
    %c1_i32_4 = arith.constant 1 : i32
    scf.for %arg11 = %c0_i32_3 to %3 step %c1_i32_4  : i32 {
      %7 = arith.index_cast %arg11 : i32 to index
      %c4 = arith.constant 4 : index
      %c0_16 = arith.constant 0 : index
      %8 = vector.load %arg9[%7, %c4, %c0_16] : memref<76x80x32xf32, #tpu.memory_space<vmem>>, vector<1x72x32xf32>
      %9 = vector.shape_cast %8 : vector<1x72x32xf32> to vector<72x32xf32>
      %10 = arith.index_cast %arg11 : i32 to index
      %c5 = arith.constant 5 : index
      %c0_17 = arith.constant 0 : index
      %11 = vector.load %arg9[%10, %c5, %c0_17] : memref<76x80x32xf32, #tpu.memory_space<vmem>>, vector<1x72x32xf32>
      %12 = vector.shape_cast %11 : vector<1x72x32xf32> to vector<72x32xf32>
      %13 = arith.index_cast %arg11 : i32 to index
      %c6 = arith.constant 6 : index
      %c0_18 = arith.constant 0 : index
      %14 = vector.load %arg9[%13, %c6, %c0_18] : memref<76x80x32xf32, #tpu.memory_space<vmem>>, vector<1x72x32xf32>
      %15 = vector.shape_cast %14 : vector<1x72x32xf32> to vector<72x32xf32>
      %16 = arith.index_cast %arg11 : i32 to index
      %c7 = arith.constant 7 : index
      %c0_19 = arith.constant 0 : index
      %17 = vector.load %arg9[%16, %c7, %c0_19] : memref<76x80x32xf32, #tpu.memory_space<vmem>>, vector<1x72x32xf32>
      %18 = vector.shape_cast %17 : vector<1x72x32xf32> to vector<72x32xf32>
      %19 = arith.index_cast %arg11 : i32 to index
      %c8 = arith.constant 8 : index
      %c0_20 = arith.constant 0 : index
      %20 = vector.load %arg9[%19, %c8, %c0_20] : memref<76x80x32xf32, #tpu.memory_space<vmem>>, vector<1x72x32xf32>
      %21 = vector.shape_cast %20 : vector<1x72x32xf32> to vector<72x32xf32>
      %22 = tpu.concatenate %9, %12, %15, %18, %21 in 1 : vector<72x32xf32>, vector<72x32xf32>, vector<72x32xf32>, vector<72x32xf32>, vector<72x32xf32> -> vector<72x160xf32>
      %23 = arith.truncf %22 : vector<72x160xf32> to vector<72x160xbf16>
      %24 = arith.index_cast %arg11 : i32 to index
      %c0_21 = arith.constant 0 : index
      %c0_22 = arith.constant 0 : index
      %25 = vector.load %arg10[%24, %c0_21, %c0_22] : memref<76x72x160xbf16, #tpu.memory_space<vmem>>, vector<1x72x160xbf16>
      %26 = vector.shape_cast %25 : vector<1x72x160xbf16> to vector<72x160xbf16>
      %27 = vector.shape_cast %23 : vector<72x160xbf16> to vector<1x72x160xbf16>
      tpu.vector_store %arg10[%24, %c0_21, %c0_22], %27 {strides = array<i32>} : memref<76x72x160xbf16, #tpu.memory_space<vmem>>, vector<1x72x160xbf16>,
    }
    %c76_i32_5 = arith.constant 76 : i32
    %c0_i32_6 = arith.constant 0 : i32
    %c68_i32 = arith.constant 68 : i32
    %4 = arith.addi %c0_i32_6, %c68_i32 : i32
    %c1_i32_7 = arith.constant 1 : i32
    scf.for %arg11 = %c0_i32_6 to %4 step %c1_i32_7  : i32 {
      %cst_16 = arith.constant 0.000000e+00 : f32
      %7 = vector.broadcast %cst_16 : f32 to vector<72x32xf32>
      %c0_i32_17 = arith.constant 0 : i32
      %8 = arith.addi %arg11, %c0_i32_17 : i32
      %9 = arith.index_cast %8 : i32 to index
      %c0_18 = arith.constant 0 : index
      %c0_19 = arith.constant 0 : index
      %10 = vector.load %arg10[%9, %c0_18, %c0_19] : memref<76x72x160xbf16, #tpu.memory_space<vmem>>, vector<1x72x160xbf16>
      %11 = vector.shape_cast %10 : vector<1x72x160xbf16> to vector<72x160xbf16>
      %c0_20 = arith.constant 0 : index
      %c0_21 = arith.constant 0 : index
      %c0_22 = arith.constant 0 : index
      %12 = vector.load %arg4[%c0_20, %c0_21, %c0_22] : memref<5x160x32xbf16, #tpu.memory_space<vmem>>, vector<1x160x32xbf16>
      %13 = vector.shape_cast %12 : vector<1x160x32xbf16> to vector<160x32xbf16>
      %cst_23 = arith.constant dense<0.000000e+00> : vector<72x32xf32>
      %14 = tpu.matmul %11, %13, %cst_23 {dimension_numbers = #tpu.dot_dimension_numbers<[1], [0], [0], [1], [0, 0, 1, 1], [], []>} : vector<72x160xbf16>, vector<160x32xbf16>, vector<72x32xf32> -> vector<72x32xf32>
      %15 = arith.addf %7, %14 : vector<72x32xf32>
      %c1_i32_24 = arith.constant 1 : i32
      %16 = arith.addi %arg11, %c1_i32_24 : i32
      %17 = arith.index_cast %16 : i32 to index
      %c0_25 = arith.constant 0 : index
      %c0_26 = arith.constant 0 : index
      %18 = vector.load %arg10[%17, %c0_25, %c0_26] : memref<76x72x160xbf16, #tpu.memory_space<vmem>>, vector<1x72x160xbf16>
      %19 = vector.shape_cast %18 : vector<1x72x160xbf16> to vector<72x160xbf16>
      %c1 = arith.constant 1 : index
      %c0_27 = arith.constant 0 : index
      %c0_28 = arith.constant 0 : index
      %20 = vector.load %arg4[%c1, %c0_27, %c0_28] : memref<5x160x32xbf16, #tpu.memory_space<vmem>>, vector<1x160x32xbf16>
      %21 = vector.shape_cast %20 : vector<1x160x32xbf16> to vector<160x32xbf16>
      %cst_29 = arith.constant dense<0.000000e+00> : vector<72x32xf32>
      %22 = tpu.matmul %19, %21, %cst_29 {dimension_numbers = #tpu.dot_dimension_numbers<[1], [0], [0], [1], [0, 0, 1, 1], [], []>} : vector<72x160xbf16>, vector<160x32xbf16>, vector<72x32xf32> -> vector<72x32xf32>
      %23 = arith.addf %15, %22 : vector<72x32xf32>
      %c2_i32 = arith.constant 2 : i32
      %24 = arith.addi %arg11, %c2_i32 : i32
      %25 = arith.index_cast %24 : i32 to index
      %c0_30 = arith.constant 0 : index
      %c0_31 = arith.constant 0 : index
      %26 = vector.load %arg10[%25, %c0_30, %c0_31] : memref<76x72x160xbf16, #tpu.memory_space<vmem>>, vector<1x72x160xbf16>
      %27 = vector.shape_cast %26 : vector<1x72x160xbf16> to vector<72x160xbf16>
      %c2 = arith.constant 2 : index
      %c0_32 = arith.constant 0 : index
      %c0_33 = arith.constant 0 : index
      %28 = vector.load %arg4[%c2, %c0_32, %c0_33] : memref<5x160x32xbf16, #tpu.memory_space<vmem>>, vector<1x160x32xbf16>
      %29 = vector.shape_cast %28 : vector<1x160x32xbf16> to vector<160x32xbf16>
      %cst_34 = arith.constant dense<0.000000e+00> : vector<72x32xf32>
      %30 = tpu.matmul %27, %29, %cst_34 {dimension_numbers = #tpu.dot_dimension_numbers<[1], [0], [0], [1], [0, 0, 1, 1], [], []>} : vector<72x160xbf16>, vector<160x32xbf16>, vector<72x32xf32> -> vector<72x32xf32>
      %31 = arith.addf %23, %30 : vector<72x32xf32>
      %c3_i32 = arith.constant 3 : i32
      %32 = arith.addi %arg11, %c3_i32 : i32
      %33 = arith.index_cast %32 : i32 to index
      %c0_35 = arith.constant 0 : index
      %c0_36 = arith.constant 0 : index
      %34 = vector.load %arg10[%33, %c0_35, %c0_36] : memref<76x72x160xbf16, #tpu.memory_space<vmem>>, vector<1x72x160xbf16>
      %35 = vector.shape_cast %34 : vector<1x72x160xbf16> to vector<72x160xbf16>
      %c3 = arith.constant 3 : index
      %c0_37 = arith.constant 0 : index
      %c0_38 = arith.constant 0 : index
      %36 = vector.load %arg4[%c3, %c0_37, %c0_38] : memref<5x160x32xbf16, #tpu.memory_space<vmem>>, vector<1x160x32xbf16>
      %37 = vector.shape_cast %36 : vector<1x160x32xbf16> to vector<160x32xbf16>
      %cst_39 = arith.constant dense<0.000000e+00> : vector<72x32xf32>
      %38 = tpu.matmul %35, %37, %cst_39 {dimension_numbers = #tpu.dot_dimension_numbers<[1], [0], [0], [1], [0, 0, 1, 1], [], []>} : vector<72x160xbf16>, vector<160x32xbf16>, vector<72x32xf32> -> vector<72x32xf32>
      %39 = arith.addf %31, %38 : vector<72x32xf32>
      %c4_i32 = arith.constant 4 : i32
      %40 = arith.addi %arg11, %c4_i32 : i32
      %41 = arith.index_cast %40 : i32 to index
      %c0_40 = arith.constant 0 : index
      %c0_41 = arith.constant 0 : index
      %42 = vector.load %arg10[%41, %c0_40, %c0_41] : memref<76x72x160xbf16, #tpu.memory_space<vmem>>, vector<1x72x160xbf16>
      %43 = vector.shape_cast %42 : vector<1x72x160xbf16> to vector<72x160xbf16>
      %c4 = arith.constant 4 : index
      %c0_42 = arith.constant 0 : index
      %c0_43 = arith.constant 0 : index
      %44 = vector.load %arg4[%c4, %c0_42, %c0_43] : memref<5x160x32xbf16, #tpu.memory_space<vmem>>, vector<1x160x32xbf16>
      %45 = vector.shape_cast %44 : vector<1x160x32xbf16> to vector<160x32xbf16>
      %cst_44 = arith.constant dense<0.000000e+00> : vector<72x32xf32>
      %46 = tpu.matmul %43, %45, %cst_44 {dimension_numbers = #tpu.dot_dimension_numbers<[1], [0], [0], [1], [0, 0, 1, 1], [], []>} : vector<72x160xbf16>, vector<160x32xbf16>, vector<72x32xf32> -> vector<72x32xf32>
      %47 = arith.addf %39, %46 : vector<72x32xf32>
      %c0_45 = arith.constant 0 : index
      %c0_46 = arith.constant 0 : index
      %48 = vector.load %arg5[%c0_45, %c0_46] : memref<1x32xf32, #tpu.memory_space<vmem>>, vector<1x32xf32>
      %49 = vector.broadcast %48 : vector<1x32xf32> to vector<72x32xf32>
      %50 = arith.addf %47, %49 : vector<72x32xf32>
      %cst_47 = arith.constant 0.000000e+00 : f32
      %51 = vector.broadcast %cst_47 : f32 to vector<72x32xf32>
      %52 = arith.cmpf oge, %50, %51 : vector<72x32xf32>
      %cst_48 = arith.constant 1.000000e-01 : f32
      %53 = vector.broadcast %cst_48 : f32 to vector<72x32xf32>
      %54 = arith.mulf %53, %50 : vector<72x32xf32>
      %55 = arith.select %52, %50, %54 : vector<72x32xi1>, vector<72x32xf32>
      %56 = vector.extract_strided_slice %55 {offsets = [0, 0], sizes = [68, 32], strides = [1, 1]} : vector<72x32xf32> to vector<68x32xf32>
      %c4_i32_49 = arith.constant 4 : i32
      %57 = arith.addi %c4_i32_49, %arg11 : i32
      %58 = arith.index_cast %57 : i32 to index
      %c8 = arith.constant 8 : index
      %c0_50 = arith.constant 0 : index
      %59 = vector.load %arg9[%58, %c8, %c0_50] : memref<76x80x32xf32, #tpu.memory_space<vmem>>, vector<1x68x32xf32>
      %60 = vector.shape_cast %59 : vector<1x68x32xf32> to vector<68x32xf32>
      %61 = vector.shape_cast %56 : vector<68x32xf32> to vector<1x68x32xf32>
      tpu.vector_store %arg9[%58, %c8, %c0_50], %61 {strides = array<i32>} : memref<76x80x32xf32, #tpu.memory_space<vmem>>, vector<1x68x32xf32>,
    }
    %c68_i32_8 = arith.constant 68 : i32
    %c0_i32_9 = arith.constant 0 : i32
    %c76_i32_10 = arith.constant 76 : i32
    %5 = arith.addi %c0_i32_9, %c76_i32_10 : i32
    %c1_i32_11 = arith.constant 1 : i32
    scf.for %arg11 = %c0_i32_9 to %5 step %c1_i32_11  : i32 {
      %7 = arith.index_cast %arg11 : i32 to index
      %c4 = arith.constant 4 : index
      %c0_16 = arith.constant 0 : index
      %8 = vector.load %arg9[%7, %c4, %c0_16] : memref<76x80x32xf32, #tpu.memory_space<vmem>>, vector<1x72x32xf32>
      %9 = vector.shape_cast %8 : vector<1x72x32xf32> to vector<72x32xf32>
      %10 = arith.index_cast %arg11 : i32 to index
      %c5 = arith.constant 5 : index
      %c0_17 = arith.constant 0 : index
      %11 = vector.load %arg9[%10, %c5, %c0_17] : memref<76x80x32xf32, #tpu.memory_space<vmem>>, vector<1x72x32xf32>
      %12 = vector.shape_cast %11 : vector<1x72x32xf32> to vector<72x32xf32>
      %13 = arith.index_cast %arg11 : i32 to index
      %c6 = arith.constant 6 : index
      %c0_18 = arith.constant 0 : index
      %14 = vector.load %arg9[%13, %c6, %c0_18] : memref<76x80x32xf32, #tpu.memory_space<vmem>>, vector<1x72x32xf32>
      %15 = vector.shape_cast %14 : vector<1x72x32xf32> to vector<72x32xf32>
      %16 = arith.index_cast %arg11 : i32 to index
      %c7 = arith.constant 7 : index
      %c0_19 = arith.constant 0 : index
      %17 = vector.load %arg9[%16, %c7, %c0_19] : memref<76x80x32xf32, #tpu.memory_space<vmem>>, vector<1x72x32xf32>
      %18 = vector.shape_cast %17 : vector<1x72x32xf32> to vector<72x32xf32>
      %19 = arith.index_cast %arg11 : i32 to index
      %c8 = arith.constant 8 : index
      %c0_20 = arith.constant 0 : index
      %20 = vector.load %arg9[%19, %c8, %c0_20] : memref<76x80x32xf32, #tpu.memory_space<vmem>>, vector<1x72x32xf32>
      %21 = vector.shape_cast %20 : vector<1x72x32xf32> to vector<72x32xf32>
      %22 = tpu.concatenate %9, %12, %15, %18, %21 in 1 : vector<72x32xf32>, vector<72x32xf32>, vector<72x32xf32>, vector<72x32xf32>, vector<72x32xf32> -> vector<72x160xf32>
      %23 = arith.truncf %22 : vector<72x160xf32> to vector<72x160xbf16>
      %24 = arith.index_cast %arg11 : i32 to index
      %c0_21 = arith.constant 0 : index
      %c0_22 = arith.constant 0 : index
      %25 = vector.load %arg10[%24, %c0_21, %c0_22] : memref<76x72x160xbf16, #tpu.memory_space<vmem>>, vector<1x72x160xbf16>
      %26 = vector.shape_cast %25 : vector<1x72x160xbf16> to vector<72x160xbf16>
      %27 = vector.shape_cast %23 : vector<72x160xbf16> to vector<1x72x160xbf16>
      tpu.vector_store %arg10[%24, %c0_21, %c0_22], %27 {strides = array<i32>} : memref<76x72x160xbf16, #tpu.memory_space<vmem>>, vector<1x72x160xbf16>,
    }
    %c76_i32_12 = arith.constant 76 : i32
    %c0_i32_13 = arith.constant 0 : i32
    %c72_i32 = arith.constant 72 : i32
    %6 = arith.addi %c0_i32_13, %c72_i32 : i32
    %c1_i32_14 = arith.constant 1 : i32
    scf.for %arg11 = %c0_i32_13 to %6 step %c1_i32_14  : i32 {
      %cst_16 = arith.constant 0.000000e+00 : f32
      %7 = vector.broadcast %cst_16 : f32 to vector<72x3xf32>
      %c0_i32_17 = arith.constant 0 : i32
      %8 = arith.addi %arg11, %c0_i32_17 : i32
      %9 = arith.index_cast %8 : i32 to index
      %c0_18 = arith.constant 0 : index
      %c0_19 = arith.constant 0 : index
      %10 = vector.load %arg10[%9, %c0_18, %c0_19] : memref<76x72x160xbf16, #tpu.memory_space<vmem>>, vector<1x72x160xbf16>
      %11 = vector.shape_cast %10 : vector<1x72x160xbf16> to vector<72x160xbf16>
      %c0_20 = arith.constant 0 : index
      %c0_21 = arith.constant 0 : index
      %c0_22 = arith.constant 0 : index
      %12 = vector.load %arg6[%c0_20, %c0_21, %c0_22] : memref<5x160x3xbf16, #tpu.memory_space<vmem>>, vector<1x160x3xbf16>
      %13 = vector.shape_cast %12 : vector<1x160x3xbf16> to vector<160x3xbf16>
      %cst_23 = arith.constant dense<0.000000e+00> : vector<72x3xf32>
      %14 = tpu.matmul %11, %13, %cst_23 {dimension_numbers = #tpu.dot_dimension_numbers<[1], [0], [0], [1], [0, 0, 1, 1], [], []>} : vector<72x160xbf16>, vector<160x3xbf16>, vector<72x3xf32> -> vector<72x3xf32>
      %15 = arith.addf %7, %14 : vector<72x3xf32>
      %c1_i32_24 = arith.constant 1 : i32
      %16 = arith.addi %arg11, %c1_i32_24 : i32
      %17 = arith.index_cast %16 : i32 to index
      %c0_25 = arith.constant 0 : index
      %c0_26 = arith.constant 0 : index
      %18 = vector.load %arg10[%17, %c0_25, %c0_26] : memref<76x72x160xbf16, #tpu.memory_space<vmem>>, vector<1x72x160xbf16>
      %19 = vector.shape_cast %18 : vector<1x72x160xbf16> to vector<72x160xbf16>
      %c1 = arith.constant 1 : index
      %c0_27 = arith.constant 0 : index
      %c0_28 = arith.constant 0 : index
      %20 = vector.load %arg6[%c1, %c0_27, %c0_28] : memref<5x160x3xbf16, #tpu.memory_space<vmem>>, vector<1x160x3xbf16>
      %21 = vector.shape_cast %20 : vector<1x160x3xbf16> to vector<160x3xbf16>
      %cst_29 = arith.constant dense<0.000000e+00> : vector<72x3xf32>
      %22 = tpu.matmul %19, %21, %cst_29 {dimension_numbers = #tpu.dot_dimension_numbers<[1], [0], [0], [1], [0, 0, 1, 1], [], []>} : vector<72x160xbf16>, vector<160x3xbf16>, vector<72x3xf32> -> vector<72x3xf32>
      %23 = arith.addf %15, %22 : vector<72x3xf32>
      %c2_i32 = arith.constant 2 : i32
      %24 = arith.addi %arg11, %c2_i32 : i32
      %25 = arith.index_cast %24 : i32 to index
      %c0_30 = arith.constant 0 : index
      %c0_31 = arith.constant 0 : index
      %26 = vector.load %arg10[%25, %c0_30, %c0_31] : memref<76x72x160xbf16, #tpu.memory_space<vmem>>, vector<1x72x160xbf16>
      %27 = vector.shape_cast %26 : vector<1x72x160xbf16> to vector<72x160xbf16>
      %c2 = arith.constant 2 : index
      %c0_32 = arith.constant 0 : index
      %c0_33 = arith.constant 0 : index
      %28 = vector.load %arg6[%c2, %c0_32, %c0_33] : memref<5x160x3xbf16, #tpu.memory_space<vmem>>, vector<1x160x3xbf16>
      %29 = vector.shape_cast %28 : vector<1x160x3xbf16> to vector<160x3xbf16>
      %cst_34 = arith.constant dense<0.000000e+00> : vector<72x3xf32>
      %30 = tpu.matmul %27, %29, %cst_34 {dimension_numbers = #tpu.dot_dimension_numbers<[1], [0], [0], [1], [0, 0, 1, 1], [], []>} : vector<72x160xbf16>, vector<160x3xbf16>, vector<72x3xf32> -> vector<72x3xf32>
      %31 = arith.addf %23, %30 : vector<72x3xf32>
      %c3_i32 = arith.constant 3 : i32
      %32 = arith.addi %arg11, %c3_i32 : i32
      %33 = arith.index_cast %32 : i32 to index
      %c0_35 = arith.constant 0 : index
      %c0_36 = arith.constant 0 : index
      %34 = vector.load %arg10[%33, %c0_35, %c0_36] : memref<76x72x160xbf16, #tpu.memory_space<vmem>>, vector<1x72x160xbf16>
      %35 = vector.shape_cast %34 : vector<1x72x160xbf16> to vector<72x160xbf16>
      %c3 = arith.constant 3 : index
      %c0_37 = arith.constant 0 : index
      %c0_38 = arith.constant 0 : index
      %36 = vector.load %arg6[%c3, %c0_37, %c0_38] : memref<5x160x3xbf16, #tpu.memory_space<vmem>>, vector<1x160x3xbf16>
      %37 = vector.shape_cast %36 : vector<1x160x3xbf16> to vector<160x3xbf16>
      %cst_39 = arith.constant dense<0.000000e+00> : vector<72x3xf32>
      %38 = tpu.matmul %35, %37, %cst_39 {dimension_numbers = #tpu.dot_dimension_numbers<[1], [0], [0], [1], [0, 0, 1, 1], [], []>} : vector<72x160xbf16>, vector<160x3xbf16>, vector<72x3xf32> -> vector<72x3xf32>
      %39 = arith.addf %31, %38 : vector<72x3xf32>
      %c4_i32 = arith.constant 4 : i32
      %40 = arith.addi %arg11, %c4_i32 : i32
      %41 = arith.index_cast %40 : i32 to index
      %c0_40 = arith.constant 0 : index
      %c0_41 = arith.constant 0 : index
      %42 = vector.load %arg10[%41, %c0_40, %c0_41] : memref<76x72x160xbf16, #tpu.memory_space<vmem>>, vector<1x72x160xbf16>
      %43 = vector.shape_cast %42 : vector<1x72x160xbf16> to vector<72x160xbf16>
      %c4 = arith.constant 4 : index
      %c0_42 = arith.constant 0 : index
      %c0_43 = arith.constant 0 : index
      %44 = vector.load %arg6[%c4, %c0_42, %c0_43] : memref<5x160x3xbf16, #tpu.memory_space<vmem>>, vector<1x160x3xbf16>
      %45 = vector.shape_cast %44 : vector<1x160x3xbf16> to vector<160x3xbf16>
      %cst_44 = arith.constant dense<0.000000e+00> : vector<72x3xf32>
      %46 = tpu.matmul %43, %45, %cst_44 {dimension_numbers = #tpu.dot_dimension_numbers<[1], [0], [0], [1], [0, 0, 1, 1], [], []>} : vector<72x160xbf16>, vector<160x3xbf16>, vector<72x3xf32> -> vector<72x3xf32>
      %47 = arith.addf %39, %46 : vector<72x3xf32>
      %c0_45 = arith.constant 0 : index
      %c0_46 = arith.constant 0 : index
      %48 = vector.load %arg7[%c0_45, %c0_46] : memref<1x3xf32, #tpu.memory_space<vmem>>, vector<1x3xf32>
      %49 = vector.broadcast %48 : vector<1x3xf32> to vector<72x3xf32>
      %50 = arith.addf %47, %49 : vector<72x3xf32>
      %cst_47 = arith.constant 0.000000e+00 : f32
      %51 = vector.broadcast %cst_47 : f32 to vector<72x3xf32>
      %52 = arith.subf %51, %50 : vector<72x3xf32>
      %53 = math.exp %52 : vector<72x3xf32>
      %cst_48 = arith.constant 1.000000e+00 : f32
      %54 = vector.broadcast %cst_48 : f32 to vector<72x3xf32>
      %55 = arith.addf %54, %53 : vector<72x3xf32>
      %cst_49 = arith.constant 1.000000e+00 : f32
      %56 = vector.broadcast %cst_49 : f32 to vector<72x3xf32>
      %57 = arith.divf %56, %55 : vector<72x3xf32>
      %c0_50 = arith.constant 0 : index
      %58 = arith.index_cast %arg11 : i32 to index
      %c0_51 = arith.constant 0 : index
      %c0_52 = arith.constant 0 : index
      %59 = vector.load %arg8[%c0_50, %58, %c0_51, %c0_52] : memref<1x72x72x3xf32, #tpu.memory_space<vmem>>, vector<1x1x72x3xf32>
      %60 = vector.shape_cast %59 : vector<1x1x72x3xf32> to vector<72x3xf32>
      %61 = vector.shape_cast %57 : vector<72x3xf32> to vector<1x1x72x3xf32>
      tpu.vector_store %arg8[%c0_50, %58, %c0_51, %c0_52], %61 {strides = array<i32>} : memref<1x72x72x3xf32, #tpu.memory_space<vmem>>, vector<1x1x72x3xf32>,
    }
    %c72_i32_15 = arith.constant 72 : i32
    return
  }
  func.func @transform_0(%arg0: i32) -> (i32, i32) {
    %c0_i32 = arith.constant 0 : i32
    %c0_i32_0 = arith.constant 0 : i32
    %c0_i32_1 = arith.constant 0 : i32
    return %c0_i32, %c0_i32_0 : i32, i32
  }
  func.func @transform_1(%arg0: i32) -> (i32, i32, i32, i32) {
    %c0_i32 = arith.constant 0 : i32
    %c0_i32_0 = arith.constant 0 : i32
    %c0_i32_1 = arith.constant 0 : i32
    %c0_i32_2 = arith.constant 0 : i32
    %c0_i32_3 = arith.constant 0 : i32
    return %c0_i32, %c0_i32_0, %c0_i32_1, %c0_i32_2 : i32, i32, i32, i32
  }
  func.func @transform_2(%arg0: i32) -> (i32, i32, i32) {
    %c0_i32 = arith.constant 0 : i32
    %c0_i32_0 = arith.constant 0 : i32
    %c0_i32_1 = arith.constant 0 : i32
    %c0_i32_2 = arith.constant 0 : i32
    return %c0_i32, %c0_i32_0, %c0_i32_1 : i32, i32, i32
  }
  func.func @transform_3(%arg0: i32) -> (i32, i32, i32) {
    %c0_i32 = arith.constant 0 : i32
    %c0_i32_0 = arith.constant 0 : i32
    %c0_i32_1 = arith.constant 0 : i32
    %c0_i32_2 = arith.constant 0 : i32
    return %c0_i32, %c0_i32_0, %c0_i32_1 : i32, i32, i32
  }
  func.func @transform_4(%arg0: i32) -> (i32, i32) {
    %c0_i32 = arith.constant 0 : i32
    %c0_i32_0 = arith.constant 0 : i32
    %c0_i32_1 = arith.constant 0 : i32
    return %c0_i32, %c0_i32_0 : i32, i32
  }
  func.func @transform_5(%arg0: i32) -> (i32, i32, i32) {
    %c0_i32 = arith.constant 0 : i32
    %c0_i32_0 = arith.constant 0 : i32
    %c0_i32_1 = arith.constant 0 : i32
    %c0_i32_2 = arith.constant 0 : i32
    return %c0_i32, %c0_i32_0, %c0_i32_1 : i32, i32, i32
  }
  func.func @transform_6(%arg0: i32) -> (i32, i32) {
    %c0_i32 = arith.constant 0 : i32
    %c0_i32_0 = arith.constant 0 : i32
    %c0_i32_1 = arith.constant 0 : i32
    return %c0_i32, %c0_i32_0 : i32, i32
  }
  func.func @transform_7(%arg0: i32) -> (i32, i32, i32, i32) {
    %c0_i32 = arith.constant 0 : i32
    %c0_i32_0 = arith.constant 0 : i32
    %c0_i32_1 = arith.constant 0 : i32
    %c0_i32_2 = arith.constant 0 : i32
    return %arg0, %c0_i32, %c0_i32_0, %c0_i32_1 : i32, i32, i32, i32
  }
}

</mosaic_0001>

<llo_original>
// kernel: decoder_forward.1
$region0: #{decoder_forward.1}
  #allocation0 [shape = 'u32[]', space=smem, size = 0x4, offset = 0x4, fixed_abs, tag = 'smem constant byte address 0x4 - core index']
  #allocation1 [shape = 'u32[144,128]{1,0:T(1,128)}', space=vmem, size = 0x12000, scoped, tag = 'internal scratch']
  #allocation2 [shape = 'f32[76,80,32]{2,1,0:T(8,128)}', space=vmem, size = 0x2f8000, scoped, tag = 'scratch operand']
  #allocation3 [shape = 'bf16[76,72,160]{2,1,0:T(8,128)(2,1)}', space=vmem, size = 0x2ac000, scoped, tag = 'scratch operand']
  %s0 = inlined_call_operand.hbm [shape: f32[2,8], index: 0, kind: input, shape index: {}]
  %s1 = inlined_call_operand.hbm [shape: f32[8,16,64,128], index: 1, kind: input, shape index: {}]
  %s2 = inlined_call_operand.hbm [shape: f32[16,64,128], index: 2, kind: input, shape index: {}]
  %s3 = inlined_call_operand.vmem [shape: bf16[5,160,32], index: 3, kind: input, shape index: {}]
  %s4 = inlined_call_operand.hbm [shape: f32[1,32], index: 4, kind: input, shape index: {}]
  %s5 = inlined_call_operand.vmem [shape: bf16[5,160,3], index: 5, kind: input, shape index: {}]
  %s6 = inlined_call_operand.hbm [shape: f32[1,3], index: 6, kind: input, shape index: {}]
  %s7 = inlined_call_operand.vmem [shape: f32[2,72,72,3], index: 7, kind: output, shape index: {}]
  %s8 = sld [smem:[#allocation0]]
  $region116: #{decoder_forward.1} parent=0
    _
  %s10 = ssub.s32 1, %s8
  %s11 = scalar_select 0, %s10, %s8
  $region1: #{decoder_forward.1} parent=0
    #allocation4 [shape = 'u8[1024]{0}', space=smem, size = 0x400, scoped, tag = 'input window, operand 0, single buffered']
    #allocation5 [shape = 's32[2]{0}', space=sflag, size = 0x8, scoped, tag = 'scoped memory for decoder_forward.1']
    #allocation6 [shape = 's32[2]{0}', space=sflag, size = 0x8, scoped, tag = 'scoped memory for decoder_forward.1']
    #allocation7 [shape = 'u8[4194304]{0}', space=vmem, size = 0x400000, scoped, tag = 'input window, operand 1, single buffered']
    #allocation8 [shape = 'u8[524288]{0}', space=vmem, size = 0x80000, scoped, tag = 'input window, operand 2, single buffered']
    #allocation9 [shape = 's32[1]{0}', space=sflag, size = 0x4, scoped, tag = 'scoped memory for decoder_forward.1']
    #allocation10 [shape = 'u8[512]{0}', space=vmem, size = 0x400, scoped, tag = 'input window, operand 4, single buffered']
    #allocation11 [shape = 'u8[512]{0}', space=vmem, size = 0x400, scoped, tag = 'input window, operand 6, single buffered']
    #allocation12 [shape = 's32[1]{0}', space=sflag, size = 0x4, scoped, tag = 'scoped memory for decoder_forward.1']
    %12 = vsyncpa [#allocation6], 0
    %13 = vsyncpa [#allocation5], 0
    %14 = vsyncpa [#allocation9], 0
    %15 = vsyncpa [#allocation12], 0
    loop: start=0, step=1, limit=4
    $region2: #{decoder_forward.1} parent=1 // loop_pre_header
      _
    $region3: #{decoder_forward.1} parent=1 // loop_header
      %s17 = sphi 0, %s21
      %p18 = scmp.ge.s32.totalorder %s17, 4
      %s25 = sphi 0, %s25
      %s27 = sphi 0, %s25
      %s28 = sphi 0, %s27
      %s42 = sphi 0, %s28
      %s46 = sphi 0, %s46
      %s48 = sphi 0, %s46
      %s49 = sphi 0, %s48
      %s63 = sphi 0, %s49
      %s67 = sphi 0, %s67
      %s69 = sphi 0, %s67
      %s70 = sphi 0, %s69
      %s84 = sphi 0, %s70
      %s88 = sphi 0, %s88
      %s90 = sphi 0, %s88
      %s91 = sphi 0, %s90
      %s105 = sphi 0, %s91
      %s109 = sphi 0, %s109
      %s111 = sphi 0, %s109
      %s112 = sphi 0, %s111
      %s126 = sphi 0, %s112
      %s130 = sphi 0, %s130
      %s132 = sphi 0, %s130
      %s133 = sphi 0, %s132
      %s147 = sphi 0, %s133
      %s151 = sphi 0, %s151
      %s153 = sphi 0, %s151
      %s154 = sphi 0, %s153
      %s168 = sphi 0, %s154
      %s174 = sphi 0, %s176
      %s177 = sphi 0, %s174
      %s178 = sphi 0, %s177
      %s194 = sphi 0, %s178
    $region4: #{decoder_forward.1} parent=1 // loop_header_branch
      %20 = sbr.rel (%p18) target = $region8
    $region5: #{decoder_forward.1} parent=1 // loop_body
      %s22 = ssub.s32 %s17, 1
      %s23 = ssub.s32 %s17, 2
      %s24 = sadd.s32 %s17, 1
      %s26 = sadd.s32 %s25, 1
      %p29 = scmp.eq.s32.totalorder %s17, 1
      %p30 = scmp.ne.s32.totalorder %s25, %s27
      %p31 = scmp.eq.s32.totalorder %s17, 0
      %p32 = por %p30, %p31
      %p33 = scmp.ne.s32.totalorder %s25, %s27
      %p34 = scmp.eq.s32.totalorder %s22, 1
      %p35 = por %p33, %p34
      %p36 = scmp.ne.s32.totalorder %s27, %s28
      %p37 = scmp.eq.s32.totalorder %s22, 0
      %p38 = por %p36, %p37
      %p39 = scmp.ne.s32.totalorder %s27, %s28
      %p40 = scmp.eq.s32.totalorder %s23, 1
      %p41 = por %p39, %p40
      %p43 = scmp.ne.s32.totalorder %s28, %s42
      %p44 = scmp.eq.s32.totalorder %s23, 0
      %p45 = por %p43, %p44
      %s47 = sadd.s32 %s46, 1
      %p50 = scmp.eq.s32.totalorder %s17, 1
      %p51 = scmp.ne.s32.totalorder %s46, %s48
      %p52 = scmp.eq.s32.totalorder %s17, 0
      %p53 = por %p51, %p52
      %p54 = scmp.ne.s32.totalorder %s46, %s48
      %p55 = scmp.eq.s32.totalorder %s22, 1
      %p56 = por %p54, %p55
      %p57 = scmp.ne.s32.totalorder %s48, %s49
      %p58 = scmp.eq.s32.totalorder %s22, 0
      %p59 = por %p57, %p58
      %p60 = scmp.ne.s32.totalorder %s48, %s49
      %p61 = scmp.eq.s32.totalorder %s23, 1
      %p62 = por %p60, %p61
      %p64 = scmp.ne.s32.totalorder %s49, %s63
      %p65 = scmp.eq.s32.totalorder %s23, 0
      %p66 = por %p64, %p65
      %s68 = sadd.s32 %s67, 1
      %p71 = scmp.eq.s32.totalorder %s17, 1
      %p72 = scmp.ne.s32.totalorder %s67, %s69
      %p73 = scmp.eq.s32.totalorder %s17, 0
      %p74 = por %p72, %p73
      %p75 = scmp.ne.s32.totalorder %s67, %s69
      %p76 = scmp.eq.s32.totalorder %s22, 1
      %p77 = por %p75, %p76
      %p78 = scmp.ne.s32.totalorder %s69, %s70
      %p79 = scmp.eq.s32.totalorder %s22, 0
      %p80 = por %p78, %p79
      %p81 = scmp.ne.s32.totalorder %s69, %s70
      %p82 = scmp.eq.s32.totalorder %s23, 1
      %p83 = por %p81, %p82
      %p85 = scmp.ne.s32.totalorder %s70, %s84
      %p86 = scmp.eq.s32.totalorder %s23, 0
      %p87 = por %p85, %p86
      %s89 = sadd.s32 %s88, 1
      %p92 = scmp.eq.s32.totalorder %s17, 1
      %p93 = scmp.ne.s32.totalorder %s88, %s90
      %p94 = scmp.eq.s32.totalorder %s17, 0
      %p95 = por %p93, %p94
      %p96 = scmp.ne.s32.totalorder %s88, %s90
      %p97 = scmp.eq.s32.totalorder %s22, 1
      %p98 = por %p96, %p97
      %p99 = scmp.ne.s32.totalorder %s90, %s91
      %p100 = scmp.eq.s32.totalorder %s22, 0
      %p101 = por %p99, %p100
      %p102 = scmp.ne.s32.totalorder %s90, %s91
      %p103 = scmp.eq.s32.totalorder %s23, 1
      %p104 = por %p102, %p103
      %p106 = scmp.ne.s32.totalorder %s91, %s105
      %p107 = scmp.eq.s32.totalorder %s23, 0
      %p108 = por %p106, %p107
      %s110 = sadd.s32 %s109, 1
      %p113 = scmp.eq.s32.totalorder %s17, 1
      %p114 = scmp.ne.s32.totalorder %s109, %s111
      %p115 = scmp.eq.s32.totalorder %s17, 0
      %p116 = por %p114, %p115
      %p117 = scmp.ne.s32.totalorder %s109, %s111
      %p118 = scmp.eq.s32.totalorder %s22, 1
      %p119 = por %p117, %p118
      %p120 = scmp.ne.s32.totalorder %s111, %s112
      %p121 = scmp.eq.s32.totalorder %s22, 0
      %p122 = por %p120, %p121
      %p123 = scmp.ne.s32.totalorder %s111, %s112
      %p124 = scmp.eq.s32.totalorder %s23, 1
      %p125 = por %p123, %p124
      %p127 = scmp.ne.s32.totalorder %s112, %s126
      %p128 = scmp.eq.s32.totalorder %s23, 0
      %p129 = por %p127, %p128
      %s131 = sadd.s32 %s130, 1
      %p134 = scmp.eq.s32.totalorder %s17, 1
      %p135 = scmp.ne.s32.totalorder %s130, %s132
      %p136 = scmp.eq.s32.totalorder %s17, 0
      %p137 = por %p135, %p136
      %p138 = scmp.ne.s32.totalorder %s130, %s132
      %p139 = scmp.eq.s32.totalorder %s22, 1
      %p140 = por %p138, %p139
      %p141 = scmp.ne.s32.totalorder %s132, %s133
      %p142 = scmp.eq.s32.totalorder %s22, 0
      %p143 = por %p141, %p142
      %p144 = scmp.ne.s32.totalorder %s132, %s133
      %p145 = scmp.eq.s32.totalorder %s23, 1
      %p146 = por %p144, %p145
      %p148 = scmp.ne.s32.totalorder %s133, %s147
      %p149 = scmp.eq.s32.totalorder %s23, 0
      %p150 = por %p148, %p149
      %s152 = sadd.s32 %s151, 1
      %p155 = scmp.eq.s32.totalorder %s17, 1
      %p156 = scmp.ne.s32.totalorder %s151, %s153
      %p157 = scmp.eq.s32.totalorder %s17, 0
      %p158 = por %p156, %p157
      %p159 = scmp.ne.s32.totalorder %s151, %s153
      %p160 = scmp.eq.s32.totalorder %s22, 1
      %p161 = por %p159, %p160
      %p162 = scmp.ne.s32.totalorder %s153, %s154
      %p163 = scmp.eq.s32.totalorder %s22, 0
      %p164 = por %p162, %p163
      %p165 = scmp.ne.s32.totalorder %s153, %s154
      %p166 = scmp.eq.s32.totalorder %s23, 1
      %p167 = por %p165, %p166
      %p169 = scmp.ne.s32.totalorder %s154, %s168
      %p170 = scmp.eq.s32.totalorder %s23, 0
      %p171 = por %p169, %p170
      %s172 = ssub.s32 %s17, %s24
      %p173 = scmp.eq.s32.totalorder %s172, 0
      %s175 = sadd.s32 %s174, 1
      %s176 = scalar_select %p173, %s174, %s175
      %p179 = pneg %p173
      %p180 = scmp.eq.s32.totalorder %s17, 1
      %p181 = por %p179, %p180
      %p182 = scmp.ne.s32.totalorder %s174, %s177
      %p183 = scmp.eq.s32.totalorder %s17, 0
      %p184 = por %p182, %p183
      %p185 = scmp.ne.s32.totalorder %s174, %s177
      %p186 = scmp.eq.s32.totalorder %s22, 1
      %p187 = por %p185, %p186
      %p188 = scmp.ne.s32.totalorder %s177, %s178
      %p189 = scmp.eq.s32.totalorder %s22, 0
      %p190 = por %p188, %p189
      %p191 = scmp.ne.s32.totalorder %s177, %s178
      %p192 = scmp.eq.s32.totalorder %s23, 1
      %p193 = por %p191, %p192
      %p195 = scmp.ne.s32.totalorder %s178, %s194
      %p196 = scmp.eq.s32.totalorder %s23, 0
      %p197 = por %p195, %p196
      %p198 = scmp.le.s32.totalorder 1, %s17
      %p199 = scmp.lt.s32.totalorder %s17, 3
      %p200 = pnand %p198, %p199
      %p201 = pneg %p200
      // Predicated region
      $region9: #{decoder_forward.1} parent=5 // pred_check
        _
      $region10: #{decoder_forward.1} parent=5 // pred_check_branch
        %203 = sbr.rel (%p200) target = $region12
      $region11: #{decoder_forward.1} parent=5 // pred_region
        %s204 = ssub.s32 %s17, 1
        // Predicated region
        $region13: #{decoder_forward.1} parent=11 // pred_check
          %p205 = pneg %p38
        $region14: #{decoder_forward.1} parent=11 // pred_check_branch
          %207 = sbr.rel (%p205) target = $region16
        $region15: #{decoder_forward.1} parent=11 // pred_region
          %s209 = ssub.s32 32, 32
          %210 = vsyncadd [#allocation6], %s209
          %213 = dma.hbm_to_smem %s0, 32, [#allocation4], [#allocation6]
        $region16: #{decoder_forward.1} parent=11 // pred_fallthru
          _
        // Predicated region
        $region17: #{decoder_forward.1} parent=11 // pred_check
          %p214 = pneg %p59
        $region18: #{decoder_forward.1} parent=11 // pred_check_branch
          %216 = sbr.rel (%p214) target = $region20
        $region19: #{decoder_forward.1} parent=11 // pred_region
          %s218 = ssub.s32 131072, 131072
          %219 = vsyncadd [#allocation5], %s218
          %s220 = sshll.u32 [#allocation7], 4
          %s221 = int_to_ptr.vmem [resolvable:$true] %s220
          %226 = dma.hbm_to_vmem [thread:$0]  %s1, 131072, %s221, [#allocation5], 128, 128, 8
        $region20: #{decoder_forward.1} parent=11 // pred_fallthru
          _
        // Predicated region
        $region21: #{decoder_forward.1} parent=11 // pred_check
          %p227 = pneg %p80
        $region22: #{decoder_forward.1} parent=11 // pred_check_branch
          %229 = sbr.rel (%p227) target = $region24
        $region23: #{decoder_forward.1} parent=11 // pred_region
          %s231 = ssub.s32 16384, 16384
          %232 = vsyncadd [#allocation9], %s231
          %s233 = sshll.u32 [#allocation8], 4
          %s234 = int_to_ptr.vmem [resolvable:$true] %s233
          %239 = dma.hbm_to_vmem [thread:$0]  %s2, 16384, %s234, [#allocation9], 128, 128, 8
        $region24: #{decoder_forward.1} parent=11 // pred_fallthru
          _
        // Predicated region
        $region25: #{decoder_forward.1} parent=11 // pred_check
          %p240 = pneg %p101
        $region26: #{decoder_forward.1} parent=11 // pred_check_branch
          %242 = sbr.rel (%p240) target = $region28
        $region27: #{decoder_forward.1} parent=11 // pred_region
          _
        $region28: #{decoder_forward.1} parent=11 // pred_fallthru
          _
        // Predicated region
        $region29: #{decoder_forward.1} parent=11 // pred_check
          %p243 = pneg %p122
        $region30: #{decoder_forward.1} parent=11 // pred_check_branch
          %245 = sbr.rel (%p243) target = $region32
        $region31: #{decoder_forward.1} parent=11 // pred_region
          %s247 = ssub.s32 16, 16
          %248 = vsyncadd [#allocation9], %s247
          %s250 = sshll.u32 [#allocation10], 4
          %s251 = int_to_ptr.vmem [resolvable:$true] %s250
          %253 = dma.hbm_to_vmem [thread:$0]  %s4, 16, %s251, [#allocation9]
        $region32: #{decoder_forward.1} parent=11 // pred_fallthru
          _
        // Predicated region
        $region33: #{decoder_forward.1} parent=11 // pred_check
          %p254 = pneg %p143
        $region34: #{decoder_forward.1} parent=11 // pred_check_branch
          %256 = sbr.rel (%p254) target = $region36
        $region35: #{decoder_forward.1} parent=11 // pred_region
          _
        $region36: #{decoder_forward.1} parent=11 // pred_fallthru
          _
        // Predicated region
        $region37: #{decoder_forward.1} parent=11 // pred_check
          %p257 = pneg %p164
        $region38: #{decoder_forward.1} parent=11 // pred_check_branch
          %259 = sbr.rel (%p257) target = $region40
        $region39: #{decoder_forward.1} parent=11 // pred_region
          %s261 = ssub.s32 16, 16
          %262 = vsyncadd [#allocation12], %s261
          %s264 = sshll.u32 [#allocation11], 4
          %s265 = int_to_ptr.vmem [resolvable:$true] %s264
          %267 = dma.hbm_to_vmem [thread:$0]  %s6, 16, %s265, [#allocation12]
        $region40: #{decoder_forward.1} parent=11 // pred_fallthru
          _
      $region12: #{decoder_forward.1} parent=5 // pred_fallthru
        _
      %p268 = scmp.lt.s32.totalorder %s17, 2
      // Predicated region
      $region41: #{decoder_forward.1} parent=5 // pred_check
        %p269 = pneg %p268
      $region42: #{decoder_forward.1} parent=5 // pred_check_branch
        %271 = sbr.rel (%p269) target = $region44
      $region43: #{decoder_forward.1} parent=5 // pred_region
        _
      $region44: #{decoder_forward.1} parent=5 // pred_fallthru
        _
      %p272 = scmp.le.s32.totalorder 1, %s17
      %p273 = scmp.lt.s32.totalorder %s17, 3
      %p274 = pnand %p272, %p273
      %p275 = pneg %p274
      // Predicated region
      $region45: #{decoder_forward.1} parent=5 // pred_check
        _
      $region46: #{decoder_forward.1} parent=5 // pred_check_branch
        %277 = sbr.rel (%p274) target = $region48
      $region47: #{decoder_forward.1} parent=5 // pred_region
        %s278 = ssub.s32 %s17, 1
        // Predicated region
        $region49: #{decoder_forward.1} parent=47 // pred_check
          %p279 = pneg %p38
        $region50: #{decoder_forward.1} parent=47 // pred_check_branch
          %281 = sbr.rel (%p279) target = $region52
        $region51: #{decoder_forward.1} parent=47 // pred_region
          %282 = dma.done [#allocation6], 32
        $region52: #{decoder_forward.1} parent=47 // pred_fallthru
          _
        // Predicated region
        $region53: #{decoder_forward.1} parent=47 // pred_check
          %p283 = pneg %p59
        $region54: #{decoder_forward.1} parent=47 // pred_check_branch
          %285 = sbr.rel (%p283) target = $region56
        $region55: #{decoder_forward.1} parent=47 // pred_region
          %286 = dma.done [#allocation5], 131072
        $region56: #{decoder_forward.1} parent=47 // pred_fallthru
          _
        // Predicated region
        $region57: #{decoder_forward.1} parent=47 // pred_check
          %p287 = pneg %p80
        $region58: #{decoder_forward.1} parent=47 // pred_check_branch
          %289 = sbr.rel (%p287) target = $region60
        $region59: #{decoder_forward.1} parent=47 // pred_region
          %290 = dma.done [#allocation9], 16384
        $region60: #{decoder_forward.1} parent=47 // pred_fallthru
          _
        // Predicated region
        $region61: #{decoder_forward.1} parent=47 // pred_check
          %p291 = pneg %p122
        $region62: #{decoder_forward.1} parent=47 // pred_check_branch
          %293 = sbr.rel (%p291) target = $region64
        $region63: #{decoder_forward.1} parent=47 // pred_region
          %294 = dma.done [#allocation9], 16
        $region64: #{decoder_forward.1} parent=47 // pred_fallthru
          _
        // Predicated region
        $region65: #{decoder_forward.1} parent=47 // pred_check
          %p295 = pneg %p164
        $region66: #{decoder_forward.1} parent=47 // pred_check_branch
          %297 = sbr.rel (%p295) target = $region68
        $region67: #{decoder_forward.1} parent=47 // pred_region
          %298 = dma.done [#allocation12], 16
        $region68: #{decoder_forward.1} parent=47 // pred_fallthru
          _
        %299 = sfence
        %p300 = pneg %p38
        %p301 = pneg %p35
        %p302 = pneg %p59
        %p303 = pneg %p56
        %p304 = pneg %p80
        %p305 = pneg %p77
        %p306 = pneg %p101
        %p307 = pneg %p98
        %p308 = pneg %p122
        %p309 = pneg %p119
        %p310 = pneg %p143
        %p311 = pneg %p140
        %p312 = pneg %p164
        %p313 = pneg %p161
        %p314 = pneg %p190
        %p315 = pneg %p187
        %p316 = scmp.lt.s32.totalorder %s22, 1
        %s317 = scalar_select %p316, %s22, 1
        %s318 = smul.addr %s317, 648
        %s319 = smul.addr %s318, 8
        %s320 = scalar_lea.vmem %s7, %s319
        %p321 = scmp.lt.s32.totalorder %s22, 1
        %s322 = scalar_select %p321, %s22, 1
        %s323 = smul.addr %s322, 648
        %s324 = smul.addr %s323, 8
        %s325 = scalar_lea.vmem %s7, %s324
        %vm327 = vcmask 261120
        %328 = vst.msk [vmem:[#allocation2] sm:$0xff] %vm327, 0.0
        %329 = vst.msk [vmem:[#allocation2 + $0x8] sm:$0xff] %vm327, 0.0
        %330 = vst.msk [vmem:[#allocation2 + $0x10] sm:$0xff] %vm327, 0.0
        %331 = vst.msk [vmem:[#allocation2 + $0x18] sm:$0xff] %vm327, 0.0
        %332 = vst.msk [vmem:[#allocation2 + $0x20] sm:$0xff] %vm327, 0.0
        %333 = vst.msk [vmem:[#allocation2 + $0x28] sm:$0xff] %vm327, 0.0
        %334 = vst.msk [vmem:[#allocation2 + $0x30] sm:$0xff] %vm327, 0.0
        %335 = vst.msk [vmem:[#allocation2 + $0x38] sm:$0xff] %vm327, 0.0
        %336 = vst.msk [vmem:[#allocation2 + $0x40] sm:$0xff] %vm327, 0.0
        %337 = vst.msk [vmem:[#allocation2 + $0x48] sm:$0xff] %vm327, 0.0
        %338 = vst.msk [vmem:[#allocation2 + $0x50] sm:$0xff] %vm327, 0.0
        %339 = vst.msk [vmem:[#allocation2 + $0x58] sm:$0xff] %vm327, 0.0
        %340 = vst.msk [vmem:[#allocation2 + $0x60] sm:$0xff] %vm327, 0.0
        %341 = vst.msk [vmem:[#allocation2 + $0x68] sm:$0xff] %vm327, 0.0
        %342 = vst.msk [vmem:[#allocation2 + $0x70] sm:$0xff] %vm327, 0.0
        %343 = vst.msk [vmem:[#allocation2 + $0x78] sm:$0xff] %vm327, 0.0
        %344 = vst.msk [vmem:[#allocation2 + $0x80] sm:$0xff] %vm327, 0.0
        %345 = vst.msk [vmem:[#allocation2 + $0x88] sm:$0xff] %vm327, 0.0
        %346 = vst.msk [vmem:[#allocation2 + $0x90] sm:$0xff] %vm327, 0.0
        %347 = vst.msk [vmem:[#allocation2 + $0x98] sm:$0xff] %vm327, 0.0
        %348 = vst.msk [vmem:[#allocation2 + $0xa0] sm:$0xff] %vm327, 0.0
        %349 = vst.msk [vmem:[#allocation2 + $0xa8] sm:$0xff] %vm327, 0.0
        %350 = vst.msk [vmem:[#allocation2 + $0xb0] sm:$0xff] %vm327, 0.0
        %351 = vst.msk [vmem:[#allocation2 + $0xb8] sm:$0xff] %vm327, 0.0
        %352 = vst.msk [vmem:[#allocation2 + $0xc0] sm:$0xff] %vm327, 0.0
        %353 = vst.msk [vmem:[#allocation2 + $0xc8] sm:$0xff] %vm327, 0.0
        %354 = vst.msk [vmem:[#allocation2 + $0xd0] sm:$0xff] %vm327, 0.0
        %355 = vst.msk [vmem:[#allocation2 + $0xd8] sm:$0xff] %vm327, 0.0
        %356 = vst.msk [vmem:[#allocation2 + $0xe0] sm:$0xff] %vm327, 0.0
        %357 = vst.msk [vmem:[#allocation2 + $0xe8] sm:$0xff] %vm327, 0.0
        %358 = vst.msk [vmem:[#allocation2 + $0xf0] sm:$0xff] %vm327, 0.0
        %359 = vst.msk [vmem:[#allocation2 + $0xf8] sm:$0xff] %vm327, 0.0
        %360 = vst.msk [vmem:[#allocation2 + $0x100] sm:$0xff] %vm327, 0.0
        %361 = vst.msk [vmem:[#allocation2 + $0x108] sm:$0xff] %vm327, 0.0
        %362 = vst.msk [vmem:[#allocation2 + $0x110] sm:$0xff] %vm327, 0.0
        %363 = vst.msk [vmem:[#allocation2 + $0x118] sm:$0xff] %vm327, 0.0
        %364 = vst.msk [vmem:[#allocation2 + $0x120] sm:$0xff] %vm327, 0.0
        %365 = vst.msk [vmem:[#allocation2 + $0x128] sm:$0xff] %vm327, 0.0
        %366 = vst.msk [vmem:[#allocation2 + $0x130] sm:$0xff] %vm327, 0.0
        %367 = vst.msk [vmem:[#allocation2 + $0x138] sm:$0xff] %vm327, 0.0
        %368 = vst.msk [vmem:[#allocation2 + $0x140] sm:$0xff] %vm327, 0.0
        %369 = vst.msk [vmem:[#allocation2 + $0x148] sm:$0xff] %vm327, 0.0
        %370 = vst.msk [vmem:[#allocation2 + $0x150] sm:$0xff] %vm327, 0.0
        %371 = vst.msk [vmem:[#allocation2 + $0x158] sm:$0xff] %vm327, 0.0
        %372 = vst.msk [vmem:[#allocation2 + $0x160] sm:$0xff] %vm327, 0.0
        %373 = vst.msk [vmem:[#allocation2 + $0x168] sm:$0xff] %vm327, 0.0
        %374 = vst.msk [vmem:[#allocation2 + $0x170] sm:$0xff] %vm327, 0.0
        %375 = vst.msk [vmem:[#allocation2 + $0x178] sm:$0xff] %vm327, 0.0
        %376 = vst.msk [vmem:[#allocation2 + $0x180] sm:$0xff] %vm327, 0.0
        %377 = vst.msk [vmem:[#allocation2 + $0x188] sm:$0xff] %vm327, 0.0
        %378 = vst.msk [vmem:[#allocation2 + $0x190] sm:$0xff] %vm327, 0.0
        %379 = vst.msk [vmem:[#allocation2 + $0x198] sm:$0xff] %vm327, 0.0
        %380 = vst.msk [vmem:[#allocation2 + $0x1a0] sm:$0xff] %vm327, 0.0
        %381 = vst.msk [vmem:[#allocation2 + $0x1a8] sm:$0xff] %vm327, 0.0
        %382 = vst.msk [vmem:[#allocation2 + $0x1b0] sm:$0xff] %vm327, 0.0
        %383 = vst.msk [vmem:[#allocation2 + $0x1b8] sm:$0xff] %vm327, 0.0
        %384 = vst.msk [vmem:[#allocation2 + $0x1c0] sm:$0xff] %vm327, 0.0
        %385 = vst.msk [vmem:[#allocation2 + $0x1c8] sm:$0xff] %vm327, 0.0
        %386 = vst.msk [vmem:[#allocation2 + $0x1d0] sm:$0xff] %vm327, 0.0
        %387 = vst.msk [vmem:[#allocation2 + $0x1d8] sm:$0xff] %vm327, 0.0
        %388 = vst.msk [vmem:[#allocation2 + $0x1e0] sm:$0xff] %vm327, 0.0
        %389 = vst.msk [vmem:[#allocation2 + $0x1e8] sm:$0xff] %vm327, 0.0
        %390 = vst.msk [vmem:[#allocation2 + $0x1f0] sm:$0xff] %vm327, 0.0
        %391 = vst.msk [vmem:[#allocation2 + $0x1f8] sm:$0xff] %vm327, 0.0
        %392 = vst.msk [vmem:[#allocation2 + $0x200] sm:$0xff] %vm327, 0.0
        %393 = vst.msk [vmem:[#allocation2 + $0x208] sm:$0xff] %vm327, 0.0
        %394 = vst.msk [vmem:[#allocation2 + $0x210] sm:$0xff] %vm327, 0.0
        %395 = vst.msk [vmem:[#allocation2 + $0x218] sm:$0xff] %vm327, 0.0
        %396 = vst.msk [vmem:[#allocation2 + $0x220] sm:$0xff] %vm327, 0.0
        %397 = vst.msk [vmem:[#allocation2 + $0x228] sm:$0xff] %vm327, 0.0
        %398 = vst.msk [vmem:[#allocation2 + $0x230] sm:$0xff] %vm327, 0.0
        %399 = vst.msk [vmem:[#allocation2 + $0x238] sm:$0xff] %vm327, 0.0
        %400 = vst.msk [vmem:[#allocation2 + $0x240] sm:$0xff] %vm327, 0.0
        %401 = vst.msk [vmem:[#allocation2 + $0x248] sm:$0xff] %vm327, 0.0
        %402 = vst.msk [vmem:[#allocation2 + $0x250] sm:$0xff] %vm327, 0.0
        %403 = vst.msk [vmem:[#allocation2 + $0x258] sm:$0xff] %vm327, 0.0
        %404 = vst.msk [vmem:[#allocation2 + $0x260] sm:$0xff] %vm327, 0.0
        %405 = vst.msk [vmem:[#allocation2 + $0x268] sm:$0xff] %vm327, 0.0
        %406 = vst.msk [vmem:[#allocation2 + $0x270] sm:$0xff] %vm327, 0.0
        %407 = vst.msk [vmem:[#allocation2 + $0x278] sm:$0xff] %vm327, 0.0
        %408 = vst.msk [vmem:[#allocation2 + $0x280] sm:$0xff] %vm327, 0.0
        %409 = vst.msk [vmem:[#allocation2 + $0x288] sm:$0xff] %vm327, 0.0
        %410 = vst.msk [vmem:[#allocation2 + $0x290] sm:$0xff] %vm327, 0.0
        %411 = vst.msk [vmem:[#allocation2 + $0x298] sm:$0xff] %vm327, 0.0
        %412 = vst.msk [vmem:[#allocation2 + $0x2a0] sm:$0xff] %vm327, 0.0
        %413 = vst.msk [vmem:[#allocation2 + $0x2a8] sm:$0xff] %vm327, 0.0
        %414 = vst.msk [vmem:[#allocation2 + $0x2b0] sm:$0xff] %vm327, 0.0
        %415 = vst.msk [vmem:[#allocation2 + $0x2b8] sm:$0xff] %vm327, 0.0
        %416 = vst.msk [vmem:[#allocation2 + $0x2c0] sm:$0xff] %vm327, 0.0
        %417 = vst.msk [vmem:[#allocation2 + $0x2c8] sm:$0xff] %vm327, 0.0
        %418 = vst.msk [vmem:[#allocation2 + $0x2d0] sm:$0xff] %vm327, 0.0
        %419 = vst.msk [vmem:[#allocation2 + $0x2d8] sm:$0xff] %vm327, 0.0
        %420 = vst.msk [vmem:[#allocation2 + $0x2e0] sm:$0xff] %vm327, 0.0
        %421 = vst.msk [vmem:[#allocation2 + $0x2e8] sm:$0xff] %vm327, 0.0
        %422 = vst.msk [vmem:[#allocation2 + $0x2f0] sm:$0xff] %vm327, 0.0
        %423 = vst.msk [vmem:[#allocation2 + $0x2f8] sm:$0xff] %vm327, 0.0
        %424 = vst.msk [vmem:[#allocation2 + $0x300] sm:$0xff] %vm327, 0.0
        %425 = vst.msk [vmem:[#allocation2 + $0x308] sm:$0xff] %vm327, 0.0
        %426 = vst.msk [vmem:[#allocation2 + $0x310] sm:$0xff] %vm327, 0.0
        %427 = vst.msk [vmem:[#allocation2 + $0x318] sm:$0xff] %vm327, 0.0
        %428 = vst.msk [vmem:[#allocation2 + $0x320] sm:$0xff] %vm327, 0.0
        %429 = vst.msk [vmem:[#allocation2 + $0x328] sm:$0xff] %vm327, 0.0
        %430 = vst.msk [vmem:[#allocation2 + $0x330] sm:$0xff] %vm327, 0.0
        %431 = vst.msk [vmem:[#allocation2 + $0x338] sm:$0xff] %vm327, 0.0
        %432 = vst.msk [vmem:[#allocation2 + $0x340] sm:$0xff] %vm327, 0.0
        %433 = vst.msk [vmem:[#allocation2 + $0x348] sm:$0xff] %vm327, 0.0
        %434 = vst.msk [vmem:[#allocation2 + $0x350] sm:$0xff] %vm327, 0.0
        %435 = vst.msk [vmem:[#allocation2 + $0x358] sm:$0xff] %vm327, 0.0
        %436 = vst.msk [vmem:[#allocation2 + $0x360] sm:$0xff] %vm327, 0.0
        %437 = vst.msk [vmem:[#allocation2 + $0x368] sm:$0xff] %vm327, 0.0
        %438 = vst.msk [vmem:[#allocation2 + $0x370] sm:$0xff] %vm327, 0.0
        %439 = vst.msk [vmem:[#allocation2 + $0x378] sm:$0xff] %vm327, 0.0
        %440 = vst.msk [vmem:[#allocation2 + $0x380] sm:$0xff] %vm327, 0.0
        %441 = vst.msk [vmem:[#allocation2 + $0x388] sm:$0xff] %vm327, 0.0
        %442 = vst.msk [vmem:[#allocation2 + $0x390] sm:$0xff] %vm327, 0.0
        %443 = vst.msk [vmem:[#allocation2 + $0x398] sm:$0xff] %vm327, 0.0
        %444 = vst.msk [vmem:[#allocation2 + $0x3a0] sm:$0xff] %vm327, 0.0
        %445 = vst.msk [vmem:[#allocation2 + $0x3a8] sm:$0xff] %vm327, 0.0
        %446 = vst.msk [vmem:[#allocation2 + $0x3b0] sm:$0xff] %vm327, 0.0
        %447 = vst.msk [vmem:[#allocation2 + $0x3b8] sm:$0xff] %vm327, 0.0
        %448 = vst.msk [vmem:[#allocation2 + $0x3c0] sm:$0xff] %vm327, 0.0
        %449 = vst.msk [vmem:[#allocation2 + $0x3c8] sm:$0xff] %vm327, 0.0
        %450 = vst.msk [vmem:[#allocation2 + $0x3d0] sm:$0xff] %vm327, 0.0
        %451 = vst.msk [vmem:[#allocation2 + $0x3d8] sm:$0xff] %vm327, 0.0
        %452 = vst.msk [vmem:[#allocation2 + $0x3e0] sm:$0xff] %vm327, 0.0
        %453 = vst.msk [vmem:[#allocation2 + $0x3e8] sm:$0xff] %vm327, 0.0
        %454 = vst.msk [vmem:[#allocation2 + $0x3f0] sm:$0xff] %vm327, 0.0
        %455 = vst.msk [vmem:[#allocation2 + $0x3f8] sm:$0xff] %vm327, 0.0
        %456 = vst.msk [vmem:[#allocation2 + $0x400] sm:$0xff] %vm327, 0.0
        %457 = vst.msk [vmem:[#allocation2 + $0x408] sm:$0xff] %vm327, 0.0
        %458 = vst.msk [vmem:[#allocation2 + $0x410] sm:$0xff] %vm327, 0.0
        %459 = vst.msk [vmem:[#allocation2 + $0x418] sm:$0xff] %vm327, 0.0
        %460 = vst.msk [vmem:[#allocation2 + $0x420] sm:$0xff] %vm327, 0.0
        %461 = vst.msk [vmem:[#allocation2 + $0x428] sm:$0xff] %vm327, 0.0
        %462 = vst.msk [vmem:[#allocation2 + $0x430] sm:$0xff] %vm327, 0.0
        %463 = vst.msk [vmem:[#allocation2 + $0x438] sm:$0xff] %vm327, 0.0
        %464 = vst.msk [vmem:[#allocation2 + $0x440] sm:$0xff] %vm327, 0.0
        %465 = vst.msk [vmem:[#allocation2 + $0x448] sm:$0xff] %vm327, 0.0
        %466 = vst.msk [vmem:[#allocation2 + $0x450] sm:$0xff] %vm327, 0.0
        %467 = vst.msk [vmem:[#allocation2 + $0x458] sm:$0xff] %vm327, 0.0
        %468 = vst.msk [vmem:[#allocation2 + $0x460] sm:$0xff] %vm327, 0.0
        %469 = vst.msk [vmem:[#allocation2 + $0x468] sm:$0xff] %vm327, 0.0
        %470 = vst.msk [vmem:[#allocation2 + $0x470] sm:$0xff] %vm327, 0.0
        %471 = vst.msk [vmem:[#allocation2 + $0x478] sm:$0xff] %vm327, 0.0
        %472 = vst.msk [vmem:[#allocation2 + $0x480] sm:$0xff] %vm327, 0.0
        %473 = vst.msk [vmem:[#allocation2 + $0x488] sm:$0xff] %vm327, 0.0
        %474 = vst.msk [vmem:[#allocation2 + $0x490] sm:$0xff] %vm327, 0.0
        %475 = vst.msk [vmem:[#allocation2 + $0x498] sm:$0xff] %vm327, 0.0
        %476 = vst.msk [vmem:[#allocation2 + $0x4a0] sm:$0xff] %vm327, 0.0
        %477 = vst.msk [vmem:[#allocation2 + $0x4a8] sm:$0xff] %vm327, 0.0
        %478 = vst.msk [vmem:[#allocation2 + $0x4b0] sm:$0xff] %vm327, 0.0
        %479 = vst.msk [vmem:[#allocation2 + $0x4b8] sm:$0xff] %vm327, 0.0
        %480 = vst.msk [vmem:[#allocation2 + $0x4c0] sm:$0xff] %vm327, 0.0
        %481 = vst.msk [vmem:[#allocation2 + $0x4c8] sm:$0xff] %vm327, 0.0
        %482 = vst.msk [vmem:[#allocation2 + $0x4d0] sm:$0xff] %vm327, 0.0
        %483 = vst.msk [vmem:[#allocation2 + $0x4d8] sm:$0xff] %vm327, 0.0
        %484 = vst.msk [vmem:[#allocation2 + $0x4e0] sm:$0xff] %vm327, 0.0
        %485 = vst.msk [vmem:[#allocation2 + $0x4e8] sm:$0xff] %vm327, 0.0
        %486 = vst.msk [vmem:[#allocation2 + $0x4f0] sm:$0xff] %vm327, 0.0
        %487 = vst.msk [vmem:[#allocation2 + $0x4f8] sm:$0xff] %vm327, 0.0
        %488 = vst.msk [vmem:[#allocation2 + $0x500] sm:$0xff] %vm327, 0.0
        %489 = vst.msk [vmem:[#allocation2 + $0x508] sm:$0xff] %vm327, 0.0
        %490 = vst.msk [vmem:[#allocation2 + $0x510] sm:$0xff] %vm327, 0.0
        %491 = vst.msk [vmem:[#allocation2 + $0x518] sm:$0xff] %vm327, 0.0
        %492 = vst.msk [vmem:[#allocation2 + $0x520] sm:$0xff] %vm327, 0.0
        %493 = vst.msk [vmem:[#allocation2 + $0x528] sm:$0xff] %vm327, 0.0
        %494 = vst.msk [vmem:[#allocation2 + $0x530] sm:$0xff] %vm327, 0.0
        %495 = vst.msk [vmem:[#allocation2 + $0x538] sm:$0xff] %vm327, 0.0
        %496 = vst.msk [vmem:[#allocation2 + $0x540] sm:$0xff] %vm327, 0.0
        %497 = vst.msk [vmem:[#allocation2 + $0x548] sm:$0xff] %vm327, 0.0
        %498 = vst.msk [vmem:[#allocation2 + $0x550] sm:$0xff] %vm327, 0.0
        %499 = vst.msk [vmem:[#allocation2 + $0x558] sm:$0xff] %vm327, 0.0
        %500 = vst.msk [vmem:[#allocation2 + $0x560] sm:$0xff] %vm327, 0.0
        %501 = vst.msk [vmem:[#allocation2 + $0x568] sm:$0xff] %vm327, 0.0
        %502 = vst.msk [vmem:[#allocation2 + $0x570] sm:$0xff] %vm327, 0.0
        %503 = vst.msk [vmem:[#allocation2 + $0x578] sm:$0xff] %vm327, 0.0
        %504 = vst.msk [vmem:[#allocation2 + $0x580] sm:$0xff] %vm327, 0.0
        %505 = vst.msk [vmem:[#allocation2 + $0x588] sm:$0xff] %vm327, 0.0
        %506 = vst.msk [vmem:[#allocation2 + $0x590] sm:$0xff] %vm327, 0.0
        %507 = vst.msk [vmem:[#allocation2 + $0x598] sm:$0xff] %vm327, 0.0
        %508 = vst.msk [vmem:[#allocation2 + $0x5a0] sm:$0xff] %vm327, 0.0
        %509 = vst.msk [vmem:[#allocation2 + $0x5a8] sm:$0xff] %vm327, 0.0
        %510 = vst.msk [vmem:[#allocation2 + $0x5b0] sm:$0xff] %vm327, 0.0
        %511 = vst.msk [vmem:[#allocation2 + $0x5b8] sm:$0xff] %vm327, 0.0
        %512 = vst.msk [vmem:[#allocation2 + $0x5c0] sm:$0xff] %vm327, 0.0
        %513 = vst.msk [vmem:[#allocation2 + $0x5c8] sm:$0xff] %vm327, 0.0
        %514 = vst.msk [vmem:[#allocation2 + $0x5d0] sm:$0xff] %vm327, 0.0
        %515 = vst.msk [vmem:[#allocation2 + $0x5d8] sm:$0xff] %vm327, 0.0
        %516 = vst.msk [vmem:[#allocation2 + $0x5e0] sm:$0xff] %vm327, 0.0
        %517 = vst.msk [vmem:[#allocation2 + $0x5e8] sm:$0xff] %vm327, 0.0
        %518 = vst.msk [vmem:[#allocation2 + $0x5f0] sm:$0xff] %vm327, 0.0
        %519 = vst.msk [vmem:[#allocation2 + $0x5f8] sm:$0xff] %vm327, 0.0
        %520 = vst.msk [vmem:[#allocation2 + $0x600] sm:$0xff] %vm327, 0.0
        %521 = vst.msk [vmem:[#allocation2 + $0x608] sm:$0xff] %vm327, 0.0
        %522 = vst.msk [vmem:[#allocation2 + $0x610] sm:$0xff] %vm327, 0.0
        %523 = vst.msk [vmem:[#allocation2 + $0x618] sm:$0xff] %vm327, 0.0
        %524 = vst.msk [vmem:[#allocation2 + $0x620] sm:$0xff] %vm327, 0.0
        %525 = vst.msk [vmem:[#allocation2 + $0x628] sm:$0xff] %vm327, 0.0
        %526 = vst.msk [vmem:[#allocation2 + $0x630] sm:$0xff] %vm327, 0.0
        %527 = vst.msk [vmem:[#allocation2 + $0x638] sm:$0xff] %vm327, 0.0
        %528 = vst.msk [vmem:[#allocation2 + $0x640] sm:$0xff] %vm327, 0.0
        %529 = vst.msk [vmem:[#allocation2 + $0x648] sm:$0xff] %vm327, 0.0
        %530 = vst.msk [vmem:[#allocation2 + $0x650] sm:$0xff] %vm327, 0.0
        %531 = vst.msk [vmem:[#allocation2 + $0x658] sm:$0xff] %vm327, 0.0
        %532 = vst.msk [vmem:[#allocation2 + $0x660] sm:$0xff] %vm327, 0.0
        %533 = vst.msk [vmem:[#allocation2 + $0x668] sm:$0xff] %vm327, 0.0
        %534 = vst.msk [vmem:[#allocation2 + $0x670] sm:$0xff] %vm327, 0.0
        %535 = vst.msk [vmem:[#allocation2 + $0x678] sm:$0xff] %vm327, 0.0
        %536 = vst.msk [vmem:[#allocation2 + $0x680] sm:$0xff] %vm327, 0.0
        %537 = vst.msk [vmem:[#allocation2 + $0x688] sm:$0xff] %vm327, 0.0
        %538 = vst.msk [vmem:[#allocation2 + $0x690] sm:$0xff] %vm327, 0.0
        %539 = vst.msk [vmem:[#allocation2 + $0x698] sm:$0xff] %vm327, 0.0
        %540 = vst.msk [vmem:[#allocation2 + $0x6a0] sm:$0xff] %vm327, 0.0
        %541 = vst.msk [vmem:[#allocation2 + $0x6a8] sm:$0xff] %vm327, 0.0
        %542 = vst.msk [vmem:[#allocation2 + $0x6b0] sm:$0xff] %vm327, 0.0
        %543 = vst.msk [vmem:[#allocation2 + $0x6b8] sm:$0xff] %vm327, 0.0
        %544 = vst.msk [vmem:[#allocation2 + $0x6c0] sm:$0xff] %vm327, 0.0
        %545 = vst.msk [vmem:[#allocation2 + $0x6c8] sm:$0xff] %vm327, 0.0
        %546 = vst.msk [vmem:[#allocation2 + $0x6d0] sm:$0xff] %vm327, 0.0
        %547 = vst.msk [vmem:[#allocation2 + $0x6d8] sm:$0xff] %vm327, 0.0
        %548 = vst.msk [vmem:[#allocation2 + $0x6e0] sm:$0xff] %vm327, 0.0
        %549 = vst.msk [vmem:[#allocation2 + $0x6e8] sm:$0xff] %vm327, 0.0
        %550 = vst.msk [vmem:[#allocation2 + $0x6f0] sm:$0xff] %vm327, 0.0
        %551 = vst.msk [vmem:[#allocation2 + $0x6f8] sm:$0xff] %vm327, 0.0
        %552 = vst.msk [vmem:[#allocation2 + $0x700] sm:$0xff] %vm327, 0.0
        %553 = vst.msk [vmem:[#allocation2 + $0x708] sm:$0xff] %vm327, 0.0
        %554 = vst.msk [vmem:[#allocation2 + $0x710] sm:$0xff] %vm327, 0.0
        %555 = vst.msk [vmem:[#allocation2 + $0x718] sm:$0xff] %vm327, 0.0
        %556 = vst.msk [vmem:[#allocation2 + $0x720] sm:$0xff] %vm327, 0.0
        %557 = vst.msk [vmem:[#allocation2 + $0x728] sm:$0xff] %vm327, 0.0
        %558 = vst.msk [vmem:[#allocation2 + $0x730] sm:$0xff] %vm327, 0.0
        %559 = vst.msk [vmem:[#allocation2 + $0x738] sm:$0xff] %vm327, 0.0
        %560 = vst.msk [vmem:[#allocation2 + $0x740] sm:$0xff] %vm327, 0.0
        %561 = vst.msk [vmem:[#allocation2 + $0x748] sm:$0xff] %vm327, 0.0
        %562 = vst.msk [vmem:[#allocation2 + $0x750] sm:$0xff] %vm327, 0.0
        %563 = vst.msk [vmem:[#allocation2 + $0x758] sm:$0xff] %vm327, 0.0
        %564 = vst.msk [vmem:[#allocation2 + $0x760] sm:$0xff] %vm327, 0.0
        %565 = vst.msk [vmem:[#allocation2 + $0x768] sm:$0xff] %vm327, 0.0
        %566 = vst.msk [vmem:[#allocation2 + $0x770] sm:$0xff] %vm327, 0.0
        %567 = vst.msk [vmem:[#allocation2 + $0x778] sm:$0xff] %vm327, 0.0
        %568 = vst.msk [vmem:[#allocation2 + $0x780] sm:$0xff] %vm327, 0.0
        %569 = vst.msk [vmem:[#allocation2 + $0x788] sm:$0xff] %vm327, 0.0
        %570 = vst.msk [vmem:[#allocation2 + $0x790] sm:$0xff] %vm327, 0.0
        %571 = vst.msk [vmem:[#allocation2 + $0x798] sm:$0xff] %vm327, 0.0
        %572 = vst.msk [vmem:[#allocation2 + $0x7a0] sm:$0xff] %vm327, 0.0
        %573 = vst.msk [vmem:[#allocation2 + $0x7a8] sm:$0xff] %vm327, 0.0
        %574 = vst.msk [vmem:[#allocation2 + $0x7b0] sm:$0xff] %vm327, 0.0
        %575 = vst.msk [vmem:[#allocation2 + $0x7b8] sm:$0xff] %vm327, 0.0
        %576 = vst.msk [vmem:[#allocation2 + $0x7c0] sm:$0xff] %vm327, 0.0
        %577 = vst.msk [vmem:[#allocation2 + $0x7c8] sm:$0xff] %vm327, 0.0
        %578 = vst.msk [vmem:[#allocation2 + $0x7d0] sm:$0xff] %vm327, 0.0
        %579 = vst.msk [vmem:[#allocation2 + $0x7d8] sm:$0xff] %vm327, 0.0
        %580 = vst.msk [vmem:[#allocation2 + $0x7e0] sm:$0xff] %vm327, 0.0
        %581 = vst.msk [vmem:[#allocation2 + $0x7e8] sm:$0xff] %vm327, 0.0
        %582 = vst.msk [vmem:[#allocation2 + $0x7f0] sm:$0xff] %vm327, 0.0
        %583 = vst.msk [vmem:[#allocation2 + $0x7f8] sm:$0xff] %vm327, 0.0
        %584 = vst.msk [vmem:[#allocation2 + $0x800] sm:$0xff] %vm327, 0.0
        %585 = vst.msk [vmem:[#allocation2 + $0x808] sm:$0xff] %vm327, 0.0
        %586 = vst.msk [vmem:[#allocation2 + $0x810] sm:$0xff] %vm327, 0.0
        %587 = vst.msk [vmem:[#allocation2 + $0x818] sm:$0xff] %vm327, 0.0
        %588 = vst.msk [vmem:[#allocation2 + $0x820] sm:$0xff] %vm327, 0.0
        %589 = vst.msk [vmem:[#allocation2 + $0x828] sm:$0xff] %vm327, 0.0
        %590 = vst.msk [vmem:[#allocation2 + $0x830] sm:$0xff] %vm327, 0.0
        %591 = vst.msk [vmem:[#allocation2 + $0x838] sm:$0xff] %vm327, 0.0
        %592 = vst.msk [vmem:[#allocation2 + $0x840] sm:$0xff] %vm327, 0.0
        %593 = vst.msk [vmem:[#allocation2 + $0x848] sm:$0xff] %vm327, 0.0
        %594 = vst.msk [vmem:[#allocation2 + $0x850] sm:$0xff] %vm327, 0.0
        %595 = vst.msk [vmem:[#allocation2 + $0x858] sm:$0xff] %vm327, 0.0
        %596 = vst.msk [vmem:[#allocation2 + $0x860] sm:$0xff] %vm327, 0.0
        %597 = vst.msk [vmem:[#allocation2 + $0x868] sm:$0xff] %vm327, 0.0
        %598 = vst.msk [vmem:[#allocation2 + $0x870] sm:$0xff] %vm327, 0.0
        %599 = vst.msk [vmem:[#allocation2 + $0x878] sm:$0xff] %vm327, 0.0
        %600 = vst.msk [vmem:[#allocation2 + $0x880] sm:$0xff] %vm327, 0.0
        %601 = vst.msk [vmem:[#allocation2 + $0x888] sm:$0xff] %vm327, 0.0
        %602 = vst.msk [vmem:[#allocation2 + $0x890] sm:$0xff] %vm327, 0.0
        %603 = vst.msk [vmem:[#allocation2 + $0x898] sm:$0xff] %vm327, 0.0
        %604 = vst.msk [vmem:[#allocation2 + $0x8a0] sm:$0xff] %vm327, 0.0
        %605 = vst.msk [vmem:[#allocation2 + $0x8a8] sm:$0xff] %vm327, 0.0
        %606 = vst.msk [vmem:[#allocation2 + $0x8b0] sm:$0xff] %vm327, 0.0
        %607 = vst.msk [vmem:[#allocation2 + $0x8b8] sm:$0xff] %vm327, 0.0
        %608 = vst.msk [vmem:[#allocation2 + $0x8c0] sm:$0xff] %vm327, 0.0
        %609 = vst.msk [vmem:[#allocation2 + $0x8c8] sm:$0xff] %vm327, 0.0
        %610 = vst.msk [vmem:[#allocation2 + $0x8d0] sm:$0xff] %vm327, 0.0
        %611 = vst.msk [vmem:[#allocation2 + $0x8d8] sm:$0xff] %vm327, 0.0
        %612 = vst.msk [vmem:[#allocation2 + $0x8e0] sm:$0xff] %vm327, 0.0
        %613 = vst.msk [vmem:[#allocation2 + $0x8e8] sm:$0xff] %vm327, 0.0
        %614 = vst.msk [vmem:[#allocation2 + $0x8f0] sm:$0xff] %vm327, 0.0
        %615 = vst.msk [vmem:[#allocation2 + $0x8f8] sm:$0xff] %vm327, 0.0
        %616 = vst.msk [vmem:[#allocation2 + $0x900] sm:$0xff] %vm327, 0.0
        %617 = vst.msk [vmem:[#allocation2 + $0x908] sm:$0xff] %vm327, 0.0
        %618 = vst.msk [vmem:[#allocation2 + $0x910] sm:$0xff] %vm327, 0.0
        %619 = vst.msk [vmem:[#allocation2 + $0x918] sm:$0xff] %vm327, 0.0
        %620 = vst.msk [vmem:[#allocation2 + $0x920] sm:$0xff] %vm327, 0.0
        %621 = vst.msk [vmem:[#allocation2 + $0x928] sm:$0xff] %vm327, 0.0
        %622 = vst.msk [vmem:[#allocation2 + $0x930] sm:$0xff] %vm327, 0.0
        %623 = vst.msk [vmem:[#allocation2 + $0x938] sm:$0xff] %vm327, 0.0
        %624 = vst.msk [vmem:[#allocation2 + $0x940] sm:$0xff] %vm327, 0.0
        %625 = vst.msk [vmem:[#allocation2 + $0x948] sm:$0xff] %vm327, 0.0
        %626 = vst.msk [vmem:[#allocation2 + $0x950] sm:$0xff] %vm327, 0.0
        %627 = vst.msk [vmem:[#allocation2 + $0x958] sm:$0xff] %vm327, 0.0
        %628 = vst.msk [vmem:[#allocation2 + $0x960] sm:$0xff] %vm327, 0.0
        %629 = vst.msk [vmem:[#allocation2 + $0x968] sm:$0xff] %vm327, 0.0
        %630 = vst.msk [vmem:[#allocation2 + $0x970] sm:$0xff] %vm327, 0.0
        %631 = vst.msk [vmem:[#allocation2 + $0x978] sm:$0xff] %vm327, 0.0
        %632 = vst.msk [vmem:[#allocation2 + $0x980] sm:$0xff] %vm327, 0.0
        %633 = vst.msk [vmem:[#allocation2 + $0x988] sm:$0xff] %vm327, 0.0
        %634 = vst.msk [vmem:[#allocation2 + $0x990] sm:$0xff] %vm327, 0.0
        %635 = vst.msk [vmem:[#allocation2 + $0x998] sm:$0xff] %vm327, 0.0
        %636 = vst.msk [vmem:[#allocation2 + $0x9a0] sm:$0xff] %vm327, 0.0
        %637 = vst.msk [vmem:[#allocation2 + $0x9a8] sm:$0xff] %vm327, 0.0
        %638 = vst.msk [vmem:[#allocation2 + $0x9b0] sm:$0xff] %vm327, 0.0
        %639 = vst.msk [vmem:[#allocation2 + $0x9b8] sm:$0xff] %vm327, 0.0
        %640 = vst.msk [vmem:[#allocation2 + $0x9c0] sm:$0xff] %vm327, 0.0
        %641 = vst.msk [vmem:[#allocation2 + $0x9c8] sm:$0xff] %vm327, 0.0
        %642 = vst.msk [vmem:[#allocation2 + $0x9d0] sm:$0xff] %vm327, 0.0
        %643 = vst.msk [vmem:[#allocation2 + $0x9d8] sm:$0xff] %vm327, 0.0
        %644 = vst.msk [vmem:[#allocation2 + $0x9e0] sm:$0xff] %vm327, 0.0
        %645 = vst.msk [vmem:[#allocation2 + $0x9e8] sm:$0xff] %vm327, 0.0
        %646 = vst.msk [vmem:[#allocation2 + $0x9f0] sm:$0xff] %vm327, 0.0
        %647 = vst.msk [vmem:[#allocation2 + $0x9f8] sm:$0xff] %vm327, 0.0
        %648 = vst.msk [vmem:[#allocation2 + $0xa00] sm:$0xff] %vm327, 0.0
        %649 = vst.msk [vmem:[#allocation2 + $0xa08] sm:$0xff] %vm327, 0.0
        %650 = vst.msk [vmem:[#allocation2 + $0xa10] sm:$0xff] %vm327, 0.0
        %651 = vst.msk [vmem:[#allocation2 + $0xa18] sm:$0xff] %vm327, 0.0
        %652 = vst.msk [vmem:[#allocation2 + $0xa20] sm:$0xff] %vm327, 0.0
        %653 = vst.msk [vmem:[#allocation2 + $0xa28] sm:$0xff] %vm327, 0.0
        %654 = vst.msk [vmem:[#allocation2 + $0xa30] sm:$0xff] %vm327, 0.0
        %655 = vst.msk [vmem:[#allocation2 + $0xa38] sm:$0xff] %vm327, 0.0
        %656 = vst.msk [vmem:[#allocation2 + $0xa40] sm:$0xff] %vm327, 0.0
        %657 = vst.msk [vmem:[#allocation2 + $0xa48] sm:$0xff] %vm327, 0.0
        %658 = vst.msk [vmem:[#allocation2 + $0xa50] sm:$0xff] %vm327, 0.0
        %659 = vst.msk [vmem:[#allocation2 + $0xa58] sm:$0xff] %vm327, 0.0
        %660 = vst.msk [vmem:[#allocation2 + $0xa60] sm:$0xff] %vm327, 0.0
        %661 = vst.msk [vmem:[#allocation2 + $0xa68] sm:$0xff] %vm327, 0.0
        %662 = vst.msk [vmem:[#allocation2 + $0xa70] sm:$0xff] %vm327, 0.0
        %663 = vst.msk [vmem:[#allocation2 + $0xa78] sm:$0xff] %vm327, 0.0
        %664 = vst.msk [vmem:[#allocation2 + $0xa80] sm:$0xff] %vm327, 0.0
        %665 = vst.msk [vmem:[#allocation2 + $0xa88] sm:$0xff] %vm327, 0.0
        %666 = vst.msk [vmem:[#allocation2 + $0xa90] sm:$0xff] %vm327, 0.0
        %667 = vst.msk [vmem:[#allocation2 + $0xa98] sm:$0xff] %vm327, 0.0
        %668 = vst.msk [vmem:[#allocation2 + $0xaa0] sm:$0xff] %vm327, 0.0
        %669 = vst.msk [vmem:[#allocation2 + $0xaa8] sm:$0xff] %vm327, 0.0
        %670 = vst.msk [vmem:[#allocation2 + $0xab0] sm:$0xff] %vm327, 0.0
        %671 = vst.msk [vmem:[#allocation2 + $0xab8] sm:$0xff] %vm327, 0.0
        %672 = vst.msk [vmem:[#allocation2 + $0xac0] sm:$0xff] %vm327, 0.0
        %673 = vst.msk [vmem:[#allocation2 + $0xac8] sm:$0xff] %vm327, 0.0
        %674 = vst.msk [vmem:[#allocation2 + $0xad0] sm:$0xff] %vm327, 0.0
        %675 = vst.msk [vmem:[#allocation2 + $0xad8] sm:$0xff] %vm327, 0.0
        %676 = vst.msk [vmem:[#allocation2 + $0xae0] sm:$0xff] %vm327, 0.0
        %677 = vst.msk [vmem:[#allocation2 + $0xae8] sm:$0xff] %vm327, 0.0
        %678 = vst.msk [vmem:[#allocation2 + $0xaf0] sm:$0xff] %vm327, 0.0
        %679 = vst.msk [vmem:[#allocation2 + $0xaf8] sm:$0xff] %vm327, 0.0
        %680 = vst.msk [vmem:[#allocation2 + $0xb00] sm:$0xff] %vm327, 0.0
        %681 = vst.msk [vmem:[#allocation2 + $0xb08] sm:$0xff] %vm327, 0.0
        %682 = vst.msk [vmem:[#allocation2 + $0xb10] sm:$0xff] %vm327, 0.0
        %683 = vst.msk [vmem:[#allocation2 + $0xb18] sm:$0xff] %vm327, 0.0
        %684 = vst.msk [vmem:[#allocation2 + $0xb20] sm:$0xff] %vm327, 0.0
        %685 = vst.msk [vmem:[#allocation2 + $0xb28] sm:$0xff] %vm327, 0.0
        %686 = vst.msk [vmem:[#allocation2 + $0xb30] sm:$0xff] %vm327, 0.0
        %687 = vst.msk [vmem:[#allocation2 + $0xb38] sm:$0xff] %vm327, 0.0
        %688 = vst.msk [vmem:[#allocation2 + $0xb40] sm:$0xff] %vm327, 0.0
        %689 = vst.msk [vmem:[#allocation2 + $0xb48] sm:$0xff] %vm327, 0.0
        %690 = vst.msk [vmem:[#allocation2 + $0xb50] sm:$0xff] %vm327, 0.0
        %691 = vst.msk [vmem:[#allocation2 + $0xb58] sm:$0xff] %vm327, 0.0
        %692 = vst.msk [vmem:[#allocation2 + $0xb60] sm:$0xff] %vm327, 0.0
        %693 = vst.msk [vmem:[#allocation2 + $0xb68] sm:$0xff] %vm327, 0.0
        %694 = vst.msk [vmem:[#allocation2 + $0xb70] sm:$0xff] %vm327, 0.0
        %695 = vst.msk [vmem:[#allocation2 + $0xb78] sm:$0xff] %vm327, 0.0
        %696 = vst.msk [vmem:[#allocation2 + $0xb80] sm:$0xff] %vm327, 0.0
        %697 = vst.msk [vmem:[#allocation2 + $0xb88] sm:$0xff] %vm327, 0.0
        %698 = vst.msk [vmem:[#allocation2 + $0xb90] sm:$0xff] %vm327, 0.0
        %699 = vst.msk [vmem:[#allocation2 + $0xb98] sm:$0xff] %vm327, 0.0
        %700 = vst.msk [vmem:[#allocation2 + $0xba0] sm:$0xff] %vm327, 0.0
        %701 = vst.msk [vmem:[#allocation2 + $0xba8] sm:$0xff] %vm327, 0.0
        %702 = vst.msk [vmem:[#allocation2 + $0xbb0] sm:$0xff] %vm327, 0.0
        %703 = vst.msk [vmem:[#allocation2 + $0xbb8] sm:$0xff] %vm327, 0.0
        %704 = vst.msk [vmem:[#allocation2 + $0xbc0] sm:$0xff] %vm327, 0.0
        %705 = vst.msk [vmem:[#allocation2 + $0xbc8] sm:$0xff] %vm327, 0.0
        %706 = vst.msk [vmem:[#allocation2 + $0xbd0] sm:$0xff] %vm327, 0.0
        %707 = vst.msk [vmem:[#allocation2 + $0xbd8] sm:$0xff] %vm327, 0.0
        %708 = vst.msk [vmem:[#allocation2 + $0xbe0] sm:$0xff] %vm327, 0.0
        %709 = vst.msk [vmem:[#allocation2 + $0xbe8] sm:$0xff] %vm327, 0.0
        %710 = vst.msk [vmem:[#allocation2 + $0xbf0] sm:$0xff] %vm327, 0.0
        %711 = vst.msk [vmem:[#allocation2 + $0xbf8] sm:$0xff] %vm327, 0.0
        %712 = vst.msk [vmem:[#allocation2 + $0xc00] sm:$0xff] %vm327, 0.0
        %713 = vst.msk [vmem:[#allocation2 + $0xc08] sm:$0xff] %vm327, 0.0
        %714 = vst.msk [vmem:[#allocation2 + $0xc10] sm:$0xff] %vm327, 0.0
        %715 = vst.msk [vmem:[#allocation2 + $0xc18] sm:$0xff] %vm327, 0.0
        %716 = vst.msk [vmem:[#allocation2 + $0xc20] sm:$0xff] %vm327, 0.0
        %717 = vst.msk [vmem:[#allocation2 + $0xc28] sm:$0xff] %vm327, 0.0
        %718 = vst.msk [vmem:[#allocation2 + $0xc30] sm:$0xff] %vm327, 0.0
        %719 = vst.msk [vmem:[#allocation2 + $0xc38] sm:$0xff] %vm327, 0.0
        %720 = vst.msk [vmem:[#allocation2 + $0xc40] sm:$0xff] %vm327, 0.0
        %721 = vst.msk [vmem:[#allocation2 + $0xc48] sm:$0xff] %vm327, 0.0
        %722 = vst.msk [vmem:[#allocation2 + $0xc50] sm:$0xff] %vm327, 0.0
        %723 = vst.msk [vmem:[#allocation2 + $0xc58] sm:$0xff] %vm327, 0.0
        %724 = vst.msk [vmem:[#allocation2 + $0xc60] sm:$0xff] %vm327, 0.0
        %725 = vst.msk [vmem:[#allocation2 + $0xc68] sm:$0xff] %vm327, 0.0
        %726 = vst.msk [vmem:[#allocation2 + $0xc70] sm:$0xff] %vm327, 0.0
        %727 = vst.msk [vmem:[#allocation2 + $0xc78] sm:$0xff] %vm327, 0.0
        %728 = vst.msk [vmem:[#allocation2 + $0xc80] sm:$0xff] %vm327, 0.0
        %729 = vst.msk [vmem:[#allocation2 + $0xc88] sm:$0xff] %vm327, 0.0
        %730 = vst.msk [vmem:[#allocation2 + $0xc90] sm:$0xff] %vm327, 0.0
        %731 = vst.msk [vmem:[#allocation2 + $0xc98] sm:$0xff] %vm327, 0.0
        %732 = vst.msk [vmem:[#allocation2 + $0xca0] sm:$0xff] %vm327, 0.0
        %733 = vst.msk [vmem:[#allocation2 + $0xca8] sm:$0xff] %vm327, 0.0
        %734 = vst.msk [vmem:[#allocation2 + $0xcb0] sm:$0xff] %vm327, 0.0
        %735 = vst.msk [vmem:[#allocation2 + $0xcb8] sm:$0xff] %vm327, 0.0
        %736 = vst.msk [vmem:[#allocation2 + $0xcc0] sm:$0xff] %vm327, 0.0
        %737 = vst.msk [vmem:[#allocation2 + $0xcc8] sm:$0xff] %vm327, 0.0
        %738 = vst.msk [vmem:[#allocation2 + $0xcd0] sm:$0xff] %vm327, 0.0
        %739 = vst.msk [vmem:[#allocation2 + $0xcd8] sm:$0xff] %vm327, 0.0
        %740 = vst.msk [vmem:[#allocation2 + $0xce0] sm:$0xff] %vm327, 0.0
        %741 = vst.msk [vmem:[#allocation2 + $0xce8] sm:$0xff] %vm327, 0.0
        %742 = vst.msk [vmem:[#allocation2 + $0xcf0] sm:$0xff] %vm327, 0.0
        %743 = vst.msk [vmem:[#allocation2 + $0xcf8] sm:$0xff] %vm327, 0.0
        %744 = vst.msk [vmem:[#allocation2 + $0xd00] sm:$0xff] %vm327, 0.0
        %745 = vst.msk [vmem:[#allocation2 + $0xd08] sm:$0xff] %vm327, 0.0
        %746 = vst.msk [vmem:[#allocation2 + $0xd10] sm:$0xff] %vm327, 0.0
        %747 = vst.msk [vmem:[#allocation2 + $0xd18] sm:$0xff] %vm327, 0.0
        %748 = vst.msk [vmem:[#allocation2 + $0xd20] sm:$0xff] %vm327, 0.0
        %749 = vst.msk [vmem:[#allocation2 + $0xd28] sm:$0xff] %vm327, 0.0
        %750 = vst.msk [vmem:[#allocation2 + $0xd30] sm:$0xff] %vm327, 0.0
        %751 = vst.msk [vmem:[#allocation2 + $0xd38] sm:$0xff] %vm327, 0.0
        %752 = vst.msk [vmem:[#allocation2 + $0xd40] sm:$0xff] %vm327, 0.0
        %753 = vst.msk [vmem:[#allocation2 + $0xd48] sm:$0xff] %vm327, 0.0
        %754 = vst.msk [vmem:[#allocation2 + $0xd50] sm:$0xff] %vm327, 0.0
        %755 = vst.msk [vmem:[#allocation2 + $0xd58] sm:$0xff] %vm327, 0.0
        %756 = vst.msk [vmem:[#allocation2 + $0xd60] sm:$0xff] %vm327, 0.0
        %757 = vst.msk [vmem:[#allocation2 + $0xd68] sm:$0xff] %vm327, 0.0
        %758 = vst.msk [vmem:[#allocation2 + $0xd70] sm:$0xff] %vm327, 0.0
        %759 = vst.msk [vmem:[#allocation2 + $0xd78] sm:$0xff] %vm327, 0.0
        %760 = vst.msk [vmem:[#allocation2 + $0xd80] sm:$0xff] %vm327, 0.0
        %761 = vst.msk [vmem:[#allocation2 + $0xd88] sm:$0xff] %vm327, 0.0
        %762 = vst.msk [vmem:[#allocation2 + $0xd90] sm:$0xff] %vm327, 0.0
        %763 = vst.msk [vmem:[#allocation2 + $0xd98] sm:$0xff] %vm327, 0.0
        %764 = vst.msk [vmem:[#allocation2 + $0xda0] sm:$0xff] %vm327, 0.0
        %765 = vst.msk [vmem:[#allocation2 + $0xda8] sm:$0xff] %vm327, 0.0
        %766 = vst.msk [vmem:[#allocation2 + $0xdb0] sm:$0xff] %vm327, 0.0
        %767 = vst.msk [vmem:[#allocation2 + $0xdb8] sm:$0xff] %vm327, 0.0
        %768 = vst.msk [vmem:[#allocation2 + $0xdc0] sm:$0xff] %vm327, 0.0
        %769 = vst.msk [vmem:[#allocation2 + $0xdc8] sm:$0xff] %vm327, 0.0
        %770 = vst.msk [vmem:[#allocation2 + $0xdd0] sm:$0xff] %vm327, 0.0
        %771 = vst.msk [vmem:[#allocation2 + $0xdd8] sm:$0xff] %vm327, 0.0
        %772 = vst.msk [vmem:[#allocation2 + $0xde0] sm:$0xff] %vm327, 0.0
        %773 = vst.msk [vmem:[#allocation2 + $0xde8] sm:$0xff] %vm327, 0.0
        %774 = vst.msk [vmem:[#allocation2 + $0xdf0] sm:$0xff] %vm327, 0.0
        %775 = vst.msk [vmem:[#allocation2 + $0xdf8] sm:$0xff] %vm327, 0.0
        %776 = vst.msk [vmem:[#allocation2 + $0xe00] sm:$0xff] %vm327, 0.0
        %777 = vst.msk [vmem:[#allocation2 + $0xe08] sm:$0xff] %vm327, 0.0
        %778 = vst.msk [vmem:[#allocation2 + $0xe10] sm:$0xff] %vm327, 0.0
        %779 = vst.msk [vmem:[#allocation2 + $0xe18] sm:$0xff] %vm327, 0.0
        %780 = vst.msk [vmem:[#allocation2 + $0xe20] sm:$0xff] %vm327, 0.0
        %781 = vst.msk [vmem:[#allocation2 + $0xe28] sm:$0xff] %vm327, 0.0
        %782 = vst.msk [vmem:[#allocation2 + $0xe30] sm:$0xff] %vm327, 0.0
        %783 = vst.msk [vmem:[#allocation2 + $0xe38] sm:$0xff] %vm327, 0.0
        %784 = vst.msk [vmem:[#allocation2 + $0xe40] sm:$0xff] %vm327, 0.0
        %785 = vst.msk [vmem:[#allocation2 + $0xe48] sm:$0xff] %vm327, 0.0
        %786 = vst.msk [vmem:[#allocation2 + $0xe50] sm:$0xff] %vm327, 0.0
        %787 = vst.msk [vmem:[#allocation2 + $0xe58] sm:$0xff] %vm327, 0.0
        %788 = vst.msk [vmem:[#allocation2 + $0xe60] sm:$0xff] %vm327, 0.0
        %789 = vst.msk [vmem:[#allocation2 + $0xe68] sm:$0xff] %vm327, 0.0
        %790 = vst.msk [vmem:[#allocation2 + $0xe70] sm:$0xff] %vm327, 0.0
        %791 = vst.msk [vmem:[#allocation2 + $0xe78] sm:$0xff] %vm327, 0.0
        %792 = vst.msk [vmem:[#allocation2 + $0xe80] sm:$0xff] %vm327, 0.0
        %793 = vst.msk [vmem:[#allocation2 + $0xe88] sm:$0xff] %vm327, 0.0
        %794 = vst.msk [vmem:[#allocation2 + $0xe90] sm:$0xff] %vm327, 0.0
        %795 = vst.msk [vmem:[#allocation2 + $0xe98] sm:$0xff] %vm327, 0.0
        %796 = vst.msk [vmem:[#allocation2 + $0xea0] sm:$0xff] %vm327, 0.0
        %797 = vst.msk [vmem:[#allocation2 + $0xea8] sm:$0xff] %vm327, 0.0
        %798 = vst.msk [vmem:[#allocation2 + $0xeb0] sm:$0xff] %vm327, 0.0
        %799 = vst.msk [vmem:[#allocation2 + $0xeb8] sm:$0xff] %vm327, 0.0
        %800 = vst.msk [vmem:[#allocation2 + $0xec0] sm:$0xff] %vm327, 0.0
        %801 = vst.msk [vmem:[#allocation2 + $0xec8] sm:$0xff] %vm327, 0.0
        %802 = vst.msk [vmem:[#allocation2 + $0xed0] sm:$0xff] %vm327, 0.0
        %803 = vst.msk [vmem:[#allocation2 + $0xed8] sm:$0xff] %vm327, 0.0
        %804 = vst.msk [vmem:[#allocation2 + $0xee0] sm:$0xff] %vm327, 0.0
        %805 = vst.msk [vmem:[#allocation2 + $0xee8] sm:$0xff] %vm327, 0.0
        %806 = vst.msk [vmem:[#allocation2 + $0xef0] sm:$0xff] %vm327, 0.0
        %807 = vst.msk [vmem:[#allocation2 + $0xef8] sm:$0xff] %vm327, 0.0
        %808 = vst.msk [vmem:[#allocation2 + $0xf00] sm:$0xff] %vm327, 0.0
        %809 = vst.msk [vmem:[#allocation2 + $0xf08] sm:$0xff] %vm327, 0.0
        %810 = vst.msk [vmem:[#allocation2 + $0xf10] sm:$0xff] %vm327, 0.0
        %811 = vst.msk [vmem:[#allocation2 + $0xf18] sm:$0xff] %vm327, 0.0
        %812 = vst.msk [vmem:[#allocation2 + $0xf20] sm:$0xff] %vm327, 0.0
        %813 = vst.msk [vmem:[#allocation2 + $0xf28] sm:$0xff] %vm327, 0.0
        %814 = vst.msk [vmem:[#allocation2 + $0xf30] sm:$0xff] %vm327, 0.0
        %815 = vst.msk [vmem:[#allocation2 + $0xf38] sm:$0xff] %vm327, 0.0
        %816 = vst.msk [vmem:[#allocation2 + $0xf40] sm:$0xff] %vm327, 0.0
        %817 = vst.msk [vmem:[#allocation2 + $0xf48] sm:$0xff] %vm327, 0.0
        %818 = vst.msk [vmem:[#allocation2 + $0xf50] sm:$0xff] %vm327, 0.0
        %819 = vst.msk [vmem:[#allocation2 + $0xf58] sm:$0xff] %vm327, 0.0
        %820 = vst.msk [vmem:[#allocation2 + $0xf60] sm:$0xff] %vm327, 0.0
        %821 = vst.msk [vmem:[#allocation2 + $0xf68] sm:$0xff] %vm327, 0.0
        %822 = vst.msk [vmem:[#allocation2 + $0xf70] sm:$0xff] %vm327, 0.0
        %823 = vst.msk [vmem:[#allocation2 + $0xf78] sm:$0xff] %vm327, 0.0
        %824 = vst.msk [vmem:[#allocation2 + $0xf80] sm:$0xff] %vm327, 0.0
        %825 = vst.msk [vmem:[#allocation2 + $0xf88] sm:$0xff] %vm327, 0.0
        %826 = vst.msk [vmem:[#allocation2 + $0xf90] sm:$0xff] %vm327, 0.0
        %827 = vst.msk [vmem:[#allocation2 + $0xf98] sm:$0xff] %vm327, 0.0
        %828 = vst.msk [vmem:[#allocation2 + $0xfa0] sm:$0xff] %vm327, 0.0
        %829 = vst.msk [vmem:[#allocation2 + $0xfa8] sm:$0xff] %vm327, 0.0
        %830 = vst.msk [vmem:[#allocation2 + $0xfb0] sm:$0xff] %vm327, 0.0
        %831 = vst.msk [vmem:[#allocation2 + $0xfb8] sm:$0xff] %vm327, 0.0
        %832 = vst.msk [vmem:[#allocation2 + $0xfc0] sm:$0xff] %vm327, 0.0
        %833 = vst.msk [vmem:[#allocation2 + $0xfc8] sm:$0xff] %vm327, 0.0
        %834 = vst.msk [vmem:[#allocation2 + $0xfd0] sm:$0xff] %vm327, 0.0
        %835 = vst.msk [vmem:[#allocation2 + $0xfd8] sm:$0xff] %vm327, 0.0
        %836 = vst.msk [vmem:[#allocation2 + $0xfe0] sm:$0xff] %vm327, 0.0
        %837 = vst.msk [vmem:[#allocation2 + $0xfe8] sm:$0xff] %vm327, 0.0
        %838 = vst.msk [vmem:[#allocation2 + $0xff0] sm:$0xff] %vm327, 0.0
        %839 = vst.msk [vmem:[#allocation2 + $0xff8] sm:$0xff] %vm327, 0.0
        %840 = vst.msk [vmem:[#allocation2 + $0x1000] sm:$0xff] %vm327, 0.0
        %841 = vst.msk [vmem:[#allocation2 + $0x1008] sm:$0xff] %vm327, 0.0
        %842 = vst.msk [vmem:[#allocation2 + $0x1010] sm:$0xff] %vm327, 0.0
        %843 = vst.msk [vmem:[#allocation2 + $0x1018] sm:$0xff] %vm327, 0.0
        %844 = vst.msk [vmem:[#allocation2 + $0x1020] sm:$0xff] %vm327, 0.0
        %845 = vst.msk [vmem:[#allocation2 + $0x1028] sm:$0xff] %vm327, 0.0
        %846 = vst.msk [vmem:[#allocation2 + $0x1030] sm:$0xff] %vm327, 0.0
        %847 = vst.msk [vmem:[#allocation2 + $0x1038] sm:$0xff] %vm327, 0.0
        %848 = vst.msk [vmem:[#allocation2 + $0x1040] sm:$0xff] %vm327, 0.0
        %849 = vst.msk [vmem:[#allocation2 + $0x1048] sm:$0xff] %vm327, 0.0
        %850 = vst.msk [vmem:[#allocation2 + $0x1050] sm:$0xff] %vm327, 0.0
        %851 = vst.msk [vmem:[#allocation2 + $0x1058] sm:$0xff] %vm327, 0.0
        %852 = vst.msk [vmem:[#allocation2 + $0x1060] sm:$0xff] %vm327, 0.0
        %853 = vst.msk [vmem:[#allocation2 + $0x1068] sm:$0xff] %vm327, 0.0
        %854 = vst.msk [vmem:[#allocation2 + $0x1070] sm:$0xff] %vm327, 0.0
        %855 = vst.msk [vmem:[#allocation2 + $0x1078] sm:$0xff] %vm327, 0.0
        %856 = vst.msk [vmem:[#allocation2 + $0x1080] sm:$0xff] %vm327, 0.0
        %857 = vst.msk [vmem:[#allocation2 + $0x1088] sm:$0xff] %vm327, 0.0
        %858 = vst.msk [vmem:[#allocation2 + $0x1090] sm:$0xff] %vm327, 0.0
        %859 = vst.msk [vmem:[#allocation2 + $0x1098] sm:$0xff] %vm327, 0.0
        %860 = vst.msk [vmem:[#allocation2 + $0x10a0] sm:$0xff] %vm327, 0.0
        %861 = vst.msk [vmem:[#allocation2 + $0x10a8] sm:$0xff] %vm327, 0.0
        %862 = vst.msk [vmem:[#allocation2 + $0x10b0] sm:$0xff] %vm327, 0.0
        %863 = vst.msk [vmem:[#allocation2 + $0x10b8] sm:$0xff] %vm327, 0.0
        %864 = vst.msk [vmem:[#allocation2 + $0x10c0] sm:$0xff] %vm327, 0.0
        %865 = vst.msk [vmem:[#allocation2 + $0x10c8] sm:$0xff] %vm327, 0.0
        %866 = vst.msk [vmem:[#allocation2 + $0x10d0] sm:$0xff] %vm327, 0.0
        %867 = vst.msk [vmem:[#allocation2 + $0x10d8] sm:$0xff] %vm327, 0.0
        %868 = vst.msk [vmem:[#allocation2 + $0x10e0] sm:$0xff] %vm327, 0.0
        %869 = vst.msk [vmem:[#allocation2 + $0x10e8] sm:$0xff] %vm327, 0.0
        %870 = vst.msk [vmem:[#allocation2 + $0x10f0] sm:$0xff] %vm327, 0.0
        %871 = vst.msk [vmem:[#allocation2 + $0x10f8] sm:$0xff] %vm327, 0.0
        %872 = vst.msk [vmem:[#allocation2 + $0x1100] sm:$0xff] %vm327, 0.0
        %873 = vst.msk [vmem:[#allocation2 + $0x1108] sm:$0xff] %vm327, 0.0
        %874 = vst.msk [vmem:[#allocation2 + $0x1110] sm:$0xff] %vm327, 0.0
        %875 = vst.msk [vmem:[#allocation2 + $0x1118] sm:$0xff] %vm327, 0.0
        %876 = vst.msk [vmem:[#allocation2 + $0x1120] sm:$0xff] %vm327, 0.0
        %877 = vst.msk [vmem:[#allocation2 + $0x1128] sm:$0xff] %vm327, 0.0
        %878 = vst.msk [vmem:[#allocation2 + $0x1130] sm:$0xff] %vm327, 0.0
        %879 = vst.msk [vmem:[#allocation2 + $0x1138] sm:$0xff] %vm327, 0.0
        %880 = vst.msk [vmem:[#allocation2 + $0x1140] sm:$0xff] %vm327, 0.0
        %881 = vst.msk [vmem:[#allocation2 + $0x1148] sm:$0xff] %vm327, 0.0
        %882 = vst.msk [vmem:[#allocation2 + $0x1150] sm:$0xff] %vm327, 0.0
        %883 = vst.msk [vmem:[#allocation2 + $0x1158] sm:$0xff] %vm327, 0.0
        %884 = vst.msk [vmem:[#allocation2 + $0x1160] sm:$0xff] %vm327, 0.0
        %885 = vst.msk [vmem:[#allocation2 + $0x1168] sm:$0xff] %vm327, 0.0
        %886 = vst.msk [vmem:[#allocation2 + $0x1170] sm:$0xff] %vm327, 0.0
        %887 = vst.msk [vmem:[#allocation2 + $0x1178] sm:$0xff] %vm327, 0.0
        %888 = vst.msk [vmem:[#allocation2 + $0x1180] sm:$0xff] %vm327, 0.0
        %889 = vst.msk [vmem:[#allocation2 + $0x1188] sm:$0xff] %vm327, 0.0
        %890 = vst.msk [vmem:[#allocation2 + $0x1190] sm:$0xff] %vm327, 0.0
        %891 = vst.msk [vmem:[#allocation2 + $0x1198] sm:$0xff] %vm327, 0.0
        %892 = vst.msk [vmem:[#allocation2 + $0x11a0] sm:$0xff] %vm327, 0.0
        %893 = vst.msk [vmem:[#allocation2 + $0x11a8] sm:$0xff] %vm327, 0.0
        %894 = vst.msk [vmem:[#allocation2 + $0x11b0] sm:$0xff] %vm327, 0.0
        %895 = vst.msk [vmem:[#allocation2 + $0x11b8] sm:$0xff] %vm327, 0.0
        %896 = vst.msk [vmem:[#allocation2 + $0x11c0] sm:$0xff] %vm327, 0.0
        %897 = vst.msk [vmem:[#allocation2 + $0x11c8] sm:$0xff] %vm327, 0.0
        %898 = vst.msk [vmem:[#allocation2 + $0x11d0] sm:$0xff] %vm327, 0.0
        %899 = vst.msk [vmem:[#allocation2 + $0x11d8] sm:$0xff] %vm327, 0.0
        %900 = vst.msk [vmem:[#allocation2 + $0x11e0] sm:$0xff] %vm327, 0.0
        %901 = vst.msk [vmem:[#allocation2 + $0x11e8] sm:$0xff] %vm327, 0.0
        %902 = vst.msk [vmem:[#allocation2 + $0x11f0] sm:$0xff] %vm327, 0.0
        %903 = vst.msk [vmem:[#allocation2 + $0x11f8] sm:$0xff] %vm327, 0.0
        %904 = vst.msk [vmem:[#allocation2 + $0x1200] sm:$0xff] %vm327, 0.0
        %905 = vst.msk [vmem:[#allocation2 + $0x1208] sm:$0xff] %vm327, 0.0
        %906 = vst.msk [vmem:[#allocation2 + $0x1210] sm:$0xff] %vm327, 0.0
        %907 = vst.msk [vmem:[#allocation2 + $0x1218] sm:$0xff] %vm327, 0.0
        %908 = vst.msk [vmem:[#allocation2 + $0x1220] sm:$0xff] %vm327, 0.0
        %909 = vst.msk [vmem:[#allocation2 + $0x1228] sm:$0xff] %vm327, 0.0
        %910 = vst.msk [vmem:[#allocation2 + $0x1230] sm:$0xff] %vm327, 0.0
        %911 = vst.msk [vmem:[#allocation2 + $0x1238] sm:$0xff] %vm327, 0.0
        %912 = vst.msk [vmem:[#allocation2 + $0x1240] sm:$0xff] %vm327, 0.0
        %913 = vst.msk [vmem:[#allocation2 + $0x1248] sm:$0xff] %vm327, 0.0
        %914 = vst.msk [vmem:[#allocation2 + $0x1250] sm:$0xff] %vm327, 0.0
        %915 = vst.msk [vmem:[#allocation2 + $0x1258] sm:$0xff] %vm327, 0.0
        %916 = vst.msk [vmem:[#allocation2 + $0x1260] sm:$0xff] %vm327, 0.0
        %917 = vst.msk [vmem:[#allocation2 + $0x1268] sm:$0xff] %vm327, 0.0
        %918 = vst.msk [vmem:[#allocation2 + $0x1270] sm:$0xff] %vm327, 0.0
        %919 = vst.msk [vmem:[#allocation2 + $0x1278] sm:$0xff] %vm327, 0.0
        %920 = vst.msk [vmem:[#allocation2 + $0x1280] sm:$0xff] %vm327, 0.0
        %921 = vst.msk [vmem:[#allocation2 + $0x1288] sm:$0xff] %vm327, 0.0
        %922 = vst.msk [vmem:[#allocation2 + $0x1290] sm:$0xff] %vm327, 0.0
        %923 = vst.msk [vmem:[#allocation2 + $0x1298] sm:$0xff] %vm327, 0.0
        %924 = vst.msk [vmem:[#allocation2 + $0x12a0] sm:$0xff] %vm327, 0.0
        %925 = vst.msk [vmem:[#allocation2 + $0x12a8] sm:$0xff] %vm327, 0.0
        %926 = vst.msk [vmem:[#allocation2 + $0x12b0] sm:$0xff] %vm327, 0.0
        %927 = vst.msk [vmem:[#allocation2 + $0x12b8] sm:$0xff] %vm327, 0.0
        %928 = vst.msk [vmem:[#allocation2 + $0x12c0] sm:$0xff] %vm327, 0.0
        %929 = vst.msk [vmem:[#allocation2 + $0x12c8] sm:$0xff] %vm327, 0.0
        %930 = vst.msk [vmem:[#allocation2 + $0x12d0] sm:$0xff] %vm327, 0.0
        %931 = vst.msk [vmem:[#allocation2 + $0x12d8] sm:$0xff] %vm327, 0.0
        %932 = vst.msk [vmem:[#allocation2 + $0x12e0] sm:$0xff] %vm327, 0.0
        %933 = vst.msk [vmem:[#allocation2 + $0x12e8] sm:$0xff] %vm327, 0.0
        %934 = vst.msk [vmem:[#allocation2 + $0x12f0] sm:$0xff] %vm327, 0.0
        %935 = vst.msk [vmem:[#allocation2 + $0x12f8] sm:$0xff] %vm327, 0.0
        %936 = vst.msk [vmem:[#allocation2 + $0x1300] sm:$0xff] %vm327, 0.0
        %937 = vst.msk [vmem:[#allocation2 + $0x1308] sm:$0xff] %vm327, 0.0
        %938 = vst.msk [vmem:[#allocation2 + $0x1310] sm:$0xff] %vm327, 0.0
        %939 = vst.msk [vmem:[#allocation2 + $0x1318] sm:$0xff] %vm327, 0.0
        %940 = vst.msk [vmem:[#allocation2 + $0x1320] sm:$0xff] %vm327, 0.0
        %941 = vst.msk [vmem:[#allocation2 + $0x1328] sm:$0xff] %vm327, 0.0
        %942 = vst.msk [vmem:[#allocation2 + $0x1330] sm:$0xff] %vm327, 0.0
        %943 = vst.msk [vmem:[#allocation2 + $0x1338] sm:$0xff] %vm327, 0.0
        %944 = vst.msk [vmem:[#allocation2 + $0x1340] sm:$0xff] %vm327, 0.0
        %945 = vst.msk [vmem:[#allocation2 + $0x1348] sm:$0xff] %vm327, 0.0
        %946 = vst.msk [vmem:[#allocation2 + $0x1350] sm:$0xff] %vm327, 0.0
        %947 = vst.msk [vmem:[#allocation2 + $0x1358] sm:$0xff] %vm327, 0.0
        %948 = vst.msk [vmem:[#allocation2 + $0x1360] sm:$0xff] %vm327, 0.0
        %949 = vst.msk [vmem:[#allocation2 + $0x1368] sm:$0xff] %vm327, 0.0
        %950 = vst.msk [vmem:[#allocation2 + $0x1370] sm:$0xff] %vm327, 0.0
        %951 = vst.msk [vmem:[#allocation2 + $0x1378] sm:$0xff] %vm327, 0.0
        %952 = vst.msk [vmem:[#allocation2 + $0x1380] sm:$0xff] %vm327, 0.0
        %953 = vst.msk [vmem:[#allocation2 + $0x1388] sm:$0xff] %vm327, 0.0
        %954 = vst.msk [vmem:[#allocation2 + $0x1390] sm:$0xff] %vm327, 0.0
        %955 = vst.msk [vmem:[#allocation2 + $0x1398] sm:$0xff] %vm327, 0.0
        %956 = vst.msk [vmem:[#allocation2 + $0x13a0] sm:$0xff] %vm327, 0.0
        %957 = vst.msk [vmem:[#allocation2 + $0x13a8] sm:$0xff] %vm327, 0.0
        %958 = vst.msk [vmem:[#allocation2 + $0x13b0] sm:$0xff] %vm327, 0.0
        %959 = vst.msk [vmem:[#allocation2 + $0x13b8] sm:$0xff] %vm327, 0.0
        %960 = vst.msk [vmem:[#allocation2 + $0x13c0] sm:$0xff] %vm327, 0.0
        %961 = vst.msk [vmem:[#allocation2 + $0x13c8] sm:$0xff] %vm327, 0.0
        %962 = vst.msk [vmem:[#allocation2 + $0x13d0] sm:$0xff] %vm327, 0.0
        %963 = vst.msk [vmem:[#allocation2 + $0x13d8] sm:$0xff] %vm327, 0.0
        %964 = vst.msk [vmem:[#allocation2 + $0x13e0] sm:$0xff] %vm327, 0.0
        %965 = vst.msk [vmem:[#allocation2 + $0x13e8] sm:$0xff] %vm327, 0.0
        %966 = vst.msk [vmem:[#allocation2 + $0x13f0] sm:$0xff] %vm327, 0.0
        %967 = vst.msk [vmem:[#allocation2 + $0x13f8] sm:$0xff] %vm327, 0.0
        %968 = vst.msk [vmem:[#allocation2 + $0x1400] sm:$0xff] %vm327, 0.0
        %969 = vst.msk [vmem:[#allocation2 + $0x1408] sm:$0xff] %vm327, 0.0
        %970 = vst.msk [vmem:[#allocation2 + $0x1410] sm:$0xff] %vm327, 0.0
        %971 = vst.msk [vmem:[#allocation2 + $0x1418] sm:$0xff] %vm327, 0.0
        %972 = vst.msk [vmem:[#allocation2 + $0x1420] sm:$0xff] %vm327, 0.0
        %973 = vst.msk [vmem:[#allocation2 + $0x1428] sm:$0xff] %vm327, 0.0
        %974 = vst.msk [vmem:[#allocation2 + $0x1430] sm:$0xff] %vm327, 0.0
        %975 = vst.msk [vmem:[#allocation2 + $0x1438] sm:$0xff] %vm327, 0.0
        %976 = vst.msk [vmem:[#allocation2 + $0x1440] sm:$0xff] %vm327, 0.0
        %977 = vst.msk [vmem:[#allocation2 + $0x1448] sm:$0xff] %vm327, 0.0
        %978 = vst.msk [vmem:[#allocation2 + $0x1450] sm:$0xff] %vm327, 0.0
        %979 = vst.msk [vmem:[#allocation2 + $0x1458] sm:$0xff] %vm327, 0.0
        %980 = vst.msk [vmem:[#allocation2 + $0x1460] sm:$0xff] %vm327, 0.0
        %981 = vst.msk [vmem:[#allocation2 + $0x1468] sm:$0xff] %vm327, 0.0
        %982 = vst.msk [vmem:[#allocation2 + $0x1470] sm:$0xff] %vm327, 0.0
        %983 = vst.msk [vmem:[#allocation2 + $0x1478] sm:$0xff] %vm327, 0.0
        %984 = vst.msk [vmem:[#allocation2 + $0x1480] sm:$0xff] %vm327, 0.0
        %985 = vst.msk [vmem:[#allocation2 + $0x1488] sm:$0xff] %vm327, 0.0
        %986 = vst.msk [vmem:[#allocation2 + $0x1490] sm:$0xff] %vm327, 0.0
        %987 = vst.msk [vmem:[#allocation2 + $0x1498] sm:$0xff] %vm327, 0.0
        %988 = vst.msk [vmem:[#allocation2 + $0x14a0] sm:$0xff] %vm327, 0.0
        %989 = vst.msk [vmem:[#allocation2 + $0x14a8] sm:$0xff] %vm327, 0.0
        %990 = vst.msk [vmem:[#allocation2 + $0x14b0] sm:$0xff] %vm327, 0.0
        %991 = vst.msk [vmem:[#allocation2 + $0x14b8] sm:$0xff] %vm327, 0.0
        %992 = vst.msk [vmem:[#allocation2 + $0x14c0] sm:$0xff] %vm327, 0.0
        %993 = vst.msk [vmem:[#allocation2 + $0x14c8] sm:$0xff] %vm327, 0.0
        %994 = vst.msk [vmem:[#allocation2 + $0x14d0] sm:$0xff] %vm327, 0.0
        %995 = vst.msk [vmem:[#allocation2 + $0x14d8] sm:$0xff] %vm327, 0.0
        %996 = vst.msk [vmem:[#allocation2 + $0x14e0] sm:$0xff] %vm327, 0.0
        %997 = vst.msk [vmem:[#allocation2 + $0x14e8] sm:$0xff] %vm327, 0.0
        %998 = vst.msk [vmem:[#allocation2 + $0x14f0] sm:$0xff] %vm327, 0.0
        %999 = vst.msk [vmem:[#allocation2 + $0x14f8] sm:$0xff] %vm327, 0.0
        %1000 = vst.msk [vmem:[#allocation2 + $0x1500] sm:$0xff] %vm327, 0.0
        %1001 = vst.msk [vmem:[#allocation2 + $0x1508] sm:$0xff] %vm327, 0.0
        %1002 = vst.msk [vmem:[#allocation2 + $0x1510] sm:$0xff] %vm327, 0.0
        %1003 = vst.msk [vmem:[#allocation2 + $0x1518] sm:$0xff] %vm327, 0.0
        %1004 = vst.msk [vmem:[#allocation2 + $0x1520] sm:$0xff] %vm327, 0.0
        %1005 = vst.msk [vmem:[#allocation2 + $0x1528] sm:$0xff] %vm327, 0.0
        %1006 = vst.msk [vmem:[#allocation2 + $0x1530] sm:$0xff] %vm327, 0.0
        %1007 = vst.msk [vmem:[#allocation2 + $0x1538] sm:$0xff] %vm327, 0.0
        %1008 = vst.msk [vmem:[#allocation2 + $0x1540] sm:$0xff] %vm327, 0.0
        %1009 = vst.msk [vmem:[#allocation2 + $0x1548] sm:$0xff] %vm327, 0.0
        %1010 = vst.msk [vmem:[#allocation2 + $0x1550] sm:$0xff] %vm327, 0.0
        %1011 = vst.msk [vmem:[#allocation2 + $0x1558] sm:$0xff] %vm327, 0.0
        %1012 = vst.msk [vmem:[#allocation2 + $0x1560] sm:$0xff] %vm327, 0.0
        %1013 = vst.msk [vmem:[#allocation2 + $0x1568] sm:$0xff] %vm327, 0.0
        %1014 = vst.msk [vmem:[#allocation2 + $0x1570] sm:$0xff] %vm327, 0.0
        %1015 = vst.msk [vmem:[#allocation2 + $0x1578] sm:$0xff] %vm327, 0.0
        %1016 = vst.msk [vmem:[#allocation2 + $0x1580] sm:$0xff] %vm327, 0.0
        %1017 = vst.msk [vmem:[#allocation2 + $0x1588] sm:$0xff] %vm327, 0.0
        %1018 = vst.msk [vmem:[#allocation2 + $0x1590] sm:$0xff] %vm327, 0.0
        %1019 = vst.msk [vmem:[#allocation2 + $0x1598] sm:$0xff] %vm327, 0.0
        %1020 = vst.msk [vmem:[#allocation2 + $0x15a0] sm:$0xff] %vm327, 0.0
        %1021 = vst.msk [vmem:[#allocation2 + $0x15a8] sm:$0xff] %vm327, 0.0
        %1022 = vst.msk [vmem:[#allocation2 + $0x15b0] sm:$0xff] %vm327, 0.0
        %1023 = vst.msk [vmem:[#allocation2 + $0x15b8] sm:$0xff] %vm327, 0.0
        %1024 = vst.msk [vmem:[#allocation2 + $0x15c0] sm:$0xff] %vm327, 0.0
        %1025 = vst.msk [vmem:[#allocation2 + $0x15c8] sm:$0xff] %vm327, 0.0
        %1026 = vst.msk [vmem:[#allocation2 + $0x15d0] sm:$0xff] %vm327, 0.0
        %1027 = vst.msk [vmem:[#allocation2 + $0x15d8] sm:$0xff] %vm327, 0.0
        %1028 = vst.msk [vmem:[#allocation2 + $0x15e0] sm:$0xff] %vm327, 0.0
        %1029 = vst.msk [vmem:[#allocation2 + $0x15e8] sm:$0xff] %vm327, 0.0
        %1030 = vst.msk [vmem:[#allocation2 + $0x15f0] sm:$0xff] %vm327, 0.0
        %1031 = vst.msk [vmem:[#allocation2 + $0x15f8] sm:$0xff] %vm327, 0.0
        %1032 = vst.msk [vmem:[#allocation2 + $0x1600] sm:$0xff] %vm327, 0.0
        %1033 = vst.msk [vmem:[#allocation2 + $0x1608] sm:$0xff] %vm327, 0.0
        %1034 = vst.msk [vmem:[#allocation2 + $0x1610] sm:$0xff] %vm327, 0.0
        %1035 = vst.msk [vmem:[#allocation2 + $0x1618] sm:$0xff] %vm327, 0.0
        %1036 = vst.msk [vmem:[#allocation2 + $0x1620] sm:$0xff] %vm327, 0.0
        %1037 = vst.msk [vmem:[#allocation2 + $0x1628] sm:$0xff] %vm327, 0.0
        %1038 = vst.msk [vmem:[#allocation2 + $0x1630] sm:$0xff] %vm327, 0.0
        %1039 = vst.msk [vmem:[#allocation2 + $0x1638] sm:$0xff] %vm327, 0.0
        %1040 = vst.msk [vmem:[#allocation2 + $0x1640] sm:$0xff] %vm327, 0.0
        %1041 = vst.msk [vmem:[#allocation2 + $0x1648] sm:$0xff] %vm327, 0.0
        %1042 = vst.msk [vmem:[#allocation2 + $0x1650] sm:$0xff] %vm327, 0.0
        %1043 = vst.msk [vmem:[#allocation2 + $0x1658] sm:$0xff] %vm327, 0.0
        %1044 = vst.msk [vmem:[#allocation2 + $0x1660] sm:$0xff] %vm327, 0.0
        %1045 = vst.msk [vmem:[#allocation2 + $0x1668] sm:$0xff] %vm327, 0.0
        %1046 = vst.msk [vmem:[#allocation2 + $0x1670] sm:$0xff] %vm327, 0.0
        %1047 = vst.msk [vmem:[#allocation2 + $0x1678] sm:$0xff] %vm327, 0.0
        %1048 = vst.msk [vmem:[#allocation2 + $0x1680] sm:$0xff] %vm327, 0.0
        %1049 = vst.msk [vmem:[#allocation2 + $0x1688] sm:$0xff] %vm327, 0.0
        %1050 = vst.msk [vmem:[#allocation2 + $0x1690] sm:$0xff] %vm327, 0.0
        %1051 = vst.msk [vmem:[#allocation2 + $0x1698] sm:$0xff] %vm327, 0.0
        %1052 = vst.msk [vmem:[#allocation2 + $0x16a0] sm:$0xff] %vm327, 0.0
        %1053 = vst.msk [vmem:[#allocation2 + $0x16a8] sm:$0xff] %vm327, 0.0
        %1054 = vst.msk [vmem:[#allocation2 + $0x16b0] sm:$0xff] %vm327, 0.0
        %1055 = vst.msk [vmem:[#allocation2 + $0x16b8] sm:$0xff] %vm327, 0.0
        %1056 = vst.msk [vmem:[#allocation2 + $0x16c0] sm:$0xff] %vm327, 0.0
        %1057 = vst.msk [vmem:[#allocation2 + $0x16c8] sm:$0xff] %vm327, 0.0
        %1058 = vst.msk [vmem:[#allocation2 + $0x16d0] sm:$0xff] %vm327, 0.0
        %1059 = vst.msk [vmem:[#allocation2 + $0x16d8] sm:$0xff] %vm327, 0.0
        %1060 = vst.msk [vmem:[#allocation2 + $0x16e0] sm:$0xff] %vm327, 0.0
        %1061 = vst.msk [vmem:[#allocation2 + $0x16e8] sm:$0xff] %vm327, 0.0
        %1062 = vst.msk [vmem:[#allocation2 + $0x16f0] sm:$0xff] %vm327, 0.0
        %1063 = vst.msk [vmem:[#allocation2 + $0x16f8] sm:$0xff] %vm327, 0.0
        %1064 = vst.msk [vmem:[#allocation2 + $0x1700] sm:$0xff] %vm327, 0.0
        %1065 = vst.msk [vmem:[#allocation2 + $0x1708] sm:$0xff] %vm327, 0.0
        %1066 = vst.msk [vmem:[#allocation2 + $0x1710] sm:$0xff] %vm327, 0.0
        %1067 = vst.msk [vmem:[#allocation2 + $0x1718] sm:$0xff] %vm327, 0.0
        %1068 = vst.msk [vmem:[#allocation2 + $0x1720] sm:$0xff] %vm327, 0.0
        %1069 = vst.msk [vmem:[#allocation2 + $0x1728] sm:$0xff] %vm327, 0.0
        %1070 = vst.msk [vmem:[#allocation2 + $0x1730] sm:$0xff] %vm327, 0.0
        %1071 = vst.msk [vmem:[#allocation2 + $0x1738] sm:$0xff] %vm327, 0.0
        %1072 = vst.msk [vmem:[#allocation2 + $0x1740] sm:$0xff] %vm327, 0.0
        %1073 = vst.msk [vmem:[#allocation2 + $0x1748] sm:$0xff] %vm327, 0.0
        %1074 = vst.msk [vmem:[#allocation2 + $0x1750] sm:$0xff] %vm327, 0.0
        %1075 = vst.msk [vmem:[#allocation2 + $0x1758] sm:$0xff] %vm327, 0.0
        %1076 = vst.msk [vmem:[#allocation2 + $0x1760] sm:$0xff] %vm327, 0.0
        %1077 = vst.msk [vmem:[#allocation2 + $0x1768] sm:$0xff] %vm327, 0.0
        %1078 = vst.msk [vmem:[#allocation2 + $0x1770] sm:$0xff] %vm327, 0.0
        %1079 = vst.msk [vmem:[#allocation2 + $0x1778] sm:$0xff] %vm327, 0.0
        %1080 = vst.msk [vmem:[#allocation2 + $0x1780] sm:$0xff] %vm327, 0.0
        %1081 = vst.msk [vmem:[#allocation2 + $0x1788] sm:$0xff] %vm327, 0.0
        %1082 = vst.msk [vmem:[#allocation2 + $0x1790] sm:$0xff] %vm327, 0.0
        %1083 = vst.msk [vmem:[#allocation2 + $0x1798] sm:$0xff] %vm327, 0.0
        %1084 = vst.msk [vmem:[#allocation2 + $0x17a0] sm:$0xff] %vm327, 0.0
        %1085 = vst.msk [vmem:[#allocation2 + $0x17a8] sm:$0xff] %vm327, 0.0
        %1086 = vst.msk [vmem:[#allocation2 + $0x17b0] sm:$0xff] %vm327, 0.0
        %1087 = vst.msk [vmem:[#allocation2 + $0x17b8] sm:$0xff] %vm327, 0.0
        loop: start=0, step=1, limit=16
        $region69: #{decoder_forward.1} parent=47 // loop_pre_header
          _
        $region70: #{decoder_forward.1} parent=47 // loop_header
          %s1089 = sphi 0, %s1093
          %p1090 = scmp.ge.s32.totalorder %s1089, 16
        $region71: #{decoder_forward.1} parent=47 // loop_header_branch
          %1092 = sbr.rel (%p1090) target = $region75
        $region72: #{decoder_forward.1} parent=47 // loop_body
          %s1094 = smul.u32 %s1089, 64
          %s1095 = scalar_lea.vmem [#allocation8], %s1094
          %v1096 = vld [vmem:[%s1095] sm:$0xff]
          %v1097 = vld [vmem:[%s1095 + $0x8] sm:$0xff]
          %v1098 = vld [vmem:[%s1095 + $0x10] sm:$0xff]
          %v1099 = vld [vmem:[%s1095 + $0x18] sm:$0xff]
          %v1100 = vld [vmem:[%s1095 + $0x20] sm:$0xff]
          %v1101 = vld [vmem:[%s1095 + $0x28] sm:$0xff]
          %v1102 = vld [vmem:[%s1095 + $0x30] sm:$0xff]
          %v1103 = vld [vmem:[%s1095 + $0x38] sm:$0xff]
          %s1104 = smul.u32 %s22, 128
          %s1105 = sld [smem:[#allocation4 + %s1104]]
          %s1106 = scalar_lea.vmem [#allocation7], %s1094
          %v1107 = vld [vmem:[%s1106] sm:$0xff]
          %v1108 = vld [vmem:[%s1106 + $0x8] sm:$0xff]
          %v1109 = vld [vmem:[%s1106 + $0x10] sm:$0xff]
          %v1110 = vld [vmem:[%s1106 + $0x18] sm:$0xff]
          %v1111 = vld [vmem:[%s1106 + $0x20] sm:$0xff]
          %v1112 = vld [vmem:[%s1106 + $0x28] sm:$0xff]
          %v1113 = vld [vmem:[%s1106 + $0x30] sm:$0xff]
          %v1114 = vld [vmem:[%s1106 + $0x38] sm:$0xff]
          %v1115 = vstv %s1105
          %v1116 = vmul.f32 %v1115, %v1107
          %v1117 = vmul.f32 %v1115, %v1108
          %v1118 = vmul.f32 %v1115, %v1109
          %v1119 = vmul.f32 %v1115, %v1110
          %v1120 = vmul.f32 %v1115, %v1111
          %v1121 = vmul.f32 %v1115, %v1112
          %v1122 = vmul.f32 %v1115, %v1113
          %v1123 = vmul.f32 %v1115, %v1114
          %v1124 = vadd.f32 %v1096, %v1116
          %v1125 = vadd.f32 %v1097, %v1117
          %v1126 = vadd.f32 %v1098, %v1118
          %v1127 = vadd.f32 %v1099, %v1119
          %v1128 = vadd.f32 %v1100, %v1120
          %v1129 = vadd.f32 %v1101, %v1121
          %v1130 = vadd.f32 %v1102, %v1122
          %v1131 = vadd.f32 %v1103, %v1123
          %s1132 = sadd.s32 %s1104, 1
          %s1133 = sld [smem:[#allocation4 + %s1132]]
          %s1134 = sadd.s32 %s1094, 1024
          %s1135 = scalar_lea.vmem [#allocation7], %s1134
          %v1136 = vld [vmem:[%s1135] sm:$0xff]
          %v1137 = vld [vmem:[%s1135 + $0x8] sm:$0xff]
          %v1138 = vld [vmem:[%s1135 + $0x10] sm:$0xff]
          %v1139 = vld [vmem:[%s1135 + $0x18] sm:$0xff]
          %v1140 = vld [vmem:[%s1135 + $0x20] sm:$0xff]
          %v1141 = vld [vmem:[%s1135 + $0x28] sm:$0xff]
          %v1142 = vld [vmem:[%s1135 + $0x30] sm:$0xff]
          %v1143 = vld [vmem:[%s1135 + $0x38] sm:$0xff]
          %v1144 = vstv %s1133
          %v1145 = vmul.f32 %v1144, %v1136
          %v1146 = vmul.f32 %v1144, %v1137
          %v1147 = vmul.f32 %v1144, %v1138
          %v1148 = vmul.f32 %v1144, %v1139
          %v1149 = vmul.f32 %v1144, %v1140
          %v1150 = vmul.f32 %v1144, %v1141
          %v1151 = vmul.f32 %v1144, %v1142
          %v1152 = vmul.f32 %v1144, %v1143
          %v1153 = vadd.f32 %v1124, %v1145
          %v1154 = vadd.f32 %v1125, %v1146
          %v1155 = vadd.f32 %v1126, %v1147
          %v1156 = vadd.f32 %v1127, %v1148
          %v1157 = vadd.f32 %v1128, %v1149
          %v1158 = vadd.f32 %v1129, %v1150
          %v1159 = vadd.f32 %v1130, %v1151
          %v1160 = vadd.f32 %v1131, %v1152
          %s1161 = sadd.s32 %s1104, 2
          %s1162 = sld [smem:[#allocation4 + %s1161]]
          %s1163 = sadd.s32 %s1094, 2048
          %s1164 = scalar_lea.vmem [#allocation7], %s1163
          %v1165 = vld [vmem:[%s1164] sm:$0xff]
          %v1166 = vld [vmem:[%s1164 + $0x8] sm:$0xff]
          %v1167 = vld [vmem:[%s1164 + $0x10] sm:$0xff]
          %v1168 = vld [vmem:[%s1164 + $0x18] sm:$0xff]
          %v1169 = vld [vmem:[%s1164 + $0x20] sm:$0xff]
          %v1170 = vld [vmem:[%s1164 + $0x28] sm:$0xff]
          %v1171 = vld [vmem:[%s1164 + $0x30] sm:$0xff]
          %v1172 = vld [vmem:[%s1164 + $0x38] sm:$0xff]
          %v1173 = vstv %s1162
          %v1174 = vmul.f32 %v1173, %v1165
          %v1175 = vmul.f32 %v1173, %v1166
          %v1176 = vmul.f32 %v1173, %v1167
          %v1177 = vmul.f32 %v1173, %v1168
          %v1178 = vmul.f32 %v1173, %v1169
          %v1179 = vmul.f32 %v1173, %v1170
          %v1180 = vmul.f32 %v1173, %v1171
          %v1181 = vmul.f32 %v1173, %v1172
          %v1182 = vadd.f32 %v1153, %v1174
          %v1183 = vadd.f32 %v1154, %v1175
          %v1184 = vadd.f32 %v1155, %v1176
          %v1185 = vadd.f32 %v1156, %v1177
          %v1186 = vadd.f32 %v1157, %v1178
          %v1187 = vadd.f32 %v1158, %v1179
          %v1188 = vadd.f32 %v1159, %v1180
          %v1189 = vadd.f32 %v1160, %v1181
          %s1190 = sadd.s32 %s1104, 3
          %s1191 = sld [smem:[#allocation4 + %s1190]]
          %s1192 = sadd.s32 %s1094, 3072
          %s1193 = scalar_lea.vmem [#allocation7], %s1192
          %v1194 = vld [vmem:[%s1193] sm:$0xff]
          %v1195 = vld [vmem:[%s1193 + $0x8] sm:$0xff]
          %v1196 = vld [vmem:[%s1193 + $0x10] sm:$0xff]
          %v1197 = vld [vmem:[%s1193 + $0x18] sm:$0xff]
          %v1198 = vld [vmem:[%s1193 + $0x20] sm:$0xff]
          %v1199 = vld [vmem:[%s1193 + $0x28] sm:$0xff]
          %v1200 = vld [vmem:[%s1193 + $0x30] sm:$0xff]
          %v1201 = vld [vmem:[%s1193 + $0x38] sm:$0xff]
          %v1202 = vstv %s1191
          %v1203 = vmul.f32 %v1202, %v1194
          %v1204 = vmul.f32 %v1202, %v1195
          %v1205 = vmul.f32 %v1202, %v1196
          %v1206 = vmul.f32 %v1202, %v1197
          %v1207 = vmul.f32 %v1202, %v1198
          %v1208 = vmul.f32 %v1202, %v1199
          %v1209 = vmul.f32 %v1202, %v1200
          %v1210 = vmul.f32 %v1202, %v1201
          %v1211 = vadd.f32 %v1182, %v1203
          %v1212 = vadd.f32 %v1183, %v1204
          %v1213 = vadd.f32 %v1184, %v1205
          %v1214 = vadd.f32 %v1185, %v1206
          %v1215 = vadd.f32 %v1186, %v1207
          %v1216 = vadd.f32 %v1187, %v1208
          %v1217 = vadd.f32 %v1188, %v1209
          %v1218 = vadd.f32 %v1189, %v1210
          %s1219 = sadd.s32 %s1104, 4
          %s1220 = sld [smem:[#allocation4 + %s1219]]
          %s1221 = sadd.s32 %s1094, 4096
          %s1222 = scalar_lea.vmem [#allocation7], %s1221
          %v1223 = vld [vmem:[%s1222] sm:$0xff]
          %v1224 = vld [vmem:[%s1222 + $0x8] sm:$0xff]
          %v1225 = vld [vmem:[%s1222 + $0x10] sm:$0xff]
          %v1226 = vld [vmem:[%s1222 + $0x18] sm:$0xff]
          %v1227 = vld [vmem:[%s1222 + $0x20] sm:$0xff]
          %v1228 = vld [vmem:[%s1222 + $0x28] sm:$0xff]
          %v1229 = vld [vmem:[%s1222 + $0x30] sm:$0xff]
          %v1230 = vld [vmem:[%s1222 + $0x38] sm:$0xff]
          %v1231 = vstv %s1220
          %v1232 = vmul.f32 %v1231, %v1223
          %v1233 = vmul.f32 %v1231, %v1224
          %v1234 = vmul.f32 %v1231, %v1225
          %v1235 = vmul.f32 %v1231, %v1226
          %v1236 = vmul.f32 %v1231, %v1227
          %v1237 = vmul.f32 %v1231, %v1228
          %v1238 = vmul.f32 %v1231, %v1229
          %v1239 = vmul.f32 %v1231, %v1230
          %v1240 = vadd.f32 %v1211, %v1232
          %v1241 = vadd.f32 %v1212, %v1233
          %v1242 = vadd.f32 %v1213, %v1234
          %v1243 = vadd.f32 %v1214, %v1235
          %v1244 = vadd.f32 %v1215, %v1236
          %v1245 = vadd.f32 %v1216, %v1237
          %v1246 = vadd.f32 %v1217, %v1238
          %v1247 = vadd.f32 %v1218, %v1239
          %s1248 = sadd.s32 %s1104, 5
          %s1249 = sld [smem:[#allocation4 + %s1248]]
          %s1250 = sadd.s32 %s1094, 5120
          %s1251 = scalar_lea.vmem [#allocation7], %s1250
          %v1252 = vld [vmem:[%s1251] sm:$0xff]
          %v1253 = vld [vmem:[%s1251 + $0x8] sm:$0xff]
          %v1254 = vld [vmem:[%s1251 + $0x10] sm:$0xff]
          %v1255 = vld [vmem:[%s1251 + $0x18] sm:$0xff]
          %v1256 = vld [vmem:[%s1251 + $0x20] sm:$0xff]
          %v1257 = vld [vmem:[%s1251 + $0x28] sm:$0xff]
          %v1258 = vld [vmem:[%s1251 + $0x30] sm:$0xff]
          %v1259 = vld [vmem:[%s1251 + $0x38] sm:$0xff]
          %v1260 = vstv %s1249
          %v1261 = vmul.f32 %v1260, %v1252
          %v1262 = vmul.f32 %v1260, %v1253
          %v1263 = vmul.f32 %v1260, %v1254
          %v1264 = vmul.f32 %v1260, %v1255
          %v1265 = vmul.f32 %v1260, %v1256
          %v1266 = vmul.f32 %v1260, %v1257
          %v1267 = vmul.f32 %v1260, %v1258
          %v1268 = vmul.f32 %v1260, %v1259
          %v1269 = vadd.f32 %v1240, %v1261
          %v1270 = vadd.f32 %v1241, %v1262
          %v1271 = vadd.f32 %v1242, %v1263
          %v1272 = vadd.f32 %v1243, %v1264
          %v1273 = vadd.f32 %v1244, %v1265
          %v1274 = vadd.f32 %v1245, %v1266
          %v1275 = vadd.f32 %v1246, %v1267
          %v1276 = vadd.f32 %v1247, %v1268
          %s1277 = sadd.s32 %s1104, 6
          %s1278 = sld [smem:[#allocation4 + %s1277]]
          %s1279 = sadd.s32 %s1094, 6144
          %s1280 = scalar_lea.vmem [#allocation7], %s1279
          %v1281 = vld [vmem:[%s1280] sm:$0xff]
          %v1282 = vld [vmem:[%s1280 + $0x8] sm:$0xff]
          %v1283 = vld [vmem:[%s1280 + $0x10] sm:$0xff]
          %v1284 = vld [vmem:[%s1280 + $0x18] sm:$0xff]
          %v1285 = vld [vmem:[%s1280 + $0x20] sm:$0xff]
          %v1286 = vld [vmem:[%s1280 + $0x28] sm:$0xff]
          %v1287 = vld [vmem:[%s1280 + $0x30] sm:$0xff]
          %v1288 = vld [vmem:[%s1280 + $0x38] sm:$0xff]
          %v1289 = vstv %s1278
          %v1290 = vmul.f32 %v1289, %v1281
          %v1291 = vmul.f32 %v1289, %v1282
          %v1292 = vmul.f32 %v1289, %v1283
          %v1293 = vmul.f32 %v1289, %v1284
          %v1294 = vmul.f32 %v1289, %v1285
          %v1295 = vmul.f32 %v1289, %v1286
          %v1296 = vmul.f32 %v1289, %v1287
          %v1297 = vmul.f32 %v1289, %v1288
          %v1298 = vadd.f32 %v1269, %v1290
          %v1299 = vadd.f32 %v1270, %v1291
          %v1300 = vadd.f32 %v1271, %v1292
          %v1301 = vadd.f32 %v1272, %v1293
          %v1302 = vadd.f32 %v1273, %v1294
          %v1303 = vadd.f32 %v1274, %v1295
          %v1304 = vadd.f32 %v1275, %v1296
          %v1305 = vadd.f32 %v1276, %v1297
          %s1306 = sadd.s32 %s1104, 7
          %s1307 = sld [smem:[#allocation4 + %s1306]]
          %s1308 = sadd.s32 %s1094, 7168
          %s1309 = scalar_lea.vmem [#allocation7], %s1308
          %v1310 = vld [vmem:[%s1309] sm:$0xff]
          %v1311 = vld [vmem:[%s1309 + $0x8] sm:$0xff]
          %v1312 = vld [vmem:[%s1309 + $0x10] sm:$0xff]
          %v1313 = vld [vmem:[%s1309 + $0x18] sm:$0xff]
          %v1314 = vld [vmem:[%s1309 + $0x20] sm:$0xff]
          %v1315 = vld [vmem:[%s1309 + $0x28] sm:$0xff]
          %v1316 = vld [vmem:[%s1309 + $0x30] sm:$0xff]
          %v1317 = vld [vmem:[%s1309 + $0x38] sm:$0xff]
          %v1318 = vstv %s1307
          %v1319 = vmul.f32 %v1318, %v1310
          %v1320 = vmul.f32 %v1318, %v1311
          %v1321 = vmul.f32 %v1318, %v1312
          %v1322 = vmul.f32 %v1318, %v1313
          %v1323 = vmul.f32 %v1318, %v1314
          %v1324 = vmul.f32 %v1318, %v1315
          %v1325 = vmul.f32 %v1318, %v1316
          %v1326 = vmul.f32 %v1318, %v1317
          %v1327 = vadd.f32 %v1298, %v1319
          %v1328 = vadd.f32 %v1299, %v1320
          %v1329 = vadd.f32 %v1300, %v1321
          %v1330 = vadd.f32 %v1301, %v1322
          %v1331 = vadd.f32 %v1302, %v1323
          %v1332 = vadd.f32 %v1303, %v1324
          %v1333 = vadd.f32 %v1304, %v1325
          %v1334 = vadd.f32 %v1305, %v1326
          %vm1335 = vcmp.ge.f32.partialorder %v1327, 0.0
          %vm1336 = vcmp.ge.f32.partialorder %v1328, 0.0
          %vm1337 = vcmp.ge.f32.partialorder %v1329, 0.0
          %vm1338 = vcmp.ge.f32.partialorder %v1330, 0.0
          %vm1339 = vcmp.ge.f32.partialorder %v1331, 0.0
          %vm1340 = vcmp.ge.f32.partialorder %v1332, 0.0
          %vm1341 = vcmp.ge.f32.partialorder %v1333, 0.0
          %vm1342 = vcmp.ge.f32.partialorder %v1334, 0.0
          %v1343 = vmul.f32 %v1327, 0.1
          %v1344 = vmul.f32 %v1328, 0.1
          %v1345 = vmul.f32 %v1329, 0.1
          %v1346 = vmul.f32 %v1330, 0.1
          %v1347 = vmul.f32 %v1331, 0.1
          %v1348 = vmul.f32 %v1332, 0.1
          %v1349 = vmul.f32 %v1333, 0.1
          %v1350 = vmul.f32 %v1334, 0.1
          %v1351 = vsel %vm1335, %v1327, %v1343
          %v1352 = vsel %vm1336, %v1328, %v1344
          %v1353 = vsel %vm1337, %v1329, %v1345
          %v1354 = vsel %vm1338, %v1330, %v1346
          %v1355 = vsel %vm1339, %v1331, %v1347
          %v1356 = vsel %vm1340, %v1332, %v1348
          %v1357 = vsel %vm1341, %v1333, %v1349
          %v1358 = vsel %vm1342, %v1334, %v1350
          %s1359 = smul.u32 %s1089, 4
          %s1360 = sadd.s32 %s1359, 4
          %s1361 = smul.u32 %s1360, 80
          %s1362 = scalar_lea.vmem [#allocation2], %s1361
          %1363 = vst.msk [vmem:[%s1362 + $0x8] sm:$0xff] %vm327, %v1351
          %1364 = vst.msk [vmem:[%s1362 + $0x10] sm:$0xff] %vm327, %v1352
          %1365 = vst.msk [vmem:[%s1362 + $0x18] sm:$0xff] %vm327, %v1353
          %1366 = vst.msk [vmem:[%s1362 + $0x20] sm:$0xff] %vm327, %v1354
          %1367 = vst.msk [vmem:[%s1362 + $0x28] sm:$0xff] %vm327, %v1355
          %1368 = vst.msk [vmem:[%s1362 + $0x30] sm:$0xff] %vm327, %v1356
          %1369 = vst.msk [vmem:[%s1362 + $0x38] sm:$0xff] %vm327, %v1357
          %1370 = vst.msk [vmem:[%s1362 + $0x40] sm:$0xff] %vm327, %v1358
          %s1371 = sadd.s32 %s1359, 5
          %1380 = vrot.lane.b32.xlu0 %v1351, 96
          %v1381 = vpop.permute.xlu0 %1380
          %1382 = vrot.lane.b32.xlu0 %v1352, 96
          %v1383 = vpop.permute.xlu0 %1382
          %1384 = vrot.lane.b32.xlu0 %v1353, 96
          %v1385 = vpop.permute.xlu0 %1384
          %1386 = vrot.lane.b32.xlu0 %v1354, 96
          %v1387 = vpop.permute.xlu0 %1386
          %1388 = vrot.lane.b32.xlu0 %v1355, 96
          %v1389 = vpop.permute.xlu0 %1388
          %1390 = vrot.lane.b32.xlu0 %v1356, 96
          %v1391 = vpop.permute.xlu0 %1390
          %1392 = vrot.lane.b32.xlu0 %v1357, 96
          %v1393 = vpop.permute.xlu0 %1392
          %1394 = vrot.lane.b32.xlu0 %v1358, 96
          %v1395 = vpop.permute.xlu0 %1394
          %s1404 = smul.u32 %s1371, 80
          %s1405 = scalar_lea.vmem [#allocation2], %s1404
          %1406 = vst.msk [vmem:[%s1405 + $0x8] sm:$0xff] %vm327, %v1381
          %1407 = vst.msk [vmem:[%s1405 + $0x10] sm:$0xff] %vm327, %v1383
          %1408 = vst.msk [vmem:[%s1405 + $0x18] sm:$0xff] %vm327, %v1385
          %1409 = vst.msk [vmem:[%s1405 + $0x20] sm:$0xff] %vm327, %v1387
          %1410 = vst.msk [vmem:[%s1405 + $0x28] sm:$0xff] %vm327, %v1389
          %1411 = vst.msk [vmem:[%s1405 + $0x30] sm:$0xff] %vm327, %v1391
          %1412 = vst.msk [vmem:[%s1405 + $0x38] sm:$0xff] %vm327, %v1393
          %1413 = vst.msk [vmem:[%s1405 + $0x40] sm:$0xff] %vm327, %v1395
          %s1414 = sadd.s32 %s1359, 6
          %1415 = vrot.lane.b32.xlu0 %v1351, 64
          %v1416 = vpop.permute.xlu0 %1415
          %1417 = vrot.lane.b32.xlu0 %v1352, 64
          %v1418 = vpop.permute.xlu0 %1417
          %1419 = vrot.lane.b32.xlu0 %v1353, 64
          %v1420 = vpop.permute.xlu0 %1419
          %1421 = vrot.lane.b32.xlu0 %v1354, 64
          %v1422 = vpop.permute.xlu0 %1421
          %1423 = vrot.lane.b32.xlu0 %v1355, 64
          %v1424 = vpop.permute.xlu0 %1423
          %1425 = vrot.lane.b32.xlu0 %v1356, 64
          %v1426 = vpop.permute.xlu0 %1425
          %1427 = vrot.lane.b32.xlu0 %v1357, 64
          %v1428 = vpop.permute.xlu0 %1427
          %1429 = vrot.lane.b32.xlu0 %v1358, 64
          %v1430 = vpop.permute.xlu0 %1429
          %s1439 = smul.u32 %s1414, 80
          %s1440 = scalar_lea.vmem [#allocation2], %s1439
          %1441 = vst.msk [vmem:[%s1440 + $0x8] sm:$0xff] %vm327, %v1416
          %1442 = vst.msk [vmem:[%s1440 + $0x10] sm:$0xff] %vm327, %v1418
          %1443 = vst.msk [vmem:[%s1440 + $0x18] sm:$0xff] %vm327, %v1420
          %1444 = vst.msk [vmem:[%s1440 + $0x20] sm:$0xff] %vm327, %v1422
          %1445 = vst.msk [vmem:[%s1440 + $0x28] sm:$0xff] %vm327, %v1424
          %1446 = vst.msk [vmem:[%s1440 + $0x30] sm:$0xff] %vm327, %v1426
          %1447 = vst.msk [vmem:[%s1440 + $0x38] sm:$0xff] %vm327, %v1428
          %1448 = vst.msk [vmem:[%s1440 + $0x40] sm:$0xff] %vm327, %v1430
          %s1449 = sadd.s32 %s1359, 7
          %1450 = vrot.lane.b32.xlu0 %v1351, 32
          %v1451 = vpop.permute.xlu0 %1450
          %1452 = vrot.lane.b32.xlu0 %v1352, 32
          %v1453 = vpop.permute.xlu0 %1452
          %1454 = vrot.lane.b32.xlu0 %v1353, 32
          %v1455 = vpop.permute.xlu0 %1454
          %1456 = vrot.lane.b32.xlu0 %v1354, 32
          %v1457 = vpop.permute.xlu0 %1456
          %1458 = vrot.lane.b32.xlu0 %v1355, 32
          %v1459 = vpop.permute.xlu0 %1458
          %1460 = vrot.lane.b32.xlu0 %v1356, 32
          %v1461 = vpop.permute.xlu0 %1460
          %1462 = vrot.lane.b32.xlu0 %v1357, 32
          %v1463 = vpop.permute.xlu0 %1462
          %1464 = vrot.lane.b32.xlu0 %v1358, 32
          %v1465 = vpop.permute.xlu0 %1464
          %s1474 = smul.u32 %s1449, 80
          %s1475 = scalar_lea.vmem [#allocation2], %s1474
          %1476 = vst.msk [vmem:[%s1475 + $0x8] sm:$0xff] %vm327, %v1451
          %1477 = vst.msk [vmem:[%s1475 + $0x10] sm:$0xff] %vm327, %v1453
          %1478 = vst.msk [vmem:[%s1475 + $0x18] sm:$0xff] %vm327, %v1455
          %1479 = vst.msk [vmem:[%s1475 + $0x20] sm:$0xff] %vm327, %v1457
          %1480 = vst.msk [vmem:[%s1475 + $0x28] sm:$0xff] %vm327, %v1459
          %1481 = vst.msk [vmem:[%s1475 + $0x30] sm:$0xff] %vm327, %v1461
          %1482 = vst.msk [vmem:[%s1475 + $0x38] sm:$0xff] %vm327, %v1463
          %1483 = vst.msk [vmem:[%s1475 + $0x40] sm:$0xff] %vm327, %v1465
        $region73: #{decoder_forward.1} parent=47 // loop_footer
          %s1093 = sadd.s32 1, %s1089
        $region74: #{decoder_forward.1} parent=47 // loop_footer_branch
          %1088 = sbr.rel target = $region70
        $region75: #{decoder_forward.1} parent=47 // loop_exit
          _
        loop: start=0, step=1, limit=76
        $region76: #{decoder_forward.1} parent=47 // loop_pre_header
          _
        $region77: #{decoder_forward.1} parent=47 // loop_header
          %s1485 = sphi 0, %s1489
          %p1486 = scmp.ge.s32.totalorder %s1485, 76
        $region78: #{decoder_forward.1} parent=47 // loop_header_branch
          %1488 = sbr.rel (%p1486) target = $region82
        $region79: #{decoder_forward.1} parent=47 // loop_body
          %s1490 = smul.u32 %s1485, 80
          %s1491 = scalar_lea.vmem [#allocation2], %s1490
          %v1492 = vld [vmem:[%s1491 + $0x4] sm:$0xff]
          %v1493 = vld [vmem:[%s1491 + $0xc] sm:$0xff]
          %v1494 = vld [vmem:[%s1491 + $0x14] sm:$0xff]
          %v1495 = vld [vmem:[%s1491 + $0x1c] sm:$0xff]
          %v1496 = vld [vmem:[%s1491 + $0x24] sm:$0xff]
          %v1497 = vld [vmem:[%s1491 + $0x2c] sm:$0xff]
          %v1498 = vld [vmem:[%s1491 + $0x34] sm:$0xff]
          %v1499 = vld [vmem:[%s1491 + $0x3c] sm:$0xff]
          %v1500 = vld [vmem:[%s1491 + $0x44] sm:$0xff]
          %v1501 = vld [vmem:[%s1491 + $0x5] sm:$0xff]
          %v1502 = vld [vmem:[%s1491 + $0xd] sm:$0xff]
          %v1503 = vld [vmem:[%s1491 + $0x15] sm:$0xff]
          %v1504 = vld [vmem:[%s1491 + $0x1d] sm:$0xff]
          %v1505 = vld [vmem:[%s1491 + $0x25] sm:$0xff]
          %v1506 = vld [vmem:[%s1491 + $0x2d] sm:$0xff]
          %v1507 = vld [vmem:[%s1491 + $0x35] sm:$0xff]
          %v1508 = vld [vmem:[%s1491 + $0x3d] sm:$0xff]
          %v1509 = vld [vmem:[%s1491 + $0x45] sm:$0xff]
          %v1510 = vld [vmem:[%s1491 + $0x6] sm:$0xff]
          %v1511 = vld [vmem:[%s1491 + $0xe] sm:$0xff]
          %v1512 = vld [vmem:[%s1491 + $0x16] sm:$0xff]
          %v1513 = vld [vmem:[%s1491 + $0x1e] sm:$0xff]
          %v1514 = vld [vmem:[%s1491 + $0x26] sm:$0xff]
          %v1515 = vld [vmem:[%s1491 + $0x2e] sm:$0xff]
          %v1516 = vld [vmem:[%s1491 + $0x36] sm:$0xff]
          %v1517 = vld [vmem:[%s1491 + $0x3e] sm:$0xff]
          %v1518 = vld [vmem:[%s1491 + $0x46] sm:$0xff]
          %v1519 = vld [vmem:[%s1491 + $0x7] sm:$0xff]
          %v1520 = vld [vmem:[%s1491 + $0xf] sm:$0xff]
          %v1521 = vld [vmem:[%s1491 + $0x17] sm:$0xff]
          %v1522 = vld [vmem:[%s1491 + $0x1f] sm:$0xff]
          %v1523 = vld [vmem:[%s1491 + $0x27] sm:$0xff]
          %v1524 = vld [vmem:[%s1491 + $0x2f] sm:$0xff]
          %v1525 = vld [vmem:[%s1491 + $0x37] sm:$0xff]
          %v1526 = vld [vmem:[%s1491 + $0x3f] sm:$0xff]
          %v1527 = vld [vmem:[%s1491 + $0x47] sm:$0xff]
          %v1528 = vld [vmem:[%s1491 + $0x8] sm:$0xff]
          %v1529 = vld [vmem:[%s1491 + $0x10] sm:$0xff]
          %v1530 = vld [vmem:[%s1491 + $0x18] sm:$0xff]
          %v1531 = vld [vmem:[%s1491 + $0x20] sm:$0xff]
          %v1532 = vld [vmem:[%s1491 + $0x28] sm:$0xff]
          %v1533 = vld [vmem:[%s1491 + $0x30] sm:$0xff]
          %v1534 = vld [vmem:[%s1491 + $0x38] sm:$0xff]
          %v1535 = vld [vmem:[%s1491 + $0x40] sm:$0xff]
          %v1536 = vld [vmem:[%s1491 + $0x48] sm:$0xff]
          %1546 = vrot.lane.b32.xlu0 %v1501, 32
          %v1547 = vpop.permute.xlu0 %1546
          %1548 = vrot.lane.b32.xlu0 %v1502, 32
          %v1549 = vpop.permute.xlu0 %1548
          %1550 = vrot.lane.b32.xlu0 %v1503, 32
          %v1551 = vpop.permute.xlu0 %1550
          %1552 = vrot.lane.b32.xlu0 %v1504, 32
          %v1553 = vpop.permute.xlu0 %1552
          %1554 = vrot.lane.b32.xlu0 %v1505, 32
          %v1555 = vpop.permute.xlu0 %1554
          %1556 = vrot.lane.b32.xlu0 %v1506, 32
          %v1557 = vpop.permute.xlu0 %1556
          %1558 = vrot.lane.b32.xlu0 %v1507, 32
          %v1559 = vpop.permute.xlu0 %1558
          %1560 = vrot.lane.b32.xlu0 %v1508, 32
          %v1561 = vpop.permute.xlu0 %1560
          %1562 = vrot.lane.b32.xlu0 %v1509, 32
          %v1563 = vpop.permute.xlu0 %1562
          %1582 = vrot.lane.b32.xlu0 %v1510, 64
          %v1583 = vpop.permute.xlu0 %1582
          %1584 = vrot.lane.b32.xlu0 %v1511, 64
          %v1585 = vpop.permute.xlu0 %1584
          %1586 = vrot.lane.b32.xlu0 %v1512, 64
          %v1587 = vpop.permute.xlu0 %1586
          %1588 = vrot.lane.b32.xlu0 %v1513, 64
          %v1589 = vpop.permute.xlu0 %1588
          %1590 = vrot.lane.b32.xlu0 %v1514, 64
          %v1591 = vpop.permute.xlu0 %1590
          %1592 = vrot.lane.b32.xlu0 %v1515, 64
          %v1593 = vpop.permute.xlu0 %1592
          %1594 = vrot.lane.b32.xlu0 %v1516, 64
          %v1595 = vpop.permute.xlu0 %1594
          %1596 = vrot.lane.b32.xlu0 %v1517, 64
          %v1597 = vpop.permute.xlu0 %1596
          %1598 = vrot.lane.b32.xlu0 %v1518, 64
          %v1599 = vpop.permute.xlu0 %1598
          %1618 = vrot.lane.b32.xlu0 %v1519, 96
          %v1619 = vpop.permute.xlu0 %1618
          %1620 = vrot.lane.b32.xlu0 %v1520, 96
          %v1621 = vpop.permute.xlu0 %1620
          %1622 = vrot.lane.b32.xlu0 %v1521, 96
          %v1623 = vpop.permute.xlu0 %1622
          %1624 = vrot.lane.b32.xlu0 %v1522, 96
          %v1625 = vpop.permute.xlu0 %1624
          %1626 = vrot.lane.b32.xlu0 %v1523, 96
          %v1627 = vpop.permute.xlu0 %1626
          %1628 = vrot.lane.b32.xlu0 %v1524, 96
          %v1629 = vpop.permute.xlu0 %1628
          %1630 = vrot.lane.b32.xlu0 %v1525, 96
          %v1631 = vpop.permute.xlu0 %1630
          %1632 = vrot.lane.b32.xlu0 %v1526, 96
          %v1633 = vpop.permute.xlu0 %1632
          %1634 = vrot.lane.b32.xlu0 %v1527, 96
          %v1635 = vpop.permute.xlu0 %1634
          %v1645 = vsel %vm327, %v1492, %v1547
          %v1646 = vsel %vm327, %v1493, %v1549
          %v1647 = vsel %vm327, %v1494, %v1551
          %v1648 = vsel %vm327, %v1495, %v1553
          %v1649 = vsel %vm327, %v1496, %v1555
          %v1650 = vsel %vm327, %v1497, %v1557
          %v1651 = vsel %vm327, %v1498, %v1559
          %v1652 = vsel %vm327, %v1499, %v1561
          %v1653 = vsel %vm327, %v1500, %v1563
          %vm1654 = vcmask 523264
          %v1655 = vsel %vm1654, %v1645, %v1583
          %v1656 = vsel %vm1654, %v1646, %v1585
          %v1657 = vsel %vm1654, %v1647, %v1587
          %v1658 = vsel %vm1654, %v1648, %v1589
          %v1659 = vsel %vm1654, %v1649, %v1591
          %v1660 = vsel %vm1654, %v1650, %v1593
          %v1661 = vsel %vm1654, %v1651, %v1595
          %v1662 = vsel %vm1654, %v1652, %v1597
          %v1663 = vsel %vm1654, %v1653, %v1599
          %vm1664 = vcmask 785408
          %v1665 = vsel %vm1664, %v1655, %v1619
          %v1666 = vsel %vm1664, %v1656, %v1621
          %v1667 = vsel %vm1664, %v1657, %v1623
          %v1668 = vsel %vm1664, %v1658, %v1625
          %v1669 = vsel %vm1664, %v1659, %v1627
          %v1670 = vsel %vm1664, %v1660, %v1629
          %v1671 = vsel %vm1664, %v1661, %v1631
          %v1672 = vsel %vm1664, %v1662, %v1633
          %v1673 = vsel %vm1664, %v1663, %v1635
          %v1674 = vpack.c.bf16 %v1666, %v1665
          %v1675 = vpack.c.bf16 %v1529, %v1528
          %v1676 = vpack.c.bf16 %v1668, %v1667
          %v1677 = vpack.c.bf16 %v1531, %v1530
          %v1678 = vpack.c.bf16 %v1670, %v1669
          %v1679 = vpack.c.bf16 %v1533, %v1532
          %v1680 = vpack.c.bf16 %v1672, %v1671
          %v1681 = vpack.c.bf16 %v1535, %v1534
          %v1682 = vpack.c.bf16 %v1673, %v1673
          %v1683 = vpack.c.bf16 %v1536, %v1536
          %v1694 = vunpack.c.l.b16 %v1674
          %v1695 = vunpack.c.l.b16 %v1675
          %v1696 = vunpack.c.h.b16 %v1674
          %v1697 = vunpack.c.h.b16 %v1675
          %v1698 = vunpack.c.l.b16 %v1676
          %v1699 = vunpack.c.l.b16 %v1677
          %v1700 = vunpack.c.h.b16 %v1676
          %v1701 = vunpack.c.h.b16 %v1677
          %v1702 = vunpack.c.l.b16 %v1678
          %v1703 = vunpack.c.l.b16 %v1679
          %v1704 = vunpack.c.h.b16 %v1678
          %v1705 = vunpack.c.h.b16 %v1679
          %v1706 = vunpack.c.l.b16 %v1680
          %v1707 = vunpack.c.l.b16 %v1681
          %v1708 = vunpack.c.h.b16 %v1680
          %v1709 = vunpack.c.h.b16 %v1681
          %v1710 = vunpack.c.l.b16 %v1682
          %v1711 = vunpack.c.l.b16 %v1683
          %v1712 = vpack.c.b16 %v1695, %v1694
          %v1713 = vpack.c.b16 %v1697, %v1696
          %v1714 = vpack.c.b16 %v1699, %v1698
          %v1715 = vpack.c.b16 %v1701, %v1700
          %v1716 = vpack.c.b16 %v1703, %v1702
          %v1717 = vpack.c.b16 %v1705, %v1704
          %v1718 = vpack.c.b16 %v1707, %v1706
          %v1719 = vpack.c.b16 %v1709, %v1708
          %v1720 = vpack.c.b16 %v1711, %v1710
          %s1730 = smul.u32 %s1485, 18
          %s1731 = smul.addr %s1730, 4
          %s1732 = scalar_lea.vmem [#allocation3], %s1731
          %vm1733 = vcmask 1043456
          %vm1734 = vcmask 261124
          %vm1735 = vmor %vm1734, %vm1733
          %1736 = vst.msk [vmem:[%s1732] sm:$0xff] %vm1735, %v1712
          %1737 = vst.msk [vmem:[%s1732 + $0x8] sm:$0xff] %vm1735, %v1713
          %1738 = vst.msk [vmem:[%s1732 + $0x10] sm:$0xff] %vm1735, %v1714
          %1739 = vst.msk [vmem:[%s1732 + $0x18] sm:$0xff] %vm1735, %v1715
          %1740 = vst.msk [vmem:[%s1732 + $0x20] sm:$0xff] %vm1735, %v1716
          %1741 = vst.msk [vmem:[%s1732 + $0x28] sm:$0xff] %vm1735, %v1717
          %1742 = vst.msk [vmem:[%s1732 + $0x30] sm:$0xff] %vm1735, %v1718
          %1743 = vst.msk [vmem:[%s1732 + $0x38] sm:$0xff] %vm1735, %v1719
          %1744 = vst.msk [vmem:[%s1732 + $0x40] sm:$0xff] %vm1735, %v1720
        $region80: #{decoder_forward.1} parent=47 // loop_footer
          %s1489 = sadd.s32 1, %s1485
        $region81: #{decoder_forward.1} parent=47 // loop_footer_branch
          %1484 = sbr.rel target = $region77
        $region82: #{decoder_forward.1} parent=47 // loop_exit
          _
        loop: start=0, step=1, limit=68
        $region83: #{decoder_forward.1} parent=47 // loop_pre_header
          _
        $region84: #{decoder_forward.1} parent=47 // loop_header
          %s1746 = sphi 0, %s1750
          %p1747 = scmp.ge.s32.totalorder %s1746, 68
        $region85: #{decoder_forward.1} parent=47 // loop_header_branch
          %1749 = sbr.rel (%p1747) target = $region89
        $region86: #{decoder_forward.1} parent=47 // loop_body
          %s1751 = smul.u32 %s1746, 18
          %s1752 = smul.addr %s1751, 4
          %s1753 = scalar_lea.vmem [#allocation3], %s1752
          %v1754 = vld [vmem:[%s1753] sm:$0xff]
          %v1755 = vld [vmem:[%s1753 + $0x8] sm:$0xff]
          %v1756 = vld [vmem:[%s1753 + $0x10] sm:$0xff]
          %v1757 = vld [vmem:[%s1753 + $0x18] sm:$0xff]
          %v1758 = vld [vmem:[%s1753 + $0x20] sm:$0xff]
          %v1759 = vld [vmem:[%s1753 + $0x28] sm:$0xff]
          %v1760 = vld [vmem:[%s1753 + $0x30] sm:$0xff]
          %v1761 = vld [vmem:[%s1753 + $0x38] sm:$0xff]
          %v1762 = vld [vmem:[%s1753 + $0x40] sm:$0xff]
          %v1763 = vld [vmem:[%s3] sm:$0xf]
          %v1764 = vld [vmem:[%s3 + $0x4] sm:$0xf]
          %v1765 = vld [vmem:[%s3 + $0x8] sm:$0xf]
          %v1766 = vld [vmem:[%s3 + $0xc] sm:$0xf]
          %v1767 = vld [vmem:[%s3 + $0x10] sm:$0xf]
          %v1768 = vld [vmem:[%s3 + $0x14] sm:$0xf]
          %v1769 = vld [vmem:[%s3 + $0x18] sm:$0xf]
          %v1770 = vld [vmem:[%s3 + $0x1c] sm:$0xf]
          %v1771 = vld [vmem:[%s3 + $0x20] sm:$0xf]
          %v1772 = vld [vmem:[%s3 + $0x24] sm:$0xf]
          %v1773 = vld [vmem:[%s3 + $0x28] sm:$0xf]
          %v1774 = vld [vmem:[%s3 + $0x2c] sm:$0xf]
          %v1775 = vld [vmem:[%s3 + $0x30] sm:$0xf]
          %v1776 = vld [vmem:[%s3 + $0x34] sm:$0xf]
          %v1777 = vld [vmem:[%s3 + $0x38] sm:$0xf]
          %v1778 = vld [vmem:[%s3 + $0x3c] sm:$0xf]
          %v1779 = vld [vmem:[%s3 + $0x40] sm:$0xf]
          %v1780 = vld [vmem:[%s3 + $0x44] sm:$0xf]
          %v1781 = vld [vmem:[%s3 + $0x48] sm:$0xf]
          %v1782 = vld [vmem:[%s3 + $0x4c] sm:$0xf]
          %s1783 = sadd.s32 %s1746, 1
          %s1784 = smul.u32 %s1783, 18
          %s1785 = smul.addr %s1784, 4
          %s1786 = scalar_lea.vmem [#allocation3], %s1785
          %v1787 = vld [vmem:[%s1786] sm:$0xff]
          %v1788 = vld [vmem:[%s1786 + $0x8] sm:$0xff]
          %v1789 = vld [vmem:[%s1786 + $0x10] sm:$0xff]
          %v1790 = vld [vmem:[%s1786 + $0x18] sm:$0xff]
          %v1791 = vld [vmem:[%s1786 + $0x20] sm:$0xff]
          %v1792 = vld [vmem:[%s1786 + $0x28] sm:$0xff]
          %v1793 = vld [vmem:[%s1786 + $0x30] sm:$0xff]
          %v1794 = vld [vmem:[%s1786 + $0x38] sm:$0xff]
          %v1795 = vld [vmem:[%s1786 + $0x40] sm:$0xff]
          %s1796 = scalar_lea.vmem %s3, 80
          %v1797 = vld [vmem:[%s1796] sm:$0xf]
          %v1798 = vld [vmem:[%s1796 + $0x4] sm:$0xf]
          %v1799 = vld [vmem:[%s1796 + $0x8] sm:$0xf]
          %v1800 = vld [vmem:[%s1796 + $0xc] sm:$0xf]
          %v1801 = vld [vmem:[%s1796 + $0x10] sm:$0xf]
          %v1802 = vld [vmem:[%s1796 + $0x14] sm:$0xf]
          %v1803 = vld [vmem:[%s1796 + $0x18] sm:$0xf]
          %v1804 = vld [vmem:[%s1796 + $0x1c] sm:$0xf]
          %v1805 = vld [vmem:[%s1796 + $0x20] sm:$0xf]
          %v1806 = vld [vmem:[%s1796 + $0x24] sm:$0xf]
          %v1807 = vld [vmem:[%s1796 + $0x28] sm:$0xf]
          %v1808 = vld [vmem:[%s1796 + $0x2c] sm:$0xf]
          %v1809 = vld [vmem:[%s1796 + $0x30] sm:$0xf]
          %v1810 = vld [vmem:[%s1796 + $0x34] sm:$0xf]
          %v1811 = vld [vmem:[%s1796 + $0x38] sm:$0xf]
          %v1812 = vld [vmem:[%s1796 + $0x3c] sm:$0xf]
          %v1813 = vld [vmem:[%s1796 + $0x40] sm:$0xf]
          %v1814 = vld [vmem:[%s1796 + $0x44] sm:$0xf]
          %v1815 = vld [vmem:[%s1796 + $0x48] sm:$0xf]
          %v1816 = vld [vmem:[%s1796 + $0x4c] sm:$0xf]
          %v1826 = vunpack.c.l.b16 %v1787
          %v1827 = vunpack.c.h.b16 %v1787
          %v1828 = vunpack.c.l.b16 %v1788
          %v1829 = vunpack.c.h.b16 %v1788
          %v1830 = vunpack.c.l.b16 %v1789
          %v1831 = vunpack.c.h.b16 %v1789
          %v1832 = vunpack.c.l.b16 %v1790
          %v1833 = vunpack.c.h.b16 %v1790
          %v1834 = vunpack.c.l.b16 %v1791
          %v1835 = vunpack.c.h.b16 %v1791
          %v1836 = vunpack.c.l.b16 %v1792
          %v1837 = vunpack.c.h.b16 %v1792
          %v1838 = vunpack.c.l.b16 %v1793
          %v1839 = vunpack.c.h.b16 %v1793
          %v1840 = vunpack.c.l.b16 %v1794
          %v1841 = vunpack.c.h.b16 %v1794
          %v1842 = vunpack.c.l.b16 %v1795
          %v1843 = vunpack.c.h.b16 %v1795
          %v1844 = vpack.c.b16 %v1828, %v1826
          %v1845 = vpack.c.b16 %v1829, %v1827
          %v1846 = vpack.c.b16 %v1832, %v1830
          %v1847 = vpack.c.b16 %v1833, %v1831
          %v1848 = vpack.c.b16 %v1836, %v1834
          %v1849 = vpack.c.b16 %v1837, %v1835
          %v1850 = vpack.c.b16 %v1840, %v1838
          %v1851 = vpack.c.b16 %v1841, %v1839
          %v1852 = vpack.c.b16 %v1842, %v1842
          %v1853 = vpack.c.b16 %v1843, %v1843
          %v1879 = vunpack.c.l.b16 %v1797
          %v1880 = vunpack.c.l.b16 %v1798
          %v1881 = vunpack.c.l.b16 %v1799
          %v1882 = vunpack.c.l.b16 %v1800
          %v1883 = vunpack.c.l.b16 %v1801
          %v1884 = vunpack.c.l.b16 %v1802
          %v1885 = vunpack.c.l.b16 %v1803
          %v1886 = vunpack.c.l.b16 %v1804
          %v1887 = vunpack.c.l.b16 %v1805
          %v1888 = vunpack.c.l.b16 %v1806
          %v1889 = vunpack.c.l.b16 %v1807
          %v1890 = vunpack.c.l.b16 %v1808
          %v1891 = vunpack.c.l.b16 %v1809
          %v1892 = vunpack.c.l.b16 %v1810
          %v1893 = vunpack.c.l.b16 %v1811
          %v1894 = vunpack.c.l.b16 %v1812
          %v1895 = vunpack.c.l.b16 %v1813
          %v1896 = vunpack.c.l.b16 %v1814
          %v1897 = vunpack.c.l.b16 %v1815
          %v1898 = vunpack.c.l.b16 %v1816
          %v1899 = vpack.c.b16 %v1880, %v1879
          %v1900 = vpack.c.b16 %v1882, %v1881
          %v1901 = vpack.c.b16 %v1884, %v1883
          %v1902 = vpack.c.b16 %v1886, %v1885
          %v1903 = vpack.c.b16 %v1888, %v1887
          %v1904 = vpack.c.b16 %v1890, %v1889
          %v1905 = vpack.c.b16 %v1892, %v1891
          %v1906 = vpack.c.b16 %v1894, %v1893
          %v1907 = vpack.c.b16 %v1896, %v1895
          %v1908 = vpack.c.b16 %v1898, %v1897
          %v1920 = vsel %vm327, %v1845, 0
          %v1923 = vsel %vm327, %v1847, 0
          %v1926 = vsel %vm327, %v1849, 0
          %v1929 = vsel %vm327, %v1851, 0
          %v1932 = vsel %vm327, %v1853, 0
          %1934 = vmatprep.subr.bf16.mxu0 0
          %1935 = vmatpush1.bf16.msra.mxu0 %v1906
          %1936 = vmatprep.subr.bf16.mxu0 0
          %1937 = vmatpush1.bf16.msra.mxu0 %v1905
          %1938 = vmatprep.subr.bf16.mxu0 0
          %1939 = vmatpush1.bf16.msra.mxu0 %v1904
          %1940 = vmatprep.subr.bf16.mxu0 0
          %1941 = vmatpush1.bf16.msra.mxu0 %v1903
          %1942 = vmatprep.subr.bf16.mxu0 0
          %1943 = vmatpush1.bf16.msra.mxu0 %v1902
          %1944 = vmatprep.subr.bf16.mxu0 0
          %1945 = vmatpush1.bf16.msra.mxu0 %v1901
          %1946 = vmatprep.subr.bf16.mxu0 0
          %1947 = vmatpush1.bf16.msra.mxu0 %v1900
          %1948 = vmatprep.subr.bf16.mxu0 0
          %1949 = vmatpush1.bf16.msra.mxu0 %v1899
          %1950 = vmatprep.subr.bf16.mxu0 0
          %1951 = vmatpush2.bf16.msra.mxu0 0
          %1952 = vmatprep.subr.bf16.mxu0 0
          %1953 = vmatpush2.bf16.msra.mxu0 0
          %1954 = vmatprep.subr.bf16.mxu0 0
          %1955 = vmatpush2.bf16.msra.mxu0 0
          %1956 = vmatprep.subr.bf16.mxu0 0
          %1957 = vmatpush2.bf16.msra.mxu0 0
          %1958 = vmatprep.subr.bf16.mxu0 0
          %1959 = vmatpush2.bf16.msra.mxu0 0
          %1960 = vmatprep.subr.bf16.mxu0 0
          %1961 = vmatpush2.bf16.msra.mxu0 0
          %1962 = vmatprep.subr.bf16.mxu0 0
          %1963 = vmatpush2.bf16.msra.mxu0 %v1908
          %1964 = vmatprep.subr.bf16.mxu0 0
          %1965 = vmatpush2.bf16.msra.mxu0 %v1907
          %1966 = vmatprep.mubr.bf16.mxu0 %v1920
          %1967 = vmatmul.mubr.bf16.gmra.mxu0 %v1844
          %v1968 = vpop.f32.mrf.mxu0
          %v1969 = vadd.f32 0.0, %v1968
          %v1970 = vpop.f32.mrf.mxu0
          %v1971 = vpop.f32.mrf.mxu0
          %v1972 = vadd.f32 0.0, %v1971
          %v1973 = vpop.f32.mrf.mxu0
          %1974 = vmatprep.mubr.bf16.mxu0 %v1923
          %1975 = vmatmul.mubr.bf16.gmra.mxu0 %v1846
          %v1976 = vpop.f32.mrf.mxu0
          %v1977 = vadd.f32 0.0, %v1976
          %v1978 = vpop.f32.mrf.mxu0
          %v1979 = vpop.f32.mrf.mxu0
          %v1980 = vadd.f32 0.0, %v1979
          %v1981 = vpop.f32.mrf.mxu0
          %1982 = vmatprep.mubr.bf16.mxu0 %v1926
          %1983 = vmatmul.mubr.bf16.gmra.mxu0 %v1848
          %v1984 = vpop.f32.mrf.mxu0
          %v1985 = vadd.f32 0.0, %v1984
          %v1986 = vpop.f32.mrf.mxu0
          %v1987 = vpop.f32.mrf.mxu0
          %v1988 = vadd.f32 0.0, %v1987
          %v1989 = vpop.f32.mrf.mxu0
          %1990 = vmatprep.mubr.bf16.mxu0 %v1929
          %1991 = vmatmul.mubr.bf16.gmra.mxu0 %v1850
          %v1992 = vpop.f32.mrf.mxu0
          %v1993 = vadd.f32 0.0, %v1992
          %v1994 = vpop.f32.mrf.mxu0
          %v1995 = vpop.f32.mrf.mxu0
          %v1996 = vadd.f32 0.0, %v1995
          %v1997 = vpop.f32.mrf.mxu0
          %1998 = vmatprep.mubr.bf16.mxu0 %v1932
          %1999 = vmatmul.mubr.bf16.gmra.mxu0 %v1852
          %v2000 = vpop.f32.mrf.mxu0
          %v2001 = vadd.f32 0.0, %v2000
          %v2002 = vpop.f32.mrf.mxu0
          %v2003 = vpop.f32.mrf.mxu0
          %v2004 = vpop.f32.mrf.mxu0
          %2005 = vdwg.mxu0
          %v2015 = vunpack.c.l.b16 %v1754
          %v2016 = vunpack.c.h.b16 %v1754
          %v2017 = vunpack.c.l.b16 %v1755
          %v2018 = vunpack.c.h.b16 %v1755
          %v2019 = vunpack.c.l.b16 %v1756
          %v2020 = vunpack.c.h.b16 %v1756
          %v2021 = vunpack.c.l.b16 %v1757
          %v2022 = vunpack.c.h.b16 %v1757
          %v2023 = vunpack.c.l.b16 %v1758
          %v2024 = vunpack.c.h.b16 %v1758
          %v2025 = vunpack.c.l.b16 %v1759
          %v2026 = vunpack.c.h.b16 %v1759
          %v2027 = vunpack.c.l.b16 %v1760
          %v2028 = vunpack.c.h.b16 %v1760
          %v2029 = vunpack.c.l.b16 %v1761
          %v2030 = vunpack.c.h.b16 %v1761
          %v2031 = vunpack.c.l.b16 %v1762
          %v2032 = vunpack.c.h.b16 %v1762
          %v2033 = vpack.c.b16 %v2017, %v2015
          %v2034 = vpack.c.b16 %v2018, %v2016
          %v2035 = vpack.c.b16 %v2021, %v2019
          %v2036 = vpack.c.b16 %v2022, %v2020
          %v2037 = vpack.c.b16 %v2025, %v2023
          %v2038 = vpack.c.b16 %v2026, %v2024
          %v2039 = vpack.c.b16 %v2029, %v2027
          %v2040 = vpack.c.b16 %v2030, %v2028
          %v2041 = vpack.c.b16 %v2031, %v2031
          %v2042 = vpack.c.b16 %v2032, %v2032
          %v2068 = vunpack.c.l.b16 %v1763
          %v2069 = vunpack.c.l.b16 %v1764
          %v2070 = vunpack.c.l.b16 %v1765
          %v2071 = vunpack.c.l.b16 %v1766
          %v2072 = vunpack.c.l.b16 %v1767
          %v2073 = vunpack.c.l.b16 %v1768
          %v2074 = vunpack.c.l.b16 %v1769
          %v2075 = vunpack.c.l.b16 %v1770
          %v2076 = vunpack.c.l.b16 %v1771
          %v2077 = vunpack.c.l.b16 %v1772
          %v2078 = vunpack.c.l.b16 %v1773
          %v2079 = vunpack.c.l.b16 %v1774
          %v2080 = vunpack.c.l.b16 %v1775
          %v2081 = vunpack.c.l.b16 %v1776
          %v2082 = vunpack.c.l.b16 %v1777
          %v2083 = vunpack.c.l.b16 %v1778
          %v2084 = vunpack.c.l.b16 %v1779
          %v2085 = vunpack.c.l.b16 %v1780
          %v2086 = vunpack.c.l.b16 %v1781
          %v2087 = vunpack.c.l.b16 %v1782
          %v2088 = vpack.c.b16 %v2069, %v2068
          %v2089 = vpack.c.b16 %v2071, %v2070
          %v2090 = vpack.c.b16 %v2073, %v2072
          %v2091 = vpack.c.b16 %v2075, %v2074
          %v2092 = vpack.c.b16 %v2077, %v2076
          %v2093 = vpack.c.b16 %v2079, %v2078
          %v2094 = vpack.c.b16 %v2081, %v2080
          %v2095 = vpack.c.b16 %v2083, %v2082
          %v2096 = vpack.c.b16 %v2085, %v2084
          %v2097 = vpack.c.b16 %v2087, %v2086
          %v2109 = vsel %vm327, %v2034, 0
          %v2112 = vsel %vm327, %v2036, 0
          %v2115 = vsel %vm327, %v2038, 0
          %v2118 = vsel %vm327, %v2040, 0
          %v2121 = vsel %vm327, %v2042, 0
          %2123 = vmatprep.subr.bf16.mxu0 0
          %2124 = vmatpush1.bf16.msra.mxu0 %v2095
          %2125 = vmatprep.subr.bf16.mxu0 0
          %2126 = vmatpush1.bf16.msra.mxu0 %v2094
          %2127 = vmatprep.subr.bf16.mxu0 0
          %2128 = vmatpush1.bf16.msra.mxu0 %v2093
          %2129 = vmatprep.subr.bf16.mxu0 0
          %2130 = vmatpush1.bf16.msra.mxu0 %v2092
          %2131 = vmatprep.subr.bf16.mxu0 0
          %2132 = vmatpush1.bf16.msra.mxu0 %v2091
          %2133 = vmatprep.subr.bf16.mxu0 0
          %2134 = vmatpush1.bf16.msra.mxu0 %v2090
          %2135 = vmatprep.subr.bf16.mxu0 0
          %2136 = vmatpush1.bf16.msra.mxu0 %v2089
          %2137 = vmatprep.subr.bf16.mxu0 0
          %2138 = vmatpush1.bf16.msra.mxu0 %v2088
          %2139 = vmatprep.subr.bf16.mxu0 0
          %2140 = vmatpush2.bf16.msra.mxu0 0
          %2141 = vmatprep.subr.bf16.mxu0 0
          %2142 = vmatpush2.bf16.msra.mxu0 0
          %2143 = vmatprep.subr.bf16.mxu0 0
          %2144 = vmatpush2.bf16.msra.mxu0 0
          %2145 = vmatprep.subr.bf16.mxu0 0
          %2146 = vmatpush2.bf16.msra.mxu0 0
          %2147 = vmatprep.subr.bf16.mxu0 0
          %2148 = vmatpush2.bf16.msra.mxu0 0
          %2149 = vmatprep.subr.bf16.mxu0 0
          %2150 = vmatpush2.bf16.msra.mxu0 0
          %2151 = vmatprep.subr.bf16.mxu0 0
          %2152 = vmatpush2.bf16.msra.mxu0 %v2097
          %2153 = vmatprep.subr.bf16.mxu0 0
          %2154 = vmatpush2.bf16.msra.mxu0 %v2096
          %2155 = vmatprep.mubr.bf16.mxu0 %v2109
          %2156 = vmatmul.mubr.bf16.gmra.mxu0 %v2033
          %v2157 = vpop.f32.mrf.mxu0
          %v2158 = vadd.f32 %v1969, %v2157
          %v2159 = vpop.f32.mrf.mxu0
          %v2160 = vpop.f32.mrf.mxu0
          %v2161 = vadd.f32 %v1972, %v2160
          %v2162 = vpop.f32.mrf.mxu0
          %2163 = vmatprep.mubr.bf16.mxu0 %v2112
          %2164 = vmatmul.mubr.bf16.gmra.mxu0 %v2035
          %v2165 = vpop.f32.mrf.mxu0
          %v2166 = vadd.f32 %v1977, %v2165
          %v2167 = vpop.f32.mrf.mxu0
          %v2168 = vpop.f32.mrf.mxu0
          %v2169 = vadd.f32 %v1980, %v2168
          %v2170 = vpop.f32.mrf.mxu0
          %2171 = vmatprep.mubr.bf16.mxu0 %v2115
          %2172 = vmatmul.mubr.bf16.gmra.mxu0 %v2037
          %v2173 = vpop.f32.mrf.mxu0
          %v2174 = vadd.f32 %v1985, %v2173
          %v2175 = vpop.f32.mrf.mxu0
          %v2176 = vpop.f32.mrf.mxu0
          %v2177 = vadd.f32 %v1988, %v2176
          %v2178 = vpop.f32.mrf.mxu0
          %2179 = vmatprep.mubr.bf16.mxu0 %v2118
          %2180 = vmatmul.mubr.bf16.gmra.mxu0 %v2039
          %v2181 = vpop.f32.mrf.mxu0
          %v2182 = vadd.f32 %v1993, %v2181
          %v2183 = vpop.f32.mrf.mxu0
          %v2184 = vpop.f32.mrf.mxu0
          %v2185 = vadd.f32 %v1996, %v2184
          %v2186 = vpop.f32.mrf.mxu0
          %2187 = vmatprep.mubr.bf16.mxu0 %v2121
          %2188 = vmatmul.mubr.bf16.gmra.mxu0 %v2041
          %v2189 = vpop.f32.mrf.mxu0
          %v2190 = vadd.f32 %v2001, %v2189
          %v2191 = vpop.f32.mrf.mxu0
          %v2192 = vpop.f32.mrf.mxu0
          %v2193 = vpop.f32.mrf.mxu0
          %2194 = vdwg.mxu0
          %s2195 = sadd.s32 %s1746, 2
          %s2196 = smul.u32 %s2195, 18
          %s2197 = smul.addr %s2196, 4
          %s2198 = scalar_lea.vmem [#allocation3], %s2197
          %v2199 = vld [vmem:[%s2198] sm:$0xff]
          %v2200 = vld [vmem:[%s2198 + $0x8] sm:$0xff]
          %v2201 = vld [vmem:[%s2198 + $0x10] sm:$0xff]
          %v2202 = vld [vmem:[%s2198 + $0x18] sm:$0xff]
          %v2203 = vld [vmem:[%s2198 + $0x20] sm:$0xff]
          %v2204 = vld [vmem:[%s2198 + $0x28] sm:$0xff]
          %v2205 = vld [vmem:[%s2198 + $0x30] sm:$0xff]
          %v2206 = vld [vmem:[%s2198 + $0x38] sm:$0xff]
          %v2207 = vld [vmem:[%s2198 + $0x40] sm:$0xff]
          %s2208 = scalar_lea.vmem %s3, 160
          %v2209 = vld [vmem:[%s2208] sm:$0xf]
          %v2210 = vld [vmem:[%s2208 + $0x4] sm:$0xf]
          %v2211 = vld [vmem:[%s2208 + $0x8] sm:$0xf]
          %v2212 = vld [vmem:[%s2208 + $0xc] sm:$0xf]
          %v2213 = vld [vmem:[%s2208 + $0x10] sm:$0xf]
          %v2214 = vld [vmem:[%s2208 + $0x14] sm:$0xf]
          %v2215 = vld [vmem:[%s2208 + $0x18] sm:$0xf]
          %v2216 = vld [vmem:[%s2208 + $0x1c] sm:$0xf]
          %v2217 = vld [vmem:[%s2208 + $0x20] sm:$0xf]
          %v2218 = vld [vmem:[%s2208 + $0x24] sm:$0xf]
          %v2219 = vld [vmem:[%s2208 + $0x28] sm:$0xf]
          %v2220 = vld [vmem:[%s2208 + $0x2c] sm:$0xf]
          %v2221 = vld [vmem:[%s2208 + $0x30] sm:$0xf]
          %v2222 = vld [vmem:[%s2208 + $0x34] sm:$0xf]
          %v2223 = vld [vmem:[%s2208 + $0x38] sm:$0xf]
          %v2224 = vld [vmem:[%s2208 + $0x3c] sm:$0xf]
          %v2225 = vld [vmem:[%s2208 + $0x40] sm:$0xf]
          %v2226 = vld [vmem:[%s2208 + $0x44] sm:$0xf]
          %v2227 = vld [vmem:[%s2208 + $0x48] sm:$0xf]
          %v2228 = vld [vmem:[%s2208 + $0x4c] sm:$0xf]
          %v2238 = vunpack.c.l.b16 %v2199
          %v2239 = vunpack.c.h.b16 %v2199
          %v2240 = vunpack.c.l.b16 %v2200
          %v2241 = vunpack.c.h.b16 %v2200
          %v2242 = vunpack.c.l.b16 %v2201
          %v2243 = vunpack.c.h.b16 %v2201
          %v2244 = vunpack.c.l.b16 %v2202
          %v2245 = vunpack.c.h.b16 %v2202
          %v2246 = vunpack.c.l.b16 %v2203
          %v2247 = vunpack.c.h.b16 %v2203
          %v2248 = vunpack.c.l.b16 %v2204
          %v2249 = vunpack.c.h.b16 %v2204
          %v2250 = vunpack.c.l.b16 %v2205
          %v2251 = vunpack.c.h.b16 %v2205
          %v2252 = vunpack.c.l.b16 %v2206
          %v2253 = vunpack.c.h.b16 %v2206
          %v2254 = vunpack.c.l.b16 %v2207
          %v2255 = vunpack.c.h.b16 %v2207
          %v2256 = vpack.c.b16 %v2240, %v2238
          %v2257 = vpack.c.b16 %v2241, %v2239
          %v2258 = vpack.c.b16 %v2244, %v2242
          %v2259 = vpack.c.b16 %v2245, %v2243
          %v2260 = vpack.c.b16 %v2248, %v2246
          %v2261 = vpack.c.b16 %v2249, %v2247
          %v2262 = vpack.c.b16 %v2252, %v2250
          %v2263 = vpack.c.b16 %v2253, %v2251
          %v2264 = vpack.c.b16 %v2254, %v2254
          %v2265 = vpack.c.b16 %v2255, %v2255
          %v2291 = vunpack.c.l.b16 %v2209
          %v2292 = vunpack.c.l.b16 %v2210
          %v2293 = vunpack.c.l.b16 %v2211
          %v2294 = vunpack.c.l.b16 %v2212
          %v2295 = vunpack.c.l.b16 %v2213
          %v2296 = vunpack.c.l.b16 %v2214
          %v2297 = vunpack.c.l.b16 %v2215
          %v2298 = vunpack.c.l.b16 %v2216
          %v2299 = vunpack.c.l.b16 %v2217
          %v2300 = vunpack.c.l.b16 %v2218
          %v2301 = vunpack.c.l.b16 %v2219
          %v2302 = vunpack.c.l.b16 %v2220
          %v2303 = vunpack.c.l.b16 %v2221
          %v2304 = vunpack.c.l.b16 %v2222
          %v2305 = vunpack.c.l.b16 %v2223
          %v2306 = vunpack.c.l.b16 %v2224
          %v2307 = vunpack.c.l.b16 %v2225
          %v2308 = vunpack.c.l.b16 %v2226
          %v2309 = vunpack.c.l.b16 %v2227
          %v2310 = vunpack.c.l.b16 %v2228
          %v2311 = vpack.c.b16 %v2292, %v2291
          %v2312 = vpack.c.b16 %v2294, %v2293
          %v2313 = vpack.c.b16 %v2296, %v2295
          %v2314 = vpack.c.b16 %v2298, %v2297
          %v2315 = vpack.c.b16 %v2300, %v2299
          %v2316 = vpack.c.b16 %v2302, %v2301
          %v2317 = vpack.c.b16 %v2304, %v2303
          %v2318 = vpack.c.b16 %v2306, %v2305
          %v2319 = vpack.c.b16 %v2308, %v2307
          %v2320 = vpack.c.b16 %v2310, %v2309
          %v2332 = vsel %vm327, %v2257, 0
          %v2335 = vsel %vm327, %v2259, 0
          %v2338 = vsel %vm327, %v2261, 0
          %v2341 = vsel %vm327, %v2263, 0
          %v2344 = vsel %vm327, %v2265, 0
          %2346 = vmatprep.subr.bf16.mxu0 0
          %2347 = vmatpush1.bf16.msra.mxu0 %v2318
          %2348 = vmatprep.subr.bf16.mxu0 0
          %2349 = vmatpush1.bf16.msra.mxu0 %v2317
          %2350 = vmatprep.subr.bf16.mxu0 0
          %2351 = vmatpush1.bf16.msra.mxu0 %v2316
          %2352 = vmatprep.subr.bf16.mxu0 0
          %2353 = vmatpush1.bf16.msra.mxu0 %v2315
          %2354 = vmatprep.subr.bf16.mxu0 0
          %2355 = vmatpush1.bf16.msra.mxu0 %v2314
          %2356 = vmatprep.subr.bf16.mxu0 0
          %2357 = vmatpush1.bf16.msra.mxu0 %v2313
          %2358 = vmatprep.subr.bf16.mxu0 0
          %2359 = vmatpush1.bf16.msra.mxu0 %v2312
          %2360 = vmatprep.subr.bf16.mxu0 0
          %2361 = vmatpush1.bf16.msra.mxu0 %v2311
          %2362 = vmatprep.subr.bf16.mxu0 0
          %2363 = vmatpush2.bf16.msra.mxu0 0
          %2364 = vmatprep.subr.bf16.mxu0 0
          %2365 = vmatpush2.bf16.msra.mxu0 0
          %2366 = vmatprep.subr.bf16.mxu0 0
          %2367 = vmatpush2.bf16.msra.mxu0 0
          %2368 = vmatprep.subr.bf16.mxu0 0
          %2369 = vmatpush2.bf16.msra.mxu0 0
          %2370 = vmatprep.subr.bf16.mxu0 0
          %2371 = vmatpush2.bf16.msra.mxu0 0
          %2372 = vmatprep.subr.bf16.mxu0 0
          %2373 = vmatpush2.bf16.msra.mxu0 0
          %2374 = vmatprep.subr.bf16.mxu0 0
          %2375 = vmatpush2.bf16.msra.mxu0 %v2320
          %2376 = vmatprep.subr.bf16.mxu0 0
          %2377 = vmatpush2.bf16.msra.mxu0 %v2319
          %2378 = vmatprep.mubr.bf16.mxu0 %v2332
          %2379 = vmatmul.mubr.bf16.gmra.mxu0 %v2256
          %v2380 = vpop.f32.mrf.mxu0
          %v2381 = vadd.f32 0.0, %v2380
          %v2382 = vpop.f32.mrf.mxu0
          %v2383 = vpop.f32.mrf.mxu0
          %v2384 = vadd.f32 0.0, %v2383
          %v2385 = vpop.f32.mrf.mxu0
          %2386 = vmatprep.mubr.bf16.mxu0 %v2335
          %2387 = vmatmul.mubr.bf16.gmra.mxu0 %v2258
          %v2388 = vpop.f32.mrf.mxu0
          %v2389 = vadd.f32 0.0, %v2388
          %v2390 = vpop.f32.mrf.mxu0
          %v2391 = vpop.f32.mrf.mxu0
          %v2392 = vadd.f32 0.0, %v2391
          %v2393 = vpop.f32.mrf.mxu0
          %2394 = vmatprep.mubr.bf16.mxu0 %v2338
          %2395 = vmatmul.mubr.bf16.gmra.mxu0 %v2260
          %v2396 = vpop.f32.mrf.mxu0
          %v2397 = vadd.f32 0.0, %v2396
          %v2398 = vpop.f32.mrf.mxu0
          %v2399 = vpop.f32.mrf.mxu0
          %v2400 = vadd.f32 0.0, %v2399
          %v2401 = vpop.f32.mrf.mxu0
          %2402 = vmatprep.mubr.bf16.mxu0 %v2341
          %2403 = vmatmul.mubr.bf16.gmra.mxu0 %v2262
          %v2404 = vpop.f32.mrf.mxu0
          %v2405 = vadd.f32 0.0, %v2404
          %v2406 = vpop.f32.mrf.mxu0
          %v2407 = vpop.f32.mrf.mxu0
          %v2408 = vadd.f32 0.0, %v2407
          %v2409 = vpop.f32.mrf.mxu0
          %2410 = vmatprep.mubr.bf16.mxu0 %v2344
          %2411 = vmatmul.mubr.bf16.gmra.mxu0 %v2264
          %v2412 = vpop.f32.mrf.mxu0
          %v2413 = vadd.f32 0.0, %v2412
          %v2414 = vpop.f32.mrf.mxu0
          %v2415 = vpop.f32.mrf.mxu0
          %v2416 = vpop.f32.mrf.mxu0
          %2417 = vdwg.mxu0
          %v2418 = vadd.f32 %v2158, %v2381
          %v2419 = vadd.f32 %v2161, %v2384
          %v2420 = vadd.f32 %v2166, %v2389
          %v2421 = vadd.f32 %v2169, %v2392
          %v2422 = vadd.f32 %v2174, %v2397
          %v2423 = vadd.f32 %v2177, %v2400
          %v2424 = vadd.f32 %v2182, %v2405
          %v2425 = vadd.f32 %v2185, %v2408
          %v2426 = vadd.f32 %v2190, %v2413
          %s2427 = sadd.s32 %s1746, 3
          %s2428 = smul.u32 %s2427, 18
          %s2429 = smul.addr %s2428, 4
          %s2430 = scalar_lea.vmem [#allocation3], %s2429
          %v2431 = vld [vmem:[%s2430] sm:$0xff]
          %v2432 = vld [vmem:[%s2430 + $0x8] sm:$0xff]
          %v2433 = vld [vmem:[%s2430 + $0x10] sm:$0xff]
          %v2434 = vld [vmem:[%s2430 + $0x18] sm:$0xff]
          %v2435 = vld [vmem:[%s2430 + $0x20] sm:$0xff]
          %v2436 = vld [vmem:[%s2430 + $0x28] sm:$0xff]
          %v2437 = vld [vmem:[%s2430 + $0x30] sm:$0xff]
          %v2438 = vld [vmem:[%s2430 + $0x38] sm:$0xff]
          %v2439 = vld [vmem:[%s2430 + $0x40] sm:$0xff]
          %s2440 = scalar_lea.vmem %s3, 240
          %v2441 = vld [vmem:[%s2440] sm:$0xf]
          %v2442 = vld [vmem:[%s2440 + $0x4] sm:$0xf]
          %v2443 = vld [vmem:[%s2440 + $0x8] sm:$0xf]
          %v2444 = vld [vmem:[%s2440 + $0xc] sm:$0xf]
          %v2445 = vld [vmem:[%s2440 + $0x10] sm:$0xf]
          %v2446 = vld [vmem:[%s2440 + $0x14] sm:$0xf]
          %v2447 = vld [vmem:[%s2440 + $0x18] sm:$0xf]
          %v2448 = vld [vmem:[%s2440 + $0x1c] sm:$0xf]
          %v2449 = vld [vmem:[%s2440 + $0x20] sm:$0xf]
          %v2450 = vld [vmem:[%s2440 + $0x24] sm:$0xf]
          %v2451 = vld [vmem:[%s2440 + $0x28] sm:$0xf]
          %v2452 = vld [vmem:[%s2440 + $0x2c] sm:$0xf]
          %v2453 = vld [vmem:[%s2440 + $0x30] sm:$0xf]
          %v2454 = vld [vmem:[%s2440 + $0x34] sm:$0xf]
          %v2455 = vld [vmem:[%s2440 + $0x38] sm:$0xf]
          %v2456 = vld [vmem:[%s2440 + $0x3c] sm:$0xf]
          %v2457 = vld [vmem:[%s2440 + $0x40] sm:$0xf]
          %v2458 = vld [vmem:[%s2440 + $0x44] sm:$0xf]
          %v2459 = vld [vmem:[%s2440 + $0x48] sm:$0xf]
          %v2460 = vld [vmem:[%s2440 + $0x4c] sm:$0xf]
          %v2470 = vunpack.c.l.b16 %v2431
          %v2471 = vunpack.c.h.b16 %v2431
          %v2472 = vunpack.c.l.b16 %v2432
          %v2473 = vunpack.c.h.b16 %v2432
          %v2474 = vunpack.c.l.b16 %v2433
          %v2475 = vunpack.c.h.b16 %v2433
          %v2476 = vunpack.c.l.b16 %v2434
          %v2477 = vunpack.c.h.b16 %v2434
          %v2478 = vunpack.c.l.b16 %v2435
          %v2479 = vunpack.c.h.b16 %v2435
          %v2480 = vunpack.c.l.b16 %v2436
          %v2481 = vunpack.c.h.b16 %v2436
          %v2482 = vunpack.c.l.b16 %v2437
          %v2483 = vunpack.c.h.b16 %v2437
          %v2484 = vunpack.c.l.b16 %v2438
          %v2485 = vunpack.c.h.b16 %v2438
          %v2486 = vunpack.c.l.b16 %v2439
          %v2487 = vunpack.c.h.b16 %v2439
          %v2488 = vpack.c.b16 %v2472, %v2470
          %v2489 = vpack.c.b16 %v2473, %v2471
          %v2490 = vpack.c.b16 %v2476, %v2474
          %v2491 = vpack.c.b16 %v2477, %v2475
          %v2492 = vpack.c.b16 %v2480, %v2478
          %v2493 = vpack.c.b16 %v2481, %v2479
          %v2494 = vpack.c.b16 %v2484, %v2482
          %v2495 = vpack.c.b16 %v2485, %v2483
          %v2496 = vpack.c.b16 %v2486, %v2486
          %v2497 = vpack.c.b16 %v2487, %v2487
          %v2523 = vunpack.c.l.b16 %v2441
          %v2524 = vunpack.c.l.b16 %v2442
          %v2525 = vunpack.c.l.b16 %v2443
          %v2526 = vunpack.c.l.b16 %v2444
          %v2527 = vunpack.c.l.b16 %v2445
          %v2528 = vunpack.c.l.b16 %v2446
          %v2529 = vunpack.c.l.b16 %v2447
          %v2530 = vunpack.c.l.b16 %v2448
          %v2531 = vunpack.c.l.b16 %v2449
          %v2532 = vunpack.c.l.b16 %v2450
          %v2533 = vunpack.c.l.b16 %v2451
          %v2534 = vunpack.c.l.b16 %v2452
          %v2535 = vunpack.c.l.b16 %v2453
          %v2536 = vunpack.c.l.b16 %v2454
          %v2537 = vunpack.c.l.b16 %v2455
          %v2538 = vunpack.c.l.b16 %v2456
          %v2539 = vunpack.c.l.b16 %v2457
          %v2540 = vunpack.c.l.b16 %v2458
          %v2541 = vunpack.c.l.b16 %v2459
          %v2542 = vunpack.c.l.b16 %v2460
          %v2543 = vpack.c.b16 %v2524, %v2523
          %v2544 = vpack.c.b16 %v2526, %v2525
          %v2545 = vpack.c.b16 %v2528, %v2527
          %v2546 = vpack.c.b16 %v2530, %v2529
          %v2547 = vpack.c.b16 %v2532, %v2531
          %v2548 = vpack.c.b16 %v2534, %v2533
          %v2549 = vpack.c.b16 %v2536, %v2535
          %v2550 = vpack.c.b16 %v2538, %v2537
          %v2551 = vpack.c.b16 %v2540, %v2539
          %v2552 = vpack.c.b16 %v2542, %v2541
          %v2564 = vsel %vm327, %v2489, 0
          %v2567 = vsel %vm327, %v2491, 0
          %v2570 = vsel %vm327, %v2493, 0
          %v2573 = vsel %vm327, %v2495, 0
          %v2576 = vsel %vm327, %v2497, 0
          %2578 = vmatprep.subr.bf16.mxu0 0
          %2579 = vmatpush1.bf16.msra.mxu0 %v2550
          %2580 = vmatprep.subr.bf16.mxu0 0
          %2581 = vmatpush1.bf16.msra.mxu0 %v2549
          %2582 = vmatprep.subr.bf16.mxu0 0
          %2583 = vmatpush1.bf16.msra.mxu0 %v2548
          %2584 = vmatprep.subr.bf16.mxu0 0
          %2585 = vmatpush1.bf16.msra.mxu0 %v2547
          %2586 = vmatprep.subr.bf16.mxu0 0
          %2587 = vmatpush1.bf16.msra.mxu0 %v2546
          %2588 = vmatprep.subr.bf16.mxu0 0
          %2589 = vmatpush1.bf16.msra.mxu0 %v2545
          %2590 = vmatprep.subr.bf16.mxu0 0
          %2591 = vmatpush1.bf16.msra.mxu0 %v2544
          %2592 = vmatprep.subr.bf16.mxu0 0
          %2593 = vmatpush1.bf16.msra.mxu0 %v2543
          %2594 = vmatprep.subr.bf16.mxu0 0
          %2595 = vmatpush2.bf16.msra.mxu0 0
          %2596 = vmatprep.subr.bf16.mxu0 0
          %2597 = vmatpush2.bf16.msra.mxu0 0
          %2598 = vmatprep.subr.bf16.mxu0 0
          %2599 = vmatpush2.bf16.msra.mxu0 0
          %2600 = vmatprep.subr.bf16.mxu0 0
          %2601 = vmatpush2.bf16.msra.mxu0 0
          %2602 = vmatprep.subr.bf16.mxu0 0
          %2603 = vmatpush2.bf16.msra.mxu0 0
          %2604 = vmatprep.subr.bf16.mxu0 0
          %2605 = vmatpush2.bf16.msra.mxu0 0
          %2606 = vmatprep.subr.bf16.mxu0 0
          %2607 = vmatpush2.bf16.msra.mxu0 %v2552
          %2608 = vmatprep.subr.bf16.mxu0 0
          %2609 = vmatpush2.bf16.msra.mxu0 %v2551
          %2610 = vmatprep.mubr.bf16.mxu0 %v2564
          %2611 = vmatmul.mubr.bf16.gmra.mxu0 %v2488
          %v2612 = vpop.f32.mrf.mxu0
          %v2613 = vadd.f32 0.0, %v2612
          %v2614 = vpop.f32.mrf.mxu0
          %v2615 = vpop.f32.mrf.mxu0
          %v2616 = vadd.f32 0.0, %v2615
          %v2617 = vpop.f32.mrf.mxu0
          %2618 = vmatprep.mubr.bf16.mxu0 %v2567
          %2619 = vmatmul.mubr.bf16.gmra.mxu0 %v2490
          %v2620 = vpop.f32.mrf.mxu0
          %v2621 = vadd.f32 0.0, %v2620
          %v2622 = vpop.f32.mrf.mxu0
          %v2623 = vpop.f32.mrf.mxu0
          %v2624 = vadd.f32 0.0, %v2623
          %v2625 = vpop.f32.mrf.mxu0
          %2626 = vmatprep.mubr.bf16.mxu0 %v2570
          %2627 = vmatmul.mubr.bf16.gmra.mxu0 %v2492
          %v2628 = vpop.f32.mrf.mxu0
          %v2629 = vadd.f32 0.0, %v2628
          %v2630 = vpop.f32.mrf.mxu0
          %v2631 = vpop.f32.mrf.mxu0
          %v2632 = vadd.f32 0.0, %v2631
          %v2633 = vpop.f32.mrf.mxu0
          %2634 = vmatprep.mubr.bf16.mxu0 %v2573
          %2635 = vmatmul.mubr.bf16.gmra.mxu0 %v2494
          %v2636 = vpop.f32.mrf.mxu0
          %v2637 = vadd.f32 0.0, %v2636
          %v2638 = vpop.f32.mrf.mxu0
          %v2639 = vpop.f32.mrf.mxu0
          %v2640 = vadd.f32 0.0, %v2639
          %v2641 = vpop.f32.mrf.mxu0
          %2642 = vmatprep.mubr.bf16.mxu0 %v2576
          %2643 = vmatmul.mubr.bf16.gmra.mxu0 %v2496
          %v2644 = vpop.f32.mrf.mxu0
          %v2645 = vadd.f32 0.0, %v2644
          %v2646 = vpop.f32.mrf.mxu0
          %v2647 = vpop.f32.mrf.mxu0
          %v2648 = vpop.f32.mrf.mxu0
          %2649 = vdwg.mxu0
          %v2650 = vadd.f32 %v2418, %v2613
          %v2651 = vadd.f32 %v2419, %v2616
          %v2652 = vadd.f32 %v2420, %v2621
          %v2653 = vadd.f32 %v2421, %v2624
          %v2654 = vadd.f32 %v2422, %v2629
          %v2655 = vadd.f32 %v2423, %v2632
          %v2656 = vadd.f32 %v2424, %v2637
          %v2657 = vadd.f32 %v2425, %v2640
          %v2658 = vadd.f32 %v2426, %v2645
          %s2659 = sadd.s32 %s1746, 4
          %s2660 = smul.u32 %s2659, 18
          %s2661 = smul.addr %s2660, 4
          %s2662 = scalar_lea.vmem [#allocation3], %s2661
          %v2663 = vld [vmem:[%s2662] sm:$0xff]
          %v2664 = vld [vmem:[%s2662 + $0x8] sm:$0xff]
          %v2665 = vld [vmem:[%s2662 + $0x10] sm:$0xff]
          %v2666 = vld [vmem:[%s2662 + $0x18] sm:$0xff]
          %v2667 = vld [vmem:[%s2662 + $0x20] sm:$0xff]
          %v2668 = vld [vmem:[%s2662 + $0x28] sm:$0xff]
          %v2669 = vld [vmem:[%s2662 + $0x30] sm:$0xff]
          %v2670 = vld [vmem:[%s2662 + $0x38] sm:$0xff]
          %v2671 = vld [vmem:[%s2662 + $0x40] sm:$0xff]
          %s2672 = scalar_lea.vmem %s3, 320
          %v2673 = vld [vmem:[%s2672] sm:$0xf]
          %v2674 = vld [vmem:[%s2672 + $0x4] sm:$0xf]
          %v2675 = vld [vmem:[%s2672 + $0x8] sm:$0xf]
          %v2676 = vld [vmem:[%s2672 + $0xc] sm:$0xf]
          %v2677 = vld [vmem:[%s2672 + $0x10] sm:$0xf]
          %v2678 = vld [vmem:[%s2672 + $0x14] sm:$0xf]
          %v2679 = vld [vmem:[%s2672 + $0x18] sm:$0xf]
          %v2680 = vld [vmem:[%s2672 + $0x1c] sm:$0xf]
          %v2681 = vld [vmem:[%s2672 + $0x20] sm:$0xf]
          %v2682 = vld [vmem:[%s2672 + $0x24] sm:$0xf]
          %v2683 = vld [vmem:[%s2672 + $0x28] sm:$0xf]
          %v2684 = vld [vmem:[%s2672 + $0x2c] sm:$0xf]
          %v2685 = vld [vmem:[%s2672 + $0x30] sm:$0xf]
          %v2686 = vld [vmem:[%s2672 + $0x34] sm:$0xf]
          %v2687 = vld [vmem:[%s2672 + $0x38] sm:$0xf]
          %v2688 = vld [vmem:[%s2672 + $0x3c] sm:$0xf]
          %v2689 = vld [vmem:[%s2672 + $0x40] sm:$0xf]
          %v2690 = vld [vmem:[%s2672 + $0x44] sm:$0xf]
          %v2691 = vld [vmem:[%s2672 + $0x48] sm:$0xf]
          %v2692 = vld [vmem:[%s2672 + $0x4c] sm:$0xf]
          %v2702 = vunpack.c.l.b16 %v2663
          %v2703 = vunpack.c.h.b16 %v2663
          %v2704 = vunpack.c.l.b16 %v2664
          %v2705 = vunpack.c.h.b16 %v2664
          %v2706 = vunpack.c.l.b16 %v2665
          %v2707 = vunpack.c.h.b16 %v2665
          %v2708 = vunpack.c.l.b16 %v2666
          %v2709 = vunpack.c.h.b16 %v2666
          %v2710 = vunpack.c.l.b16 %v2667
          %v2711 = vunpack.c.h.b16 %v2667
          %v2712 = vunpack.c.l.b16 %v2668
          %v2713 = vunpack.c.h.b16 %v2668
          %v2714 = vunpack.c.l.b16 %v2669
          %v2715 = vunpack.c.h.b16 %v2669
          %v2716 = vunpack.c.l.b16 %v2670
          %v2717 = vunpack.c.h.b16 %v2670
          %v2718 = vunpack.c.l.b16 %v2671
          %v2719 = vunpack.c.h.b16 %v2671
          %v2720 = vpack.c.b16 %v2704, %v2702
          %v2721 = vpack.c.b16 %v2705, %v2703
          %v2722 = vpack.c.b16 %v2708, %v2706
          %v2723 = vpack.c.b16 %v2709, %v2707
          %v2724 = vpack.c.b16 %v2712, %v2710
          %v2725 = vpack.c.b16 %v2713, %v2711
          %v2726 = vpack.c.b16 %v2716, %v2714
          %v2727 = vpack.c.b16 %v2717, %v2715
          %v2728 = vpack.c.b16 %v2718, %v2718
          %v2729 = vpack.c.b16 %v2719, %v2719
          %v2755 = vunpack.c.l.b16 %v2673
          %v2756 = vunpack.c.l.b16 %v2674
          %v2757 = vunpack.c.l.b16 %v2675
          %v2758 = vunpack.c.l.b16 %v2676
          %v2759 = vunpack.c.l.b16 %v2677
          %v2760 = vunpack.c.l.b16 %v2678
          %v2761 = vunpack.c.l.b16 %v2679
          %v2762 = vunpack.c.l.b16 %v2680
          %v2763 = vunpack.c.l.b16 %v2681
          %v2764 = vunpack.c.l.b16 %v2682
          %v2765 = vunpack.c.l.b16 %v2683
          %v2766 = vunpack.c.l.b16 %v2684
          %v2767 = vunpack.c.l.b16 %v2685
          %v2768 = vunpack.c.l.b16 %v2686
          %v2769 = vunpack.c.l.b16 %v2687
          %v2770 = vunpack.c.l.b16 %v2688
          %v2771 = vunpack.c.l.b16 %v2689
          %v2772 = vunpack.c.l.b16 %v2690
          %v2773 = vunpack.c.l.b16 %v2691
          %v2774 = vunpack.c.l.b16 %v2692
          %v2775 = vpack.c.b16 %v2756, %v2755
          %v2776 = vpack.c.b16 %v2758, %v2757
          %v2777 = vpack.c.b16 %v2760, %v2759
          %v2778 = vpack.c.b16 %v2762, %v2761
          %v2779 = vpack.c.b16 %v2764, %v2763
          %v2780 = vpack.c.b16 %v2766, %v2765
          %v2781 = vpack.c.b16 %v2768, %v2767
          %v2782 = vpack.c.b16 %v2770, %v2769
          %v2783 = vpack.c.b16 %v2772, %v2771
          %v2784 = vpack.c.b16 %v2774, %v2773
          %v2796 = vsel %vm327, %v2721, 0
          %v2799 = vsel %vm327, %v2723, 0
          %v2802 = vsel %vm327, %v2725, 0
          %v2805 = vsel %vm327, %v2727, 0
          %v2808 = vsel %vm327, %v2729, 0
          %2810 = vmatprep.subr.bf16.mxu0 0
          %2811 = vmatpush1.bf16.msra.mxu0 %v2782
          %2812 = vmatprep.subr.bf16.mxu0 0
          %2813 = vmatpush1.bf16.msra.mxu0 %v2781
          %2814 = vmatprep.subr.bf16.mxu0 0
          %2815 = vmatpush1.bf16.msra.mxu0 %v2780
          %2816 = vmatprep.subr.bf16.mxu0 0
          %2817 = vmatpush1.bf16.msra.mxu0 %v2779
          %2818 = vmatprep.subr.bf16.mxu0 0
          %2819 = vmatpush1.bf16.msra.mxu0 %v2778
          %2820 = vmatprep.subr.bf16.mxu0 0
          %2821 = vmatpush1.bf16.msra.mxu0 %v2777
          %2822 = vmatprep.subr.bf16.mxu0 0
          %2823 = vmatpush1.bf16.msra.mxu0 %v2776
          %2824 = vmatprep.subr.bf16.mxu0 0
          %2825 = vmatpush1.bf16.msra.mxu0 %v2775
          %2826 = vmatprep.subr.bf16.mxu0 0
          %2827 = vmatpush2.bf16.msra.mxu0 0
          %2828 = vmatprep.subr.bf16.mxu0 0
          %2829 = vmatpush2.bf16.msra.mxu0 0
          %2830 = vmatprep.subr.bf16.mxu0 0
          %2831 = vmatpush2.bf16.msra.mxu0 0
          %2832 = vmatprep.subr.bf16.mxu0 0
          %2833 = vmatpush2.bf16.msra.mxu0 0
          %2834 = vmatprep.subr.bf16.mxu0 0
          %2835 = vmatpush2.bf16.msra.mxu0 0
          %2836 = vmatprep.subr.bf16.mxu0 0
          %2837 = vmatpush2.bf16.msra.mxu0 0
          %2838 = vmatprep.subr.bf16.mxu0 0
          %2839 = vmatpush2.bf16.msra.mxu0 %v2784
          %2840 = vmatprep.subr.bf16.mxu0 0
          %2841 = vmatpush2.bf16.msra.mxu0 %v2783
          %2842 = vmatprep.mubr.bf16.mxu0 %v2796
          %2843 = vmatmul.mubr.bf16.gmra.mxu0 %v2720
          %v2844 = vpop.f32.mrf.mxu0
          %v2845 = vadd.f32 0.0, %v2844
          %v2846 = vpop.f32.mrf.mxu0
          %v2847 = vpop.f32.mrf.mxu0
          %v2848 = vadd.f32 0.0, %v2847
          %v2849 = vpop.f32.mrf.mxu0
          %2850 = vmatprep.mubr.bf16.mxu0 %v2799
          %2851 = vmatmul.mubr.bf16.gmra.mxu0 %v2722
          %v2852 = vpop.f32.mrf.mxu0
          %v2853 = vadd.f32 0.0, %v2852
          %v2854 = vpop.f32.mrf.mxu0
          %v2855 = vpop.f32.mrf.mxu0
          %v2856 = vadd.f32 0.0, %v2855
          %v2857 = vpop.f32.mrf.mxu0
          %2858 = vmatprep.mubr.bf16.mxu0 %v2802
          %2859 = vmatmul.mubr.bf16.gmra.mxu0 %v2724
          %v2860 = vpop.f32.mrf.mxu0
          %v2861 = vadd.f32 0.0, %v2860
          %v2862 = vpop.f32.mrf.mxu0
          %v2863 = vpop.f32.mrf.mxu0
          %v2864 = vadd.f32 0.0, %v2863
          %v2865 = vpop.f32.mrf.mxu0
          %2866 = vmatprep.mubr.bf16.mxu0 %v2805
          %2867 = vmatmul.mubr.bf16.gmra.mxu0 %v2726
          %v2868 = vpop.f32.mrf.mxu0
          %v2869 = vadd.f32 0.0, %v2868
          %v2870 = vpop.f32.mrf.mxu0
          %v2871 = vpop.f32.mrf.mxu0
          %v2872 = vadd.f32 0.0, %v2871
          %v2873 = vpop.f32.mrf.mxu0
          %2874 = vmatprep.mubr.bf16.mxu0 %v2808
          %2875 = vmatmul.mubr.bf16.gmra.mxu0 %v2728
          %v2876 = vpop.f32.mrf.mxu0
          %v2877 = vadd.f32 0.0, %v2876
          %v2878 = vpop.f32.mrf.mxu0
          %v2879 = vpop.f32.mrf.mxu0
          %v2880 = vpop.f32.mrf.mxu0
          %2881 = vdwg.mxu0
          %v2882 = vadd.f32 %v2650, %v2845
          %v2883 = vadd.f32 %v2651, %v2848
          %v2884 = vadd.f32 %v2652, %v2853
          %v2885 = vadd.f32 %v2653, %v2856
          %v2886 = vadd.f32 %v2654, %v2861
          %v2887 = vadd.f32 %v2655, %v2864
          %v2888 = vadd.f32 %v2656, %v2869
          %v2889 = vadd.f32 %v2657, %v2872
          %v2890 = vadd.f32 %v2658, %v2877
          %v2891 = vld [vmem:[#allocation10] sm:$0x1]
          %v2893 = vlaneseq
          %v2894 = vshrl.u32 %v2893, 7
          %v2895 = vsub.s32 0, %v2894
          %v2896 = vrot.slane %v2891, %v2895
          %v2898 = vadd.f32 %v2882, %v2896
          %v2899 = vadd.f32 %v2883, %v2896
          %v2900 = vadd.f32 %v2884, %v2896
          %v2901 = vadd.f32 %v2885, %v2896
          %v2902 = vadd.f32 %v2886, %v2896
          %v2903 = vadd.f32 %v2887, %v2896
          %v2904 = vadd.f32 %v2888, %v2896
          %v2905 = vadd.f32 %v2889, %v2896
          %v2906 = vadd.f32 %v2890, %v2896
          %vm2907 = vcmp.ge.f32.partialorder %v2898, 0.0
          %vm2908 = vcmp.ge.f32.partialorder %v2899, 0.0
          %vm2909 = vcmp.ge.f32.partialorder %v2900, 0.0
          %vm2910 = vcmp.ge.f32.partialorder %v2901, 0.0
          %vm2911 = vcmp.ge.f32.partialorder %v2902, 0.0
          %vm2912 = vcmp.ge.f32.partialorder %v2903, 0.0
          %vm2913 = vcmp.ge.f32.partialorder %v2904, 0.0
          %vm2914 = vcmp.ge.f32.partialorder %v2905, 0.0
          %vm2915 = vcmp.ge.f32.partialorder %v2906, 0.0
          %v2916 = vmul.f32 %v2898, 0.1
          %v2917 = vmul.f32 %v2899, 0.1
          %v2918 = vmul.f32 %v2900, 0.1
          %v2919 = vmul.f32 %v2901, 0.1
          %v2920 = vmul.f32 %v2902, 0.1
          %v2921 = vmul.f32 %v2903, 0.1
          %v2922 = vmul.f32 %v2904, 0.1
          %v2923 = vmul.f32 %v2905, 0.1
          %v2924 = vmul.f32 %v2906, 0.1
          %v2925 = vsel %vm2907, %v2898, %v2916
          %v2926 = vsel %vm2908, %v2899, %v2917
          %v2927 = vsel %vm2909, %v2900, %v2918
          %v2928 = vsel %vm2910, %v2901, %v2919
          %v2929 = vsel %vm2911, %v2902, %v2920
          %v2930 = vsel %vm2912, %v2903, %v2921
          %v2931 = vsel %vm2913, %v2904, %v2922
          %v2932 = vsel %vm2914, %v2905, %v2923
          %v2933 = vsel %vm2915, %v2906, %v2924
          %s2934 = smul.u32 %s2659, 80
          %s2935 = scalar_lea.vmem [#allocation2], %s2934
          %2936 = vst.msk [vmem:[%s2935 + $0x8] sm:$0xff] %vm327, %v2925
          %2937 = vst.msk [vmem:[%s2935 + $0x10] sm:$0xff] %vm327, %v2926
          %2938 = vst.msk [vmem:[%s2935 + $0x18] sm:$0xff] %vm327, %v2927
          %2939 = vst.msk [vmem:[%s2935 + $0x20] sm:$0xff] %vm327, %v2928
          %2940 = vst.msk [vmem:[%s2935 + $0x28] sm:$0xff] %vm327, %v2929
          %2941 = vst.msk [vmem:[%s2935 + $0x30] sm:$0xff] %vm327, %v2930
          %2942 = vst.msk [vmem:[%s2935 + $0x38] sm:$0xff] %vm327, %v2931
          %2943 = vst.msk [vmem:[%s2935 + $0x40] sm:$0xff] %vm327, %v2932
          %vm2944 = vcmask 257024
          %2945 = vst.msk [vmem:[%s2935 + $0x48] sm:$0xf] %vm2944, %v2933
        $region87: #{decoder_forward.1} parent=47 // loop_footer
          %s1750 = sadd.s32 1, %s1746
        $region88: #{decoder_forward.1} parent=47 // loop_footer_branch
          %1745 = sbr.rel target = $region84
        $region89: #{decoder_forward.1} parent=47 // loop_exit
          _
        loop: start=0, step=1, limit=76
        $region90: #{decoder_forward.1} parent=47 // loop_pre_header
          _
        $region91: #{decoder_forward.1} parent=47 // loop_header
          %s2947 = sphi 0, %s2951
          %p2948 = scmp.ge.s32.totalorder %s2947, 76
        $region92: #{decoder_forward.1} parent=47 // loop_header_branch
          %2950 = sbr.rel (%p2948) target = $region96
        $region93: #{decoder_forward.1} parent=47 // loop_body
          %s2952 = smul.u32 %s2947, 80
          %s2953 = scalar_lea.vmem [#allocation2], %s2952
          %v2954 = vld [vmem:[%s2953 + $0x4] sm:$0xff]
          %v2955 = vld [vmem:[%s2953 + $0xc] sm:$0xff]
          %v2956 = vld [vmem:[%s2953 + $0x14] sm:$0xff]
          %v2957 = vld [vmem:[%s2953 + $0x1c] sm:$0xff]
          %v2958 = vld [vmem:[%s2953 + $0x24] sm:$0xff]
          %v2959 = vld [vmem:[%s2953 + $0x2c] sm:$0xff]
          %v2960 = vld [vmem:[%s2953 + $0x34] sm:$0xff]
          %v2961 = vld [vmem:[%s2953 + $0x3c] sm:$0xff]
          %v2962 = vld [vmem:[%s2953 + $0x44] sm:$0xff]
          %v2963 = vld [vmem:[%s2953 + $0x5] sm:$0xff]
          %v2964 = vld [vmem:[%s2953 + $0xd] sm:$0xff]
          %v2965 = vld [vmem:[%s2953 + $0x15] sm:$0xff]
          %v2966 = vld [vmem:[%s2953 + $0x1d] sm:$0xff]
          %v2967 = vld [vmem:[%s2953 + $0x25] sm:$0xff]
          %v2968 = vld [vmem:[%s2953 + $0x2d] sm:$0xff]
          %v2969 = vld [vmem:[%s2953 + $0x35] sm:$0xff]
          %v2970 = vld [vmem:[%s2953 + $0x3d] sm:$0xff]
          %v2971 = vld [vmem:[%s2953 + $0x45] sm:$0xff]
          %v2972 = vld [vmem:[%s2953 + $0x6] sm:$0xff]
          %v2973 = vld [vmem:[%s2953 + $0xe] sm:$0xff]
          %v2974 = vld [vmem:[%s2953 + $0x16] sm:$0xff]
          %v2975 = vld [vmem:[%s2953 + $0x1e] sm:$0xff]
          %v2976 = vld [vmem:[%s2953 + $0x26] sm:$0xff]
          %v2977 = vld [vmem:[%s2953 + $0x2e] sm:$0xff]
          %v2978 = vld [vmem:[%s2953 + $0x36] sm:$0xff]
          %v2979 = vld [vmem:[%s2953 + $0x3e] sm:$0xff]
          %v2980 = vld [vmem:[%s2953 + $0x46] sm:$0xff]
          %v2981 = vld [vmem:[%s2953 + $0x7] sm:$0xff]
          %v2982 = vld [vmem:[%s2953 + $0xf] sm:$0xff]
          %v2983 = vld [vmem:[%s2953 + $0x17] sm:$0xff]
          %v2984 = vld [vmem:[%s2953 + $0x1f] sm:$0xff]
          %v2985 = vld [vmem:[%s2953 + $0x27] sm:$0xff]
          %v2986 = vld [vmem:[%s2953 + $0x2f] sm:$0xff]
          %v2987 = vld [vmem:[%s2953 + $0x37] sm:$0xff]
          %v2988 = vld [vmem:[%s2953 + $0x3f] sm:$0xff]
          %v2989 = vld [vmem:[%s2953 + $0x47] sm:$0xff]
          %v2990 = vld [vmem:[%s2953 + $0x8] sm:$0xff]
          %v2991 = vld [vmem:[%s2953 + $0x10] sm:$0xff]
          %v2992 = vld [vmem:[%s2953 + $0x18] sm:$0xff]
          %v2993 = vld [vmem:[%s2953 + $0x20] sm:$0xff]
          %v2994 = vld [vmem:[%s2953 + $0x28] sm:$0xff]
          %v2995 = vld [vmem:[%s2953 + $0x30] sm:$0xff]
          %v2996 = vld [vmem:[%s2953 + $0x38] sm:$0xff]
          %v2997 = vld [vmem:[%s2953 + $0x40] sm:$0xff]
          %v2998 = vld [vmem:[%s2953 + $0x48] sm:$0xff]
          %3008 = vrot.lane.b32.xlu0 %v2963, 32
          %v3009 = vpop.permute.xlu0 %3008
          %3010 = vrot.lane.b32.xlu0 %v2964, 32
          %v3011 = vpop.permute.xlu0 %3010
          %3012 = vrot.lane.b32.xlu0 %v2965, 32
          %v3013 = vpop.permute.xlu0 %3012
          %3014 = vrot.lane.b32.xlu0 %v2966, 32
          %v3015 = vpop.permute.xlu0 %3014
          %3016 = vrot.lane.b32.xlu0 %v2967, 32
          %v3017 = vpop.permute.xlu0 %3016
          %3018 = vrot.lane.b32.xlu0 %v2968, 32
          %v3019 = vpop.permute.xlu0 %3018
          %3020 = vrot.lane.b32.xlu0 %v2969, 32
          %v3021 = vpop.permute.xlu0 %3020
          %3022 = vrot.lane.b32.xlu0 %v2970, 32
          %v3023 = vpop.permute.xlu0 %3022
          %3024 = vrot.lane.b32.xlu0 %v2971, 32
          %v3025 = vpop.permute.xlu0 %3024
          %3044 = vrot.lane.b32.xlu0 %v2972, 64
          %v3045 = vpop.permute.xlu0 %3044
          %3046 = vrot.lane.b32.xlu0 %v2973, 64
          %v3047 = vpop.permute.xlu0 %3046
          %3048 = vrot.lane.b32.xlu0 %v2974, 64
          %v3049 = vpop.permute.xlu0 %3048
          %3050 = vrot.lane.b32.xlu0 %v2975, 64
          %v3051 = vpop.permute.xlu0 %3050
          %3052 = vrot.lane.b32.xlu0 %v2976, 64
          %v3053 = vpop.permute.xlu0 %3052
          %3054 = vrot.lane.b32.xlu0 %v2977, 64
          %v3055 = vpop.permute.xlu0 %3054
          %3056 = vrot.lane.b32.xlu0 %v2978, 64
          %v3057 = vpop.permute.xlu0 %3056
          %3058 = vrot.lane.b32.xlu0 %v2979, 64
          %v3059 = vpop.permute.xlu0 %3058
          %3060 = vrot.lane.b32.xlu0 %v2980, 64
          %v3061 = vpop.permute.xlu0 %3060
          %3080 = vrot.lane.b32.xlu0 %v2981, 96
          %v3081 = vpop.permute.xlu0 %3080
          %3082 = vrot.lane.b32.xlu0 %v2982, 96
          %v3083 = vpop.permute.xlu0 %3082
          %3084 = vrot.lane.b32.xlu0 %v2983, 96
          %v3085 = vpop.permute.xlu0 %3084
          %3086 = vrot.lane.b32.xlu0 %v2984, 96
          %v3087 = vpop.permute.xlu0 %3086
          %3088 = vrot.lane.b32.xlu0 %v2985, 96
          %v3089 = vpop.permute.xlu0 %3088
          %3090 = vrot.lane.b32.xlu0 %v2986, 96
          %v3091 = vpop.permute.xlu0 %3090
          %3092 = vrot.lane.b32.xlu0 %v2987, 96
          %v3093 = vpop.permute.xlu0 %3092
          %3094 = vrot.lane.b32.xlu0 %v2988, 96
          %v3095 = vpop.permute.xlu0 %3094
          %3096 = vrot.lane.b32.xlu0 %v2989, 96
          %v3097 = vpop.permute.xlu0 %3096
          %v3107 = vsel %vm327, %v2954, %v3009
          %v3108 = vsel %vm327, %v2955, %v3011
          %v3109 = vsel %vm327, %v2956, %v3013
          %v3110 = vsel %vm327, %v2957, %v3015
          %v3111 = vsel %vm327, %v2958, %v3017
          %v3112 = vsel %vm327, %v2959, %v3019
          %v3113 = vsel %vm327, %v2960, %v3021
          %v3114 = vsel %vm327, %v2961, %v3023
          %v3115 = vsel %vm327, %v2962, %v3025
          %vm3116 = vcmask 523264
          %v3117 = vsel %vm3116, %v3107, %v3045
          %v3118 = vsel %vm3116, %v3108, %v3047
          %v3119 = vsel %vm3116, %v3109, %v3049
          %v3120 = vsel %vm3116, %v3110, %v3051
          %v3121 = vsel %vm3116, %v3111, %v3053
          %v3122 = vsel %vm3116, %v3112, %v3055
          %v3123 = vsel %vm3116, %v3113, %v3057
          %v3124 = vsel %vm3116, %v3114, %v3059
          %v3125 = vsel %vm3116, %v3115, %v3061
          %vm3126 = vcmask 785408
          %v3127 = vsel %vm3126, %v3117, %v3081
          %v3128 = vsel %vm3126, %v3118, %v3083
          %v3129 = vsel %vm3126, %v3119, %v3085
          %v3130 = vsel %vm3126, %v3120, %v3087
          %v3131 = vsel %vm3126, %v3121, %v3089
          %v3132 = vsel %vm3126, %v3122, %v3091
          %v3133 = vsel %vm3126, %v3123, %v3093
          %v3134 = vsel %vm3126, %v3124, %v3095
          %v3135 = vsel %vm3126, %v3125, %v3097
          %v3136 = vpack.c.bf16 %v3128, %v3127
          %v3137 = vpack.c.bf16 %v2991, %v2990
          %v3138 = vpack.c.bf16 %v3130, %v3129
          %v3139 = vpack.c.bf16 %v2993, %v2992
          %v3140 = vpack.c.bf16 %v3132, %v3131
          %v3141 = vpack.c.bf16 %v2995, %v2994
          %v3142 = vpack.c.bf16 %v3134, %v3133
          %v3143 = vpack.c.bf16 %v2997, %v2996
          %v3144 = vpack.c.bf16 %v3135, %v3135
          %v3145 = vpack.c.bf16 %v2998, %v2998
          %v3156 = vunpack.c.l.b16 %v3136
          %v3157 = vunpack.c.l.b16 %v3137
          %v3158 = vunpack.c.h.b16 %v3136
          %v3159 = vunpack.c.h.b16 %v3137
          %v3160 = vunpack.c.l.b16 %v3138
          %v3161 = vunpack.c.l.b16 %v3139
          %v3162 = vunpack.c.h.b16 %v3138
          %v3163 = vunpack.c.h.b16 %v3139
          %v3164 = vunpack.c.l.b16 %v3140
          %v3165 = vunpack.c.l.b16 %v3141
          %v3166 = vunpack.c.h.b16 %v3140
          %v3167 = vunpack.c.h.b16 %v3141
          %v3168 = vunpack.c.l.b16 %v3142
          %v3169 = vunpack.c.l.b16 %v3143
          %v3170 = vunpack.c.h.b16 %v3142
          %v3171 = vunpack.c.h.b16 %v3143
          %v3172 = vunpack.c.l.b16 %v3144
          %v3173 = vunpack.c.l.b16 %v3145
          %v3174 = vpack.c.b16 %v3157, %v3156
          %v3175 = vpack.c.b16 %v3159, %v3158
          %v3176 = vpack.c.b16 %v3161, %v3160
          %v3177 = vpack.c.b16 %v3163, %v3162
          %v3178 = vpack.c.b16 %v3165, %v3164
          %v3179 = vpack.c.b16 %v3167, %v3166
          %v3180 = vpack.c.b16 %v3169, %v3168
          %v3181 = vpack.c.b16 %v3171, %v3170
          %v3182 = vpack.c.b16 %v3173, %v3172
          %s3192 = smul.u32 %s2947, 18
          %s3193 = smul.addr %s3192, 4
          %s3194 = scalar_lea.vmem [#allocation3], %s3193
          %vm3195 = vcmask 1043456
          %vm3196 = vcmask 261124
          %vm3197 = vmor %vm3196, %vm3195
          %3198 = vst.msk [vmem:[%s3194] sm:$0xff] %vm3197, %v3174
          %3199 = vst.msk [vmem:[%s3194 + $0x8] sm:$0xff] %vm3197, %v3175
          %3200 = vst.msk [vmem:[%s3194 + $0x10] sm:$0xff] %vm3197, %v3176
          %3201 = vst.msk [vmem:[%s3194 + $0x18] sm:$0xff] %vm3197, %v3177
          %3202 = vst.msk [vmem:[%s3194 + $0x20] sm:$0xff] %vm3197, %v3178
          %3203 = vst.msk [vmem:[%s3194 + $0x28] sm:$0xff] %vm3197, %v3179
          %3204 = vst.msk [vmem:[%s3194 + $0x30] sm:$0xff] %vm3197, %v3180
          %3205 = vst.msk [vmem:[%s3194 + $0x38] sm:$0xff] %vm3197, %v3181
          %3206 = vst.msk [vmem:[%s3194 + $0x40] sm:$0xff] %vm3197, %v3182
        $region94: #{decoder_forward.1} parent=47 // loop_footer
          %s2951 = sadd.s32 1, %s2947
        $region95: #{decoder_forward.1} parent=47 // loop_footer_branch
          %2946 = sbr.rel target = $region91
        $region96: #{decoder_forward.1} parent=47 // loop_exit
          _
        loop: start=0, step=1, limit=72
        $region97: #{decoder_forward.1} parent=47 // loop_pre_header
          _
        $region98: #{decoder_forward.1} parent=47 // loop_header
          %s3208 = sphi 0, %s3212
          %p3209 = scmp.ge.s32.totalorder %s3208, 72
        $region99: #{decoder_forward.1} parent=47 // loop_header_branch
          %3211 = sbr.rel (%p3209) target = $region103
        $region100: #{decoder_forward.1} parent=47 // loop_body
          %s3213 = smul.u32 %s3208, 18
          %s3214 = smul.addr %s3213, 4
          %s3215 = scalar_lea.vmem [#allocation3], %s3214
          %v3216 = vld [vmem:[%s3215] sm:$0xff]
          %v3217 = vld [vmem:[%s3215 + $0x8] sm:$0xff]
          %v3218 = vld [vmem:[%s3215 + $0x10] sm:$0xff]
          %v3219 = vld [vmem:[%s3215 + $0x18] sm:$0xff]
          %v3220 = vld [vmem:[%s3215 + $0x20] sm:$0xff]
          %v3221 = vld [vmem:[%s3215 + $0x28] sm:$0xff]
          %v3222 = vld [vmem:[%s3215 + $0x30] sm:$0xff]
          %v3223 = vld [vmem:[%s3215 + $0x38] sm:$0xff]
          %v3224 = vld [vmem:[%s3215 + $0x40] sm:$0xff]
          %v3225 = vld [vmem:[%s5] sm:$0xf]
          %v3226 = vld [vmem:[%s5 + $0x4] sm:$0xf]
          %v3227 = vld [vmem:[%s5 + $0x8] sm:$0xf]
          %v3228 = vld [vmem:[%s5 + $0xc] sm:$0xf]
          %v3229 = vld [vmem:[%s5 + $0x10] sm:$0xf]
          %v3230 = vld [vmem:[%s5 + $0x14] sm:$0xf]
          %v3231 = vld [vmem:[%s5 + $0x18] sm:$0xf]
          %v3232 = vld [vmem:[%s5 + $0x1c] sm:$0xf]
          %v3233 = vld [vmem:[%s5 + $0x20] sm:$0xf]
          %v3234 = vld [vmem:[%s5 + $0x24] sm:$0xf]
          %v3235 = vld [vmem:[%s5 + $0x28] sm:$0xf]
          %v3236 = vld [vmem:[%s5 + $0x2c] sm:$0xf]
          %v3237 = vld [vmem:[%s5 + $0x30] sm:$0xf]
          %v3238 = vld [vmem:[%s5 + $0x34] sm:$0xf]
          %v3239 = vld [vmem:[%s5 + $0x38] sm:$0xf]
          %v3240 = vld [vmem:[%s5 + $0x3c] sm:$0xf]
          %v3241 = vld [vmem:[%s5 + $0x40] sm:$0xf]
          %v3242 = vld [vmem:[%s5 + $0x44] sm:$0xf]
          %v3243 = vld [vmem:[%s5 + $0x48] sm:$0xf]
          %v3244 = vld [vmem:[%s5 + $0x4c] sm:$0xf]
          %s3245 = sadd.s32 %s3208, 1
          %s3246 = smul.u32 %s3245, 18
          %s3247 = smul.addr %s3246, 4
          %s3248 = scalar_lea.vmem [#allocation3], %s3247
          %v3249 = vld [vmem:[%s3248] sm:$0xff]
          %v3250 = vld [vmem:[%s3248 + $0x8] sm:$0xff]
          %v3251 = vld [vmem:[%s3248 + $0x10] sm:$0xff]
          %v3252 = vld [vmem:[%s3248 + $0x18] sm:$0xff]
          %v3253 = vld [vmem:[%s3248 + $0x20] sm:$0xff]
          %v3254 = vld [vmem:[%s3248 + $0x28] sm:$0xff]
          %v3255 = vld [vmem:[%s3248 + $0x30] sm:$0xff]
          %v3256 = vld [vmem:[%s3248 + $0x38] sm:$0xff]
          %v3257 = vld [vmem:[%s3248 + $0x40] sm:$0xff]
          %s3258 = scalar_lea.vmem %s5, 80
          %v3259 = vld [vmem:[%s3258] sm:$0xf]
          %v3260 = vld [vmem:[%s3258 + $0x4] sm:$0xf]
          %v3261 = vld [vmem:[%s3258 + $0x8] sm:$0xf]
          %v3262 = vld [vmem:[%s3258 + $0xc] sm:$0xf]
          %v3263 = vld [vmem:[%s3258 + $0x10] sm:$0xf]
          %v3264 = vld [vmem:[%s3258 + $0x14] sm:$0xf]
          %v3265 = vld [vmem:[%s3258 + $0x18] sm:$0xf]
          %v3266 = vld [vmem:[%s3258 + $0x1c] sm:$0xf]
          %v3267 = vld [vmem:[%s3258 + $0x20] sm:$0xf]
          %v3268 = vld [vmem:[%s3258 + $0x24] sm:$0xf]
          %v3269 = vld [vmem:[%s3258 + $0x28] sm:$0xf]
          %v3270 = vld [vmem:[%s3258 + $0x2c] sm:$0xf]
          %v3271 = vld [vmem:[%s3258 + $0x30] sm:$0xf]
          %v3272 = vld [vmem:[%s3258 + $0x34] sm:$0xf]
          %v3273 = vld [vmem:[%s3258 + $0x38] sm:$0xf]
          %v3274 = vld [vmem:[%s3258 + $0x3c] sm:$0xf]
          %v3275 = vld [vmem:[%s3258 + $0x40] sm:$0xf]
          %v3276 = vld [vmem:[%s3258 + $0x44] sm:$0xf]
          %v3277 = vld [vmem:[%s3258 + $0x48] sm:$0xf]
          %v3278 = vld [vmem:[%s3258 + $0x4c] sm:$0xf]
          %v3288 = vunpack.c.l.b16 %v3249
          %v3289 = vunpack.c.h.b16 %v3249
          %v3290 = vunpack.c.l.b16 %v3250
          %v3291 = vunpack.c.h.b16 %v3250
          %v3292 = vunpack.c.l.b16 %v3251
          %v3293 = vunpack.c.h.b16 %v3251
          %v3294 = vunpack.c.l.b16 %v3252
          %v3295 = vunpack.c.h.b16 %v3252
          %v3296 = vunpack.c.l.b16 %v3253
          %v3297 = vunpack.c.h.b16 %v3253
          %v3298 = vunpack.c.l.b16 %v3254
          %v3299 = vunpack.c.h.b16 %v3254
          %v3300 = vunpack.c.l.b16 %v3255
          %v3301 = vunpack.c.h.b16 %v3255
          %v3302 = vunpack.c.l.b16 %v3256
          %v3303 = vunpack.c.h.b16 %v3256
          %v3304 = vunpack.c.l.b16 %v3257
          %v3305 = vunpack.c.h.b16 %v3257
          %v3306 = vpack.c.b16 %v3290, %v3288
          %v3307 = vpack.c.b16 %v3291, %v3289
          %v3308 = vpack.c.b16 %v3294, %v3292
          %v3309 = vpack.c.b16 %v3295, %v3293
          %v3310 = vpack.c.b16 %v3298, %v3296
          %v3311 = vpack.c.b16 %v3299, %v3297
          %v3312 = vpack.c.b16 %v3302, %v3300
          %v3313 = vpack.c.b16 %v3303, %v3301
          %v3314 = vpack.c.b16 %v3304, %v3304
          %v3315 = vpack.c.b16 %v3305, %v3305
          %v3341 = vunpack.c.l.b16 %v3259
          %v3342 = vunpack.c.l.b16 %v3260
          %v3343 = vunpack.c.l.b16 %v3261
          %v3344 = vunpack.c.l.b16 %v3262
          %v3345 = vunpack.c.l.b16 %v3263
          %v3346 = vunpack.c.l.b16 %v3264
          %v3347 = vunpack.c.l.b16 %v3265
          %v3348 = vunpack.c.l.b16 %v3266
          %v3349 = vunpack.c.l.b16 %v3267
          %v3350 = vunpack.c.l.b16 %v3268
          %v3351 = vunpack.c.l.b16 %v3269
          %v3352 = vunpack.c.l.b16 %v3270
          %v3353 = vunpack.c.l.b16 %v3271
          %v3354 = vunpack.c.l.b16 %v3272
          %v3355 = vunpack.c.l.b16 %v3273
          %v3356 = vunpack.c.l.b16 %v3274
          %v3357 = vunpack.c.l.b16 %v3275
          %v3358 = vunpack.c.l.b16 %v3276
          %v3359 = vunpack.c.l.b16 %v3277
          %v3360 = vunpack.c.l.b16 %v3278
          %v3361 = vpack.c.b16 %v3342, %v3341
          %v3362 = vpack.c.b16 %v3344, %v3343
          %v3363 = vpack.c.b16 %v3346, %v3345
          %v3364 = vpack.c.b16 %v3348, %v3347
          %v3365 = vpack.c.b16 %v3350, %v3349
          %v3366 = vpack.c.b16 %v3352, %v3351
          %v3367 = vpack.c.b16 %v3354, %v3353
          %v3368 = vpack.c.b16 %v3356, %v3355
          %v3369 = vpack.c.b16 %v3358, %v3357
          %v3370 = vpack.c.b16 %v3360, %v3359
          %v3382 = vsel %vm327, %v3307, 0
          %v3385 = vsel %vm327, %v3309, 0
          %v3388 = vsel %vm327, %v3311, 0
          %v3391 = vsel %vm327, %v3313, 0
          %v3394 = vsel %vm327, %v3315, 0
          %3396 = vmatprep.subr.bf16.mxu0 0
          %3397 = vmatpush1.bf16.msra.mxu0 %v3368
          %3398 = vmatprep.subr.bf16.mxu0 0
          %3399 = vmatpush1.bf16.msra.mxu0 %v3367
          %3400 = vmatprep.subr.bf16.mxu0 0
          %3401 = vmatpush1.bf16.msra.mxu0 %v3366
          %3402 = vmatprep.subr.bf16.mxu0 0
          %3403 = vmatpush1.bf16.msra.mxu0 %v3365
          %3404 = vmatprep.subr.bf16.mxu0 0
          %3405 = vmatpush1.bf16.msra.mxu0 %v3364
          %3406 = vmatprep.subr.bf16.mxu0 0
          %3407 = vmatpush1.bf16.msra.mxu0 %v3363
          %3408 = vmatprep.subr.bf16.mxu0 0
          %3409 = vmatpush1.bf16.msra.mxu0 %v3362
          %3410 = vmatprep.subr.bf16.mxu0 0
          %3411 = vmatpush1.bf16.msra.mxu0 %v3361
          %3412 = vmatprep.subr.bf16.mxu0 0
          %3413 = vmatpush2.bf16.msra.mxu0 0
          %3414 = vmatprep.subr.bf16.mxu0 0
          %3415 = vmatpush2.bf16.msra.mxu0 0
          %3416 = vmatprep.subr.bf16.mxu0 0
          %3417 = vmatpush2.bf16.msra.mxu0 0
          %3418 = vmatprep.subr.bf16.mxu0 0
          %3419 = vmatpush2.bf16.msra.mxu0 0
          %3420 = vmatprep.subr.bf16.mxu0 0
          %3421 = vmatpush2.bf16.msra.mxu0 0
          %3422 = vmatprep.subr.bf16.mxu0 0
          %3423 = vmatpush2.bf16.msra.mxu0 0
          %3424 = vmatprep.subr.bf16.mxu0 0
          %3425 = vmatpush2.bf16.msra.mxu0 %v3370
          %3426 = vmatprep.subr.bf16.mxu0 0
          %3427 = vmatpush2.bf16.msra.mxu0 %v3369
          %3428 = vmatprep.mubr.bf16.mxu0 %v3382
          %3429 = vmatmul.mubr.bf16.gmra.mxu0 %v3306
          %v3430 = vpop.f32.mrf.mxu0
          %v3431 = vadd.f32 0.0, %v3430
          %v3432 = vpop.f32.mrf.mxu0
          %v3433 = vpop.f32.mrf.mxu0
          %v3434 = vadd.f32 0.0, %v3433
          %v3435 = vpop.f32.mrf.mxu0
          %3436 = vmatprep.mubr.bf16.mxu0 %v3385
          %3437 = vmatmul.mubr.bf16.gmra.mxu0 %v3308
          %v3438 = vpop.f32.mrf.mxu0
          %v3439 = vadd.f32 0.0, %v3438
          %v3440 = vpop.f32.mrf.mxu0
          %v3441 = vpop.f32.mrf.mxu0
          %v3442 = vadd.f32 0.0, %v3441
          %v3443 = vpop.f32.mrf.mxu0
          %3444 = vmatprep.mubr.bf16.mxu0 %v3388
          %3445 = vmatmul.mubr.bf16.gmra.mxu0 %v3310
          %v3446 = vpop.f32.mrf.mxu0
          %v3447 = vadd.f32 0.0, %v3446
          %v3448 = vpop.f32.mrf.mxu0
          %v3449 = vpop.f32.mrf.mxu0
          %v3450 = vadd.f32 0.0, %v3449
          %v3451 = vpop.f32.mrf.mxu0
          %3452 = vmatprep.mubr.bf16.mxu0 %v3391
          %3453 = vmatmul.mubr.bf16.gmra.mxu0 %v3312
          %v3454 = vpop.f32.mrf.mxu0
          %v3455 = vadd.f32 0.0, %v3454
          %v3456 = vpop.f32.mrf.mxu0
          %v3457 = vpop.f32.mrf.mxu0
          %v3458 = vadd.f32 0.0, %v3457
          %v3459 = vpop.f32.mrf.mxu0
          %3460 = vmatprep.mubr.bf16.mxu0 %v3394
          %3461 = vmatmul.mubr.bf16.gmra.mxu0 %v3314
          %v3462 = vpop.f32.mrf.mxu0
          %v3463 = vadd.f32 0.0, %v3462
          %v3464 = vpop.f32.mrf.mxu0
          %v3465 = vpop.f32.mrf.mxu0
          %v3466 = vpop.f32.mrf.mxu0
          %3467 = vdwg.mxu0
          %v3477 = vunpack.c.l.b16 %v3216
          %v3478 = vunpack.c.h.b16 %v3216
          %v3479 = vunpack.c.l.b16 %v3217
          %v3480 = vunpack.c.h.b16 %v3217
          %v3481 = vunpack.c.l.b16 %v3218
          %v3482 = vunpack.c.h.b16 %v3218
          %v3483 = vunpack.c.l.b16 %v3219
          %v3484 = vunpack.c.h.b16 %v3219
          %v3485 = vunpack.c.l.b16 %v3220
          %v3486 = vunpack.c.h.b16 %v3220
          %v3487 = vunpack.c.l.b16 %v3221
          %v3488 = vunpack.c.h.b16 %v3221
          %v3489 = vunpack.c.l.b16 %v3222
          %v3490 = vunpack.c.h.b16 %v3222
          %v3491 = vunpack.c.l.b16 %v3223
          %v3492 = vunpack.c.h.b16 %v3223
          %v3493 = vunpack.c.l.b16 %v3224
          %v3494 = vunpack.c.h.b16 %v3224
          %v3495 = vpack.c.b16 %v3479, %v3477
          %v3496 = vpack.c.b16 %v3480, %v3478
          %v3497 = vpack.c.b16 %v3483, %v3481
          %v3498 = vpack.c.b16 %v3484, %v3482
          %v3499 = vpack.c.b16 %v3487, %v3485
          %v3500 = vpack.c.b16 %v3488, %v3486
          %v3501 = vpack.c.b16 %v3491, %v3489
          %v3502 = vpack.c.b16 %v3492, %v3490
          %v3503 = vpack.c.b16 %v3493, %v3493
          %v3504 = vpack.c.b16 %v3494, %v3494
          %v3530 = vunpack.c.l.b16 %v3225
          %v3531 = vunpack.c.l.b16 %v3226
          %v3532 = vunpack.c.l.b16 %v3227
          %v3533 = vunpack.c.l.b16 %v3228
          %v3534 = vunpack.c.l.b16 %v3229
          %v3535 = vunpack.c.l.b16 %v3230
          %v3536 = vunpack.c.l.b16 %v3231
          %v3537 = vunpack.c.l.b16 %v3232
          %v3538 = vunpack.c.l.b16 %v3233
          %v3539 = vunpack.c.l.b16 %v3234
          %v3540 = vunpack.c.l.b16 %v3235
          %v3541 = vunpack.c.l.b16 %v3236
          %v3542 = vunpack.c.l.b16 %v3237
          %v3543 = vunpack.c.l.b16 %v3238
          %v3544 = vunpack.c.l.b16 %v3239
          %v3545 = vunpack.c.l.b16 %v3240
          %v3546 = vunpack.c.l.b16 %v3241
          %v3547 = vunpack.c.l.b16 %v3242
          %v3548 = vunpack.c.l.b16 %v3243
          %v3549 = vunpack.c.l.b16 %v3244
          %v3550 = vpack.c.b16 %v3531, %v3530
          %v3551 = vpack.c.b16 %v3533, %v3532
          %v3552 = vpack.c.b16 %v3535, %v3534
          %v3553 = vpack.c.b16 %v3537, %v3536
          %v3554 = vpack.c.b16 %v3539, %v3538
          %v3555 = vpack.c.b16 %v3541, %v3540
          %v3556 = vpack.c.b16 %v3543, %v3542
          %v3557 = vpack.c.b16 %v3545, %v3544
          %v3558 = vpack.c.b16 %v3547, %v3546
          %v3559 = vpack.c.b16 %v3549, %v3548
          %v3571 = vsel %vm327, %v3496, 0
          %v3574 = vsel %vm327, %v3498, 0
          %v3577 = vsel %vm327, %v3500, 0
          %v3580 = vsel %vm327, %v3502, 0
          %v3583 = vsel %vm327, %v3504, 0
          %3585 = vmatprep.subr.bf16.mxu0 0
          %3586 = vmatpush1.bf16.msra.mxu0 %v3557
          %3587 = vmatprep.subr.bf16.mxu0 0
          %3588 = vmatpush1.bf16.msra.mxu0 %v3556
          %3589 = vmatprep.subr.bf16.mxu0 0
          %3590 = vmatpush1.bf16.msra.mxu0 %v3555
          %3591 = vmatprep.subr.bf16.mxu0 0
          %3592 = vmatpush1.bf16.msra.mxu0 %v3554
          %3593 = vmatprep.subr.bf16.mxu0 0
          %3594 = vmatpush1.bf16.msra.mxu0 %v3553
          %3595 = vmatprep.subr.bf16.mxu0 0
          %3596 = vmatpush1.bf16.msra.mxu0 %v3552
          %3597 = vmatprep.subr.bf16.mxu0 0
          %3598 = vmatpush1.bf16.msra.mxu0 %v3551
          %3599 = vmatprep.subr.bf16.mxu0 0
          %3600 = vmatpush1.bf16.msra.mxu0 %v3550
          %3601 = vmatprep.subr.bf16.mxu0 0
          %3602 = vmatpush2.bf16.msra.mxu0 0
          %3603 = vmatprep.subr.bf16.mxu0 0
          %3604 = vmatpush2.bf16.msra.mxu0 0
          %3605 = vmatprep.subr.bf16.mxu0 0
          %3606 = vmatpush2.bf16.msra.mxu0 0
          %3607 = vmatprep.subr.bf16.mxu0 0
          %3608 = vmatpush2.bf16.msra.mxu0 0
          %3609 = vmatprep.subr.bf16.mxu0 0
          %3610 = vmatpush2.bf16.msra.mxu0 0
          %3611 = vmatprep.subr.bf16.mxu0 0
          %3612 = vmatpush2.bf16.msra.mxu0 0
          %3613 = vmatprep.subr.bf16.mxu0 0
          %3614 = vmatpush2.bf16.msra.mxu0 %v3559
          %3615 = vmatprep.subr.bf16.mxu0 0
          %3616 = vmatpush2.bf16.msra.mxu0 %v3558
          %3617 = vmatprep.mubr.bf16.mxu0 %v3571
          %3618 = vmatmul.mubr.bf16.gmra.mxu0 %v3495
          %v3619 = vpop.f32.mrf.mxu0
          %v3620 = vadd.f32 %v3431, %v3619
          %v3621 = vpop.f32.mrf.mxu0
          %v3622 = vpop.f32.mrf.mxu0
          %v3623 = vadd.f32 %v3434, %v3622
          %v3624 = vpop.f32.mrf.mxu0
          %3625 = vmatprep.mubr.bf16.mxu0 %v3574
          %3626 = vmatmul.mubr.bf16.gmra.mxu0 %v3497
          %v3627 = vpop.f32.mrf.mxu0
          %v3628 = vadd.f32 %v3439, %v3627
          %v3629 = vpop.f32.mrf.mxu0
          %v3630 = vpop.f32.mrf.mxu0
          %v3631 = vadd.f32 %v3442, %v3630
          %v3632 = vpop.f32.mrf.mxu0
          %3633 = vmatprep.mubr.bf16.mxu0 %v3577
          %3634 = vmatmul.mubr.bf16.gmra.mxu0 %v3499
          %v3635 = vpop.f32.mrf.mxu0
          %v3636 = vadd.f32 %v3447, %v3635
          %v3637 = vpop.f32.mrf.mxu0
          %v3638 = vpop.f32.mrf.mxu0
          %v3639 = vadd.f32 %v3450, %v3638
          %v3640 = vpop.f32.mrf.mxu0
          %3641 = vmatprep.mubr.bf16.mxu0 %v3580
          %3642 = vmatmul.mubr.bf16.gmra.mxu0 %v3501
          %v3643 = vpop.f32.mrf.mxu0
          %v3644 = vadd.f32 %v3455, %v3643
          %v3645 = vpop.f32.mrf.mxu0
          %v3646 = vpop.f32.mrf.mxu0
          %v3647 = vadd.f32 %v3458, %v3646
          %v3648 = vpop.f32.mrf.mxu0
          %3649 = vmatprep.mubr.bf16.mxu0 %v3583
          %3650 = vmatmul.mubr.bf16.gmra.mxu0 %v3503
          %v3651 = vpop.f32.mrf.mxu0
          %v3652 = vadd.f32 %v3463, %v3651
          %v3653 = vpop.f32.mrf.mxu0
          %v3654 = vpop.f32.mrf.mxu0
          %v3655 = vpop.f32.mrf.mxu0
          %3656 = vdwg.mxu0
          %s3657 = sadd.s32 %s3208, 2
          %s3658 = smul.u32 %s3657, 18
          %s3659 = smul.addr %s3658, 4
          %s3660 = scalar_lea.vmem [#allocation3], %s3659
          %v3661 = vld [vmem:[%s3660] sm:$0xff]
          %v3662 = vld [vmem:[%s3660 + $0x8] sm:$0xff]
          %v3663 = vld [vmem:[%s3660 + $0x10] sm:$0xff]
          %v3664 = vld [vmem:[%s3660 + $0x18] sm:$0xff]
          %v3665 = vld [vmem:[%s3660 + $0x20] sm:$0xff]
          %v3666 = vld [vmem:[%s3660 + $0x28] sm:$0xff]
          %v3667 = vld [vmem:[%s3660 + $0x30] sm:$0xff]
          %v3668 = vld [vmem:[%s3660 + $0x38] sm:$0xff]
          %v3669 = vld [vmem:[%s3660 + $0x40] sm:$0xff]
          %s3670 = scalar_lea.vmem %s5, 160
          %v3671 = vld [vmem:[%s3670] sm:$0xf]
          %v3672 = vld [vmem:[%s3670 + $0x4] sm:$0xf]
          %v3673 = vld [vmem:[%s3670 + $0x8] sm:$0xf]
          %v3674 = vld [vmem:[%s3670 + $0xc] sm:$0xf]
          %v3675 = vld [vmem:[%s3670 + $0x10] sm:$0xf]
          %v3676 = vld [vmem:[%s3670 + $0x14] sm:$0xf]
          %v3677 = vld [vmem:[%s3670 + $0x18] sm:$0xf]
          %v3678 = vld [vmem:[%s3670 + $0x1c] sm:$0xf]
          %v3679 = vld [vmem:[%s3670 + $0x20] sm:$0xf]
          %v3680 = vld [vmem:[%s3670 + $0x24] sm:$0xf]
          %v3681 = vld [vmem:[%s3670 + $0x28] sm:$0xf]
          %v3682 = vld [vmem:[%s3670 + $0x2c] sm:$0xf]
          %v3683 = vld [vmem:[%s3670 + $0x30] sm:$0xf]
          %v3684 = vld [vmem:[%s3670 + $0x34] sm:$0xf]
          %v3685 = vld [vmem:[%s3670 + $0x38] sm:$0xf]
          %v3686 = vld [vmem:[%s3670 + $0x3c] sm:$0xf]
          %v3687 = vld [vmem:[%s3670 + $0x40] sm:$0xf]
          %v3688 = vld [vmem:[%s3670 + $0x44] sm:$0xf]
          %v3689 = vld [vmem:[%s3670 + $0x48] sm:$0xf]
          %v3690 = vld [vmem:[%s3670 + $0x4c] sm:$0xf]
          %v3700 = vunpack.c.l.b16 %v3661
          %v3701 = vunpack.c.h.b16 %v3661
          %v3702 = vunpack.c.l.b16 %v3662
          %v3703 = vunpack.c.h.b16 %v3662
          %v3704 = vunpack.c.l.b16 %v3663
          %v3705 = vunpack.c.h.b16 %v3663
          %v3706 = vunpack.c.l.b16 %v3664
          %v3707 = vunpack.c.h.b16 %v3664
          %v3708 = vunpack.c.l.b16 %v3665
          %v3709 = vunpack.c.h.b16 %v3665
          %v3710 = vunpack.c.l.b16 %v3666
          %v3711 = vunpack.c.h.b16 %v3666
          %v3712 = vunpack.c.l.b16 %v3667
          %v3713 = vunpack.c.h.b16 %v3667
          %v3714 = vunpack.c.l.b16 %v3668
          %v3715 = vunpack.c.h.b16 %v3668
          %v3716 = vunpack.c.l.b16 %v3669
          %v3717 = vunpack.c.h.b16 %v3669
          %v3718 = vpack.c.b16 %v3702, %v3700
          %v3719 = vpack.c.b16 %v3703, %v3701
          %v3720 = vpack.c.b16 %v3706, %v3704
          %v3721 = vpack.c.b16 %v3707, %v3705
          %v3722 = vpack.c.b16 %v3710, %v3708
          %v3723 = vpack.c.b16 %v3711, %v3709
          %v3724 = vpack.c.b16 %v3714, %v3712
          %v3725 = vpack.c.b16 %v3715, %v3713
          %v3726 = vpack.c.b16 %v3716, %v3716
          %v3727 = vpack.c.b16 %v3717, %v3717
          %v3753 = vunpack.c.l.b16 %v3671
          %v3754 = vunpack.c.l.b16 %v3672
          %v3755 = vunpack.c.l.b16 %v3673
          %v3756 = vunpack.c.l.b16 %v3674
          %v3757 = vunpack.c.l.b16 %v3675
          %v3758 = vunpack.c.l.b16 %v3676
          %v3759 = vunpack.c.l.b16 %v3677
          %v3760 = vunpack.c.l.b16 %v3678
          %v3761 = vunpack.c.l.b16 %v3679
          %v3762 = vunpack.c.l.b16 %v3680
          %v3763 = vunpack.c.l.b16 %v3681
          %v3764 = vunpack.c.l.b16 %v3682
          %v3765 = vunpack.c.l.b16 %v3683
          %v3766 = vunpack.c.l.b16 %v3684
          %v3767 = vunpack.c.l.b16 %v3685
          %v3768 = vunpack.c.l.b16 %v3686
          %v3769 = vunpack.c.l.b16 %v3687
          %v3770 = vunpack.c.l.b16 %v3688
          %v3771 = vunpack.c.l.b16 %v3689
          %v3772 = vunpack.c.l.b16 %v3690
          %v3773 = vpack.c.b16 %v3754, %v3753
          %v3774 = vpack.c.b16 %v3756, %v3755
          %v3775 = vpack.c.b16 %v3758, %v3757
          %v3776 = vpack.c.b16 %v3760, %v3759
          %v3777 = vpack.c.b16 %v3762, %v3761
          %v3778 = vpack.c.b16 %v3764, %v3763
          %v3779 = vpack.c.b16 %v3766, %v3765
          %v3780 = vpack.c.b16 %v3768, %v3767
          %v3781 = vpack.c.b16 %v3770, %v3769
          %v3782 = vpack.c.b16 %v3772, %v3771
          %v3794 = vsel %vm327, %v3719, 0
          %v3797 = vsel %vm327, %v3721, 0
          %v3800 = vsel %vm327, %v3723, 0
          %v3803 = vsel %vm327, %v3725, 0
          %v3806 = vsel %vm327, %v3727, 0
          %3808 = vmatprep.subr.bf16.mxu0 0
          %3809 = vmatpush1.bf16.msra.mxu0 %v3780
          %3810 = vmatprep.subr.bf16.mxu0 0
          %3811 = vmatpush1.bf16.msra.mxu0 %v3779
          %3812 = vmatprep.subr.bf16.mxu0 0
          %3813 = vmatpush1.bf16.msra.mxu0 %v3778
          %3814 = vmatprep.subr.bf16.mxu0 0
          %3815 = vmatpush1.bf16.msra.mxu0 %v3777
          %3816 = vmatprep.subr.bf16.mxu0 0
          %3817 = vmatpush1.bf16.msra.mxu0 %v3776
          %3818 = vmatprep.subr.bf16.mxu0 0
          %3819 = vmatpush1.bf16.msra.mxu0 %v3775
          %3820 = vmatprep.subr.bf16.mxu0 0
          %3821 = vmatpush1.bf16.msra.mxu0 %v3774
          %3822 = vmatprep.subr.bf16.mxu0 0
          %3823 = vmatpush1.bf16.msra.mxu0 %v3773
          %3824 = vmatprep.subr.bf16.mxu0 0
          %3825 = vmatpush2.bf16.msra.mxu0 0
          %3826 = vmatprep.subr.bf16.mxu0 0
          %3827 = vmatpush2.bf16.msra.mxu0 0
          %3828 = vmatprep.subr.bf16.mxu0 0
          %3829 = vmatpush2.bf16.msra.mxu0 0
          %3830 = vmatprep.subr.bf16.mxu0 0
          %3831 = vmatpush2.bf16.msra.mxu0 0
          %3832 = vmatprep.subr.bf16.mxu0 0
          %3833 = vmatpush2.bf16.msra.mxu0 0
          %3834 = vmatprep.subr.bf16.mxu0 0
          %3835 = vmatpush2.bf16.msra.mxu0 0
          %3836 = vmatprep.subr.bf16.mxu0 0
          %3837 = vmatpush2.bf16.msra.mxu0 %v3782
          %3838 = vmatprep.subr.bf16.mxu0 0
          %3839 = vmatpush2.bf16.msra.mxu0 %v3781
          %3840 = vmatprep.mubr.bf16.mxu0 %v3794
          %3841 = vmatmul.mubr.bf16.gmra.mxu0 %v3718
          %v3842 = vpop.f32.mrf.mxu0
          %v3843 = vadd.f32 0.0, %v3842
          %v3844 = vpop.f32.mrf.mxu0
          %v3845 = vpop.f32.mrf.mxu0
          %v3846 = vadd.f32 0.0, %v3845
          %v3847 = vpop.f32.mrf.mxu0
          %3848 = vmatprep.mubr.bf16.mxu0 %v3797
          %3849 = vmatmul.mubr.bf16.gmra.mxu0 %v3720
          %v3850 = vpop.f32.mrf.mxu0
          %v3851 = vadd.f32 0.0, %v3850
          %v3852 = vpop.f32.mrf.mxu0
          %v3853 = vpop.f32.mrf.mxu0
          %v3854 = vadd.f32 0.0, %v3853
          %v3855 = vpop.f32.mrf.mxu0
          %3856 = vmatprep.mubr.bf16.mxu0 %v3800
          %3857 = vmatmul.mubr.bf16.gmra.mxu0 %v3722
          %v3858 = vpop.f32.mrf.mxu0
          %v3859 = vadd.f32 0.0, %v3858
          %v3860 = vpop.f32.mrf.mxu0
          %v3861 = vpop.f32.mrf.mxu0
          %v3862 = vadd.f32 0.0, %v3861
          %v3863 = vpop.f32.mrf.mxu0
          %3864 = vmatprep.mubr.bf16.mxu0 %v3803
          %3865 = vmatmul.mubr.bf16.gmra.mxu0 %v3724
          %v3866 = vpop.f32.mrf.mxu0
          %v3867 = vadd.f32 0.0, %v3866
          %v3868 = vpop.f32.mrf.mxu0
          %v3869 = vpop.f32.mrf.mxu0
          %v3870 = vadd.f32 0.0, %v3869
          %v3871 = vpop.f32.mrf.mxu0
          %3872 = vmatprep.mubr.bf16.mxu0 %v3806
          %3873 = vmatmul.mubr.bf16.gmra.mxu0 %v3726
          %v3874 = vpop.f32.mrf.mxu0
          %v3875 = vadd.f32 0.0, %v3874
          %v3876 = vpop.f32.mrf.mxu0
          %v3877 = vpop.f32.mrf.mxu0
          %v3878 = vpop.f32.mrf.mxu0
          %3879 = vdwg.mxu0
          %v3880 = vadd.f32 %v3620, %v3843
          %v3881 = vadd.f32 %v3623, %v3846
          %v3882 = vadd.f32 %v3628, %v3851
          %v3883 = vadd.f32 %v3631, %v3854
          %v3884 = vadd.f32 %v3636, %v3859
          %v3885 = vadd.f32 %v3639, %v3862
          %v3886 = vadd.f32 %v3644, %v3867
          %v3887 = vadd.f32 %v3647, %v3870
          %v3888 = vadd.f32 %v3652, %v3875
          %s3889 = sadd.s32 %s3208, 3
          %s3890 = smul.u32 %s3889, 18
          %s3891 = smul.addr %s3890, 4
          %s3892 = scalar_lea.vmem [#allocation3], %s3891
          %v3893 = vld [vmem:[%s3892] sm:$0xff]
          %v3894 = vld [vmem:[%s3892 + $0x8] sm:$0xff]
          %v3895 = vld [vmem:[%s3892 + $0x10] sm:$0xff]
          %v3896 = vld [vmem:[%s3892 + $0x18] sm:$0xff]
          %v3897 = vld [vmem:[%s3892 + $0x20] sm:$0xff]
          %v3898 = vld [vmem:[%s3892 + $0x28] sm:$0xff]
          %v3899 = vld [vmem:[%s3892 + $0x30] sm:$0xff]
          %v3900 = vld [vmem:[%s3892 + $0x38] sm:$0xff]
          %v3901 = vld [vmem:[%s3892 + $0x40] sm:$0xff]
          %s3902 = scalar_lea.vmem %s5, 240
          %v3903 = vld [vmem:[%s3902] sm:$0xf]
          %v3904 = vld [vmem:[%s3902 + $0x4] sm:$0xf]
          %v3905 = vld [vmem:[%s3902 + $0x8] sm:$0xf]
          %v3906 = vld [vmem:[%s3902 + $0xc] sm:$0xf]
          %v3907 = vld [vmem:[%s3902 + $0x10] sm:$0xf]
          %v3908 = vld [vmem:[%s3902 + $0x14] sm:$0xf]
          %v3909 = vld [vmem:[%s3902 + $0x18] sm:$0xf]
          %v3910 = vld [vmem:[%s3902 + $0x1c] sm:$0xf]
          %v3911 = vld [vmem:[%s3902 + $0x20] sm:$0xf]
          %v3912 = vld [vmem:[%s3902 + $0x24] sm:$0xf]
          %v3913 = vld [vmem:[%s3902 + $0x28] sm:$0xf]
          %v3914 = vld [vmem:[%s3902 + $0x2c] sm:$0xf]
          %v3915 = vld [vmem:[%s3902 + $0x30] sm:$0xf]
          %v3916 = vld [vmem:[%s3902 + $0x34] sm:$0xf]
          %v3917 = vld [vmem:[%s3902 + $0x38] sm:$0xf]
          %v3918 = vld [vmem:[%s3902 + $0x3c] sm:$0xf]
          %v3919 = vld [vmem:[%s3902 + $0x40] sm:$0xf]
          %v3920 = vld [vmem:[%s3902 + $0x44] sm:$0xf]
          %v3921 = vld [vmem:[%s3902 + $0x48] sm:$0xf]
          %v3922 = vld [vmem:[%s3902 + $0x4c] sm:$0xf]
          %v3932 = vunpack.c.l.b16 %v3893
          %v3933 = vunpack.c.h.b16 %v3893
          %v3934 = vunpack.c.l.b16 %v3894
          %v3935 = vunpack.c.h.b16 %v3894
          %v3936 = vunpack.c.l.b16 %v3895
          %v3937 = vunpack.c.h.b16 %v3895
          %v3938 = vunpack.c.l.b16 %v3896
          %v3939 = vunpack.c.h.b16 %v3896
          %v3940 = vunpack.c.l.b16 %v3897
          %v3941 = vunpack.c.h.b16 %v3897
          %v3942 = vunpack.c.l.b16 %v3898
          %v3943 = vunpack.c.h.b16 %v3898
          %v3944 = vunpack.c.l.b16 %v3899
          %v3945 = vunpack.c.h.b16 %v3899
          %v3946 = vunpack.c.l.b16 %v3900
          %v3947 = vunpack.c.h.b16 %v3900
          %v3948 = vunpack.c.l.b16 %v3901
          %v3949 = vunpack.c.h.b16 %v3901
          %v3950 = vpack.c.b16 %v3934, %v3932
          %v3951 = vpack.c.b16 %v3935, %v3933
          %v3952 = vpack.c.b16 %v3938, %v3936
          %v3953 = vpack.c.b16 %v3939, %v3937
          %v3954 = vpack.c.b16 %v3942, %v3940
          %v3955 = vpack.c.b16 %v3943, %v3941
          %v3956 = vpack.c.b16 %v3946, %v3944
          %v3957 = vpack.c.b16 %v3947, %v3945
          %v3958 = vpack.c.b16 %v3948, %v3948
          %v3959 = vpack.c.b16 %v3949, %v3949
          %v3985 = vunpack.c.l.b16 %v3903
          %v3986 = vunpack.c.l.b16 %v3904
          %v3987 = vunpack.c.l.b16 %v3905
          %v3988 = vunpack.c.l.b16 %v3906
          %v3989 = vunpack.c.l.b16 %v3907
          %v3990 = vunpack.c.l.b16 %v3908
          %v3991 = vunpack.c.l.b16 %v3909
          %v3992 = vunpack.c.l.b16 %v3910
          %v3993 = vunpack.c.l.b16 %v3911
          %v3994 = vunpack.c.l.b16 %v3912
          %v3995 = vunpack.c.l.b16 %v3913
          %v3996 = vunpack.c.l.b16 %v3914
          %v3997 = vunpack.c.l.b16 %v3915
          %v3998 = vunpack.c.l.b16 %v3916
          %v3999 = vunpack.c.l.b16 %v3917
          %v4000 = vunpack.c.l.b16 %v3918
          %v4001 = vunpack.c.l.b16 %v3919
          %v4002 = vunpack.c.l.b16 %v3920
          %v4003 = vunpack.c.l.b16 %v3921
          %v4004 = vunpack.c.l.b16 %v3922
          %v4005 = vpack.c.b16 %v3986, %v3985
          %v4006 = vpack.c.b16 %v3988, %v3987
          %v4007 = vpack.c.b16 %v3990, %v3989
          %v4008 = vpack.c.b16 %v3992, %v3991
          %v4009 = vpack.c.b16 %v3994, %v3993
          %v4010 = vpack.c.b16 %v3996, %v3995
          %v4011 = vpack.c.b16 %v3998, %v3997
          %v4012 = vpack.c.b16 %v4000, %v3999
          %v4013 = vpack.c.b16 %v4002, %v4001
          %v4014 = vpack.c.b16 %v4004, %v4003
          %v4026 = vsel %vm327, %v3951, 0
          %v4029 = vsel %vm327, %v3953, 0
          %v4032 = vsel %vm327, %v3955, 0
          %v4035 = vsel %vm327, %v3957, 0
          %v4038 = vsel %vm327, %v3959, 0
          %4040 = vmatprep.subr.bf16.mxu0 0
          %4041 = vmatpush1.bf16.msra.mxu0 %v4012
          %4042 = vmatprep.subr.bf16.mxu0 0
          %4043 = vmatpush1.bf16.msra.mxu0 %v4011
          %4044 = vmatprep.subr.bf16.mxu0 0
          %4045 = vmatpush1.bf16.msra.mxu0 %v4010
          %4046 = vmatprep.subr.bf16.mxu0 0
          %4047 = vmatpush1.bf16.msra.mxu0 %v4009
          %4048 = vmatprep.subr.bf16.mxu0 0
          %4049 = vmatpush1.bf16.msra.mxu0 %v4008
          %4050 = vmatprep.subr.bf16.mxu0 0
          %4051 = vmatpush1.bf16.msra.mxu0 %v4007
          %4052 = vmatprep.subr.bf16.mxu0 0
          %4053 = vmatpush1.bf16.msra.mxu0 %v4006
          %4054 = vmatprep.subr.bf16.mxu0 0
          %4055 = vmatpush1.bf16.msra.mxu0 %v4005
          %4056 = vmatprep.subr.bf16.mxu0 0
          %4057 = vmatpush2.bf16.msra.mxu0 0
          %4058 = vmatprep.subr.bf16.mxu0 0
          %4059 = vmatpush2.bf16.msra.mxu0 0
          %4060 = vmatprep.subr.bf16.mxu0 0
          %4061 = vmatpush2.bf16.msra.mxu0 0
          %4062 = vmatprep.subr.bf16.mxu0 0
          %4063 = vmatpush2.bf16.msra.mxu0 0
          %4064 = vmatprep.subr.bf16.mxu0 0
          %4065 = vmatpush2.bf16.msra.mxu0 0
          %4066 = vmatprep.subr.bf16.mxu0 0
          %4067 = vmatpush2.bf16.msra.mxu0 0
          %4068 = vmatprep.subr.bf16.mxu0 0
          %4069 = vmatpush2.bf16.msra.mxu0 %v4014
          %4070 = vmatprep.subr.bf16.mxu0 0
          %4071 = vmatpush2.bf16.msra.mxu0 %v4013
          %4072 = vmatprep.mubr.bf16.mxu0 %v4026
          %4073 = vmatmul.mubr.bf16.gmra.mxu0 %v3950
          %v4074 = vpop.f32.mrf.mxu0
          %v4075 = vadd.f32 0.0, %v4074
          %v4076 = vpop.f32.mrf.mxu0
          %v4077 = vpop.f32.mrf.mxu0
          %v4078 = vadd.f32 0.0, %v4077
          %v4079 = vpop.f32.mrf.mxu0
          %4080 = vmatprep.mubr.bf16.mxu0 %v4029
          %4081 = vmatmul.mubr.bf16.gmra.mxu0 %v3952
          %v4082 = vpop.f32.mrf.mxu0
          %v4083 = vadd.f32 0.0, %v4082
          %v4084 = vpop.f32.mrf.mxu0
          %v4085 = vpop.f32.mrf.mxu0
          %v4086 = vadd.f32 0.0, %v4085
          %v4087 = vpop.f32.mrf.mxu0
          %4088 = vmatprep.mubr.bf16.mxu0 %v4032
          %4089 = vmatmul.mubr.bf16.gmra.mxu0 %v3954
          %v4090 = vpop.f32.mrf.mxu0
          %v4091 = vadd.f32 0.0, %v4090
          %v4092 = vpop.f32.mrf.mxu0
          %v4093 = vpop.f32.mrf.mxu0
          %v4094 = vadd.f32 0.0, %v4093
          %v4095 = vpop.f32.mrf.mxu0
          %4096 = vmatprep.mubr.bf16.mxu0 %v4035
          %4097 = vmatmul.mubr.bf16.gmra.mxu0 %v3956
          %v4098 = vpop.f32.mrf.mxu0
          %v4099 = vadd.f32 0.0, %v4098
          %v4100 = vpop.f32.mrf.mxu0
          %v4101 = vpop.f32.mrf.mxu0
          %v4102 = vadd.f32 0.0, %v4101
          %v4103 = vpop.f32.mrf.mxu0
          %4104 = vmatprep.mubr.bf16.mxu0 %v4038
          %4105 = vmatmul.mubr.bf16.gmra.mxu0 %v3958
          %v4106 = vpop.f32.mrf.mxu0
          %v4107 = vadd.f32 0.0, %v4106
          %v4108 = vpop.f32.mrf.mxu0
          %v4109 = vpop.f32.mrf.mxu0
          %v4110 = vpop.f32.mrf.mxu0
          %4111 = vdwg.mxu0
          %v4112 = vadd.f32 %v3880, %v4075
          %v4113 = vadd.f32 %v3881, %v4078
          %v4114 = vadd.f32 %v3882, %v4083
          %v4115 = vadd.f32 %v3883, %v4086
          %v4116 = vadd.f32 %v3884, %v4091
          %v4117 = vadd.f32 %v3885, %v4094
          %v4118 = vadd.f32 %v3886, %v4099
          %v4119 = vadd.f32 %v3887, %v4102
          %v4120 = vadd.f32 %v3888, %v4107
          %s4121 = sadd.s32 %s3208, 4
          %s4122 = smul.u32 %s4121, 18
          %s4123 = smul.addr %s4122, 4
          %s4124 = scalar_lea.vmem [#allocation3], %s4123
          %v4125 = vld [vmem:[%s4124] sm:$0xff]
          %v4126 = vld [vmem:[%s4124 + $0x8] sm:$0xff]
          %v4127 = vld [vmem:[%s4124 + $0x10] sm:$0xff]
          %v4128 = vld [vmem:[%s4124 + $0x18] sm:$0xff]
          %v4129 = vld [vmem:[%s4124 + $0x20] sm:$0xff]
          %v4130 = vld [vmem:[%s4124 + $0x28] sm:$0xff]
          %v4131 = vld [vmem:[%s4124 + $0x30] sm:$0xff]
          %v4132 = vld [vmem:[%s4124 + $0x38] sm:$0xff]
          %v4133 = vld [vmem:[%s4124 + $0x40] sm:$0xff]
          %s4134 = scalar_lea.vmem %s5, 320
          %v4135 = vld [vmem:[%s4134] sm:$0xf]
          %v4136 = vld [vmem:[%s4134 + $0x4] sm:$0xf]
          %v4137 = vld [vmem:[%s4134 + $0x8] sm:$0xf]
          %v4138 = vld [vmem:[%s4134 + $0xc] sm:$0xf]
          %v4139 = vld [vmem:[%s4134 + $0x10] sm:$0xf]
          %v4140 = vld [vmem:[%s4134 + $0x14] sm:$0xf]
          %v4141 = vld [vmem:[%s4134 + $0x18] sm:$0xf]
          %v4142 = vld [vmem:[%s4134 + $0x1c] sm:$0xf]
          %v4143 = vld [vmem:[%s4134 + $0x20] sm:$0xf]
          %v4144 = vld [vmem:[%s4134 + $0x24] sm:$0xf]
          %v4145 = vld [vmem:[%s4134 + $0x28] sm:$0xf]
          %v4146 = vld [vmem:[%s4134 + $0x2c] sm:$0xf]
          %v4147 = vld [vmem:[%s4134 + $0x30] sm:$0xf]
          %v4148 = vld [vmem:[%s4134 + $0x34] sm:$0xf]
          %v4149 = vld [vmem:[%s4134 + $0x38] sm:$0xf]
          %v4150 = vld [vmem:[%s4134 + $0x3c] sm:$0xf]
          %v4151 = vld [vmem:[%s4134 + $0x40] sm:$0xf]
          %v4152 = vld [vmem:[%s4134 + $0x44] sm:$0xf]
          %v4153 = vld [vmem:[%s4134 + $0x48] sm:$0xf]
          %v4154 = vld [vmem:[%s4134 + $0x4c] sm:$0xf]
          %v4164 = vunpack.c.l.b16 %v4125
          %v4165 = vunpack.c.h.b16 %v4125
          %v4166 = vunpack.c.l.b16 %v4126
          %v4167 = vunpack.c.h.b16 %v4126
          %v4168 = vunpack.c.l.b16 %v4127
          %v4169 = vunpack.c.h.b16 %v4127
          %v4170 = vunpack.c.l.b16 %v4128
          %v4171 = vunpack.c.h.b16 %v4128
          %v4172 = vunpack.c.l.b16 %v4129
          %v4173 = vunpack.c.h.b16 %v4129
          %v4174 = vunpack.c.l.b16 %v4130
          %v4175 = vunpack.c.h.b16 %v4130
          %v4176 = vunpack.c.l.b16 %v4131
          %v4177 = vunpack.c.h.b16 %v4131
          %v4178 = vunpack.c.l.b16 %v4132
          %v4179 = vunpack.c.h.b16 %v4132
          %v4180 = vunpack.c.l.b16 %v4133
          %v4181 = vunpack.c.h.b16 %v4133
          %v4182 = vpack.c.b16 %v4166, %v4164
          %v4183 = vpack.c.b16 %v4167, %v4165
          %v4184 = vpack.c.b16 %v4170, %v4168
          %v4185 = vpack.c.b16 %v4171, %v4169
          %v4186 = vpack.c.b16 %v4174, %v4172
          %v4187 = vpack.c.b16 %v4175, %v4173
          %v4188 = vpack.c.b16 %v4178, %v4176
          %v4189 = vpack.c.b16 %v4179, %v4177
          %v4190 = vpack.c.b16 %v4180, %v4180
          %v4191 = vpack.c.b16 %v4181, %v4181
          %v4217 = vunpack.c.l.b16 %v4135
          %v4218 = vunpack.c.l.b16 %v4136
          %v4219 = vunpack.c.l.b16 %v4137
          %v4220 = vunpack.c.l.b16 %v4138
          %v4221 = vunpack.c.l.b16 %v4139
          %v4222 = vunpack.c.l.b16 %v4140
          %v4223 = vunpack.c.l.b16 %v4141
          %v4224 = vunpack.c.l.b16 %v4142
          %v4225 = vunpack.c.l.b16 %v4143
          %v4226 = vunpack.c.l.b16 %v4144
          %v4227 = vunpack.c.l.b16 %v4145
          %v4228 = vunpack.c.l.b16 %v4146
          %v4229 = vunpack.c.l.b16 %v4147
          %v4230 = vunpack.c.l.b16 %v4148
          %v4231 = vunpack.c.l.b16 %v4149
          %v4232 = vunpack.c.l.b16 %v4150
          %v4233 = vunpack.c.l.b16 %v4151
          %v4234 = vunpack.c.l.b16 %v4152
          %v4235 = vunpack.c.l.b16 %v4153
          %v4236 = vunpack.c.l.b16 %v4154
          %v4237 = vpack.c.b16 %v4218, %v4217
          %v4238 = vpack.c.b16 %v4220, %v4219
          %v4239 = vpack.c.b16 %v4222, %v4221
          %v4240 = vpack.c.b16 %v4224, %v4223
          %v4241 = vpack.c.b16 %v4226, %v4225
          %v4242 = vpack.c.b16 %v4228, %v4227
          %v4243 = vpack.c.b16 %v4230, %v4229
          %v4244 = vpack.c.b16 %v4232, %v4231
          %v4245 = vpack.c.b16 %v4234, %v4233
          %v4246 = vpack.c.b16 %v4236, %v4235
          %v4258 = vsel %vm327, %v4183, 0
          %v4261 = vsel %vm327, %v4185, 0
          %v4264 = vsel %vm327, %v4187, 0
          %v4267 = vsel %vm327, %v4189, 0
          %v4270 = vsel %vm327, %v4191, 0
          %4272 = vmatprep.subr.bf16.mxu0 0
          %4273 = vmatpush1.bf16.msra.mxu0 %v4244
          %4274 = vmatprep.subr.bf16.mxu0 0
          %4275 = vmatpush1.bf16.msra.mxu0 %v4243
          %4276 = vmatprep.subr.bf16.mxu0 0
          %4277 = vmatpush1.bf16.msra.mxu0 %v4242
          %4278 = vmatprep.subr.bf16.mxu0 0
          %4279 = vmatpush1.bf16.msra.mxu0 %v4241
          %4280 = vmatprep.subr.bf16.mxu0 0
          %4281 = vmatpush1.bf16.msra.mxu0 %v4240
          %4282 = vmatprep.subr.bf16.mxu0 0
          %4283 = vmatpush1.bf16.msra.mxu0 %v4239
          %4284 = vmatprep.subr.bf16.mxu0 0
          %4285 = vmatpush1.bf16.msra.mxu0 %v4238
          %4286 = vmatprep.subr.bf16.mxu0 0
          %4287 = vmatpush1.bf16.msra.mxu0 %v4237
          %4288 = vmatprep.subr.bf16.mxu0 0
          %4289 = vmatpush2.bf16.msra.mxu0 0
          %4290 = vmatprep.subr.bf16.mxu0 0
          %4291 = vmatpush2.bf16.msra.mxu0 0
          %4292 = vmatprep.subr.bf16.mxu0 0
          %4293 = vmatpush2.bf16.msra.mxu0 0
          %4294 = vmatprep.subr.bf16.mxu0 0
          %4295 = vmatpush2.bf16.msra.mxu0 0
          %4296 = vmatprep.subr.bf16.mxu0 0
          %4297 = vmatpush2.bf16.msra.mxu0 0
          %4298 = vmatprep.subr.bf16.mxu0 0
          %4299 = vmatpush2.bf16.msra.mxu0 0
          %4300 = vmatprep.subr.bf16.mxu0 0
          %4301 = vmatpush2.bf16.msra.mxu0 %v4246
          %4302 = vmatprep.subr.bf16.mxu0 0
          %4303 = vmatpush2.bf16.msra.mxu0 %v4245
          %4304 = vmatprep.mubr.bf16.mxu0 %v4258
          %4305 = vmatmul.mubr.bf16.gmra.mxu0 %v4182
          %v4306 = vpop.f32.mrf.mxu0
          %v4307 = vadd.f32 0.0, %v4306
          %v4308 = vpop.f32.mrf.mxu0
          %v4309 = vpop.f32.mrf.mxu0
          %v4310 = vadd.f32 0.0, %v4309
          %v4311 = vpop.f32.mrf.mxu0
          %4312 = vmatprep.mubr.bf16.mxu0 %v4261
          %4313 = vmatmul.mubr.bf16.gmra.mxu0 %v4184
          %v4314 = vpop.f32.mrf.mxu0
          %v4315 = vadd.f32 0.0, %v4314
          %v4316 = vpop.f32.mrf.mxu0
          %v4317 = vpop.f32.mrf.mxu0
          %v4318 = vadd.f32 0.0, %v4317
          %v4319 = vpop.f32.mrf.mxu0
          %4320 = vmatprep.mubr.bf16.mxu0 %v4264
          %4321 = vmatmul.mubr.bf16.gmra.mxu0 %v4186
          %v4322 = vpop.f32.mrf.mxu0
          %v4323 = vadd.f32 0.0, %v4322
          %v4324 = vpop.f32.mrf.mxu0
          %v4325 = vpop.f32.mrf.mxu0
          %v4326 = vadd.f32 0.0, %v4325
          %v4327 = vpop.f32.mrf.mxu0
          %4328 = vmatprep.mubr.bf16.mxu0 %v4267
          %4329 = vmatmul.mubr.bf16.gmra.mxu0 %v4188
          %v4330 = vpop.f32.mrf.mxu0
          %v4331 = vadd.f32 0.0, %v4330
          %v4332 = vpop.f32.mrf.mxu0
          %v4333 = vpop.f32.mrf.mxu0
          %v4334 = vadd.f32 0.0, %v4333
          %v4335 = vpop.f32.mrf.mxu0
          %4336 = vmatprep.mubr.bf16.mxu0 %v4270
          %4337 = vmatmul.mubr.bf16.gmra.mxu0 %v4190
          %v4338 = vpop.f32.mrf.mxu0
          %v4339 = vadd.f32 0.0, %v4338
          %v4340 = vpop.f32.mrf.mxu0
          %v4341 = vpop.f32.mrf.mxu0
          %v4342 = vpop.f32.mrf.mxu0
          %4343 = vdwg.mxu0
          %v4344 = vadd.f32 %v4112, %v4307
          %v4345 = vadd.f32 %v4113, %v4310
          %v4346 = vadd.f32 %v4114, %v4315
          %v4347 = vadd.f32 %v4115, %v4318
          %v4348 = vadd.f32 %v4116, %v4323
          %v4349 = vadd.f32 %v4117, %v4326
          %v4350 = vadd.f32 %v4118, %v4331
          %v4351 = vadd.f32 %v4119, %v4334
          %v4352 = vadd.f32 %v4120, %v4339
          %v4353 = vld [vmem:[#allocation11] sm:$0x1]
          %v4355 = vlaneseq
          %v4356 = vshrl.u32 %v4355, 7
          %v4357 = vsub.s32 0, %v4356
          %v4358 = vrot.slane %v4353, %v4357
          %v4360 = vadd.f32 %v4344, %v4358
          %v4361 = vadd.f32 %v4345, %v4358
          %v4362 = vadd.f32 %v4346, %v4358
          %v4363 = vadd.f32 %v4347, %v4358
          %v4364 = vadd.f32 %v4348, %v4358
          %v4365 = vadd.f32 %v4349, %v4358
          %v4366 = vadd.f32 %v4350, %v4358
          %v4367 = vadd.f32 %v4351, %v4358
          %v4368 = vadd.f32 %v4352, %v4358
          %v4369 = vsub.f32 0.0, %v4360
          %v4370 = vsub.f32 0.0, %v4361
          %v4371 = vsub.f32 0.0, %v4362
          %v4372 = vsub.f32 0.0, %v4363
          %v4373 = vsub.f32 0.0, %v4364
          %v4374 = vsub.f32 0.0, %v4365
          %v4375 = vsub.f32 0.0, %v4366
          %v4376 = vsub.f32 0.0, %v4367
          %v4377 = vsub.f32 0.0, %v4368
          %v4378 = vmul.f32 %v4369, 1.442695
          %v4379 = vpow.pop %v4378
          %v4380 = vmul.f32 %v4370, 1.442695
          %v4381 = vpow.pop %v4380
          %v4382 = vmul.f32 %v4371, 1.442695
          %v4383 = vpow.pop %v4382
          %v4384 = vmul.f32 %v4372, 1.442695
          %v4385 = vpow.pop %v4384
          %v4386 = vmul.f32 %v4373, 1.442695
          %v4387 = vpow.pop %v4386
          %v4388 = vmul.f32 %v4374, 1.442695
          %v4389 = vpow.pop %v4388
          %v4390 = vmul.f32 %v4375, 1.442695
          %v4391 = vpow.pop %v4390
          %v4392 = vmul.f32 %v4376, 1.442695
          %v4393 = vpow.pop %v4392
          %v4394 = vmul.f32 %v4377, 1.442695
          %v4395 = vpow.pop %v4394
          %v4396 = vadd.f32 %v4379, 1.0
          %v4397 = vadd.f32 %v4381, 1.0
          %v4398 = vadd.f32 %v4383, 1.0
          %v4399 = vadd.f32 %v4385, 1.0
          %v4400 = vadd.f32 %v4387, 1.0
          %v4401 = vadd.f32 %v4389, 1.0
          %v4402 = vadd.f32 %v4391, 1.0
          %v4403 = vadd.f32 %v4393, 1.0
          %v4404 = vadd.f32 %v4395, 1.0
          %v4405 = vrcp.pop %v4396
          %v4406 = vmul.f32 1.0, %v4405
          %v4407 = vrcp.pop %v4397
          %v4408 = vmul.f32 1.0, %v4407
          %v4409 = vrcp.pop %v4398
          %v4410 = vmul.f32 1.0, %v4409
          %v4411 = vrcp.pop %v4399
          %v4412 = vmul.f32 1.0, %v4411
          %v4413 = vrcp.pop %v4400
          %v4414 = vmul.f32 1.0, %v4413
          %v4415 = vrcp.pop %v4401
          %v4416 = vmul.f32 1.0, %v4415
          %v4417 = vrcp.pop %v4402
          %v4418 = vmul.f32 1.0, %v4417
          %v4419 = vrcp.pop %v4403
          %v4420 = vmul.f32 1.0, %v4419
          %v4421 = vrcp.pop %v4404
          %v4422 = vmul.f32 1.0, %v4421
          %s4423 = smul.u32 %s3208, 72
          %s4424 = scalar_lea.vmem %s325, %s4423
          %vm4425 = vcmask 23552
          %4426 = vst.msk [vmem:[%s4424] sm:$0xff] %vm4425, %v4406
          %4427 = vst.msk [vmem:[%s4424 + $0x8] sm:$0xff] %vm4425, %v4408
          %4428 = vst.msk [vmem:[%s4424 + $0x10] sm:$0xff] %vm4425, %v4410
          %4429 = vst.msk [vmem:[%s4424 + $0x18] sm:$0xff] %vm4425, %v4412
          %4430 = vst.msk [vmem:[%s4424 + $0x20] sm:$0xff] %vm4425, %v4414
          %4431 = vst.msk [vmem:[%s4424 + $0x28] sm:$0xff] %vm4425, %v4416
          %4432 = vst.msk [vmem:[%s4424 + $0x30] sm:$0xff] %vm4425, %v4418
          %4433 = vst.msk [vmem:[%s4424 + $0x38] sm:$0xff] %vm4425, %v4420
          %4434 = vst.msk [vmem:[%s4424 + $0x40] sm:$0xff] %vm4425, %v4422
        $region101: #{decoder_forward.1} parent=47 // loop_footer
          %s3212 = sadd.s32 1, %s3208
        $region102: #{decoder_forward.1} parent=47 // loop_footer_branch
          %3207 = sbr.rel target = $region98
        $region103: #{decoder_forward.1} parent=47 // loop_exit
          _
        %p4435 = scmp.lt.s32.totalorder %s22, 1
        %s4436 = scalar_select %p4435, %s22, 1
        %s4437 = smul.addr %s4436, 648
        %s4438 = smul.addr %s4437, 8
        %s4439 = scalar_lea.vmem %s7, %s4438
        // Predicated region
        $region104: #{decoder_forward.1} parent=47 // pred_check
          %p4440 = pneg %p187
        $region105: #{decoder_forward.1} parent=47 // pred_check_branch
          %4442 = sbr.rel (%p4440) target = $region107
        $region106: #{decoder_forward.1} parent=47 // pred_region
          _
        $region107: #{decoder_forward.1} parent=47 // pred_fallthru
          _
      $region48: #{decoder_forward.1} parent=5 // pred_fallthru
        _
      %p4443 = scmp.le.s32.totalorder 2, %s17
      // Predicated region
      $region108: #{decoder_forward.1} parent=5 // pred_check
        %p4444 = pneg %p4443
      $region109: #{decoder_forward.1} parent=5 // pred_check_branch
        %4446 = sbr.rel (%p4444) target = $region111
      $region110: #{decoder_forward.1} parent=5 // pred_region
        %s4447 = ssub.s32 %s17, 2
        // Predicated region
        $region112: #{decoder_forward.1} parent=110 // pred_check
          %p4448 = pneg %p193
        $region113: #{decoder_forward.1} parent=110 // pred_check_branch
          %4450 = sbr.rel (%p4448) target = $region115
        $region114: #{decoder_forward.1} parent=110 // pred_region
          %p4451 = scmp.lt.s32.totalorder %s23, 1
          %s4452 = scalar_select %p4451, %s23, 1
          %s4453 = smul.addr %s4452, 648
          %s4454 = smul.addr %s4453, 8
          %s4455 = scalar_lea.vmem %s7, %s4454
        $region115: #{decoder_forward.1} parent=110 // pred_fallthru
          _
      $region111: #{decoder_forward.1} parent=5 // pred_fallthru
        _
    $region6: #{decoder_forward.1} parent=1 // loop_footer
      %s21 = sadd.s32 1, %s17
    $region7: #{decoder_forward.1} parent=1 // loop_footer_branch
      %16 = sbr.rel target = $region3
    $region8: #{decoder_forward.1} parent=1 // loop_exit
      _
    %4456 = vsyncpa [#allocation5], 1
    %s4457 = scalar_lea.sflag [#allocation5], 1
    %4458 = vsyncpa %s4457, 1
    %4459 = vsyncpa [#allocation9], 1
    %4460 = vsyncpa [#allocation12], 1
    %4461 = vsyncpa [#allocation6], 1
    %s4462 = scalar_lea.sflag [#allocation6], 1
    %4463 = vsyncpa %s4462, 1

</llo_original>
